<compile_context>
chip_gen: v5e
topology: v5e:2x2
jax: 0.10.0
libtpu: 0.0.40
codegen_flags: <defaults>
</compile_context>

<pallas_src>
import functools

import jax
import jax.numpy as jnp
from jax import lax
from jax.experimental import pallas as pl
from jax.experimental.pallas import tpu as pltpu


def _round_up(x, m):
    return ((x + m - 1) // m) * m


def _lstm2_wavefront_kernel(x_ref, wih0_ref, bigw_ref, b0_ref, b1_ref,
                            out_ref, gates0, hcat, cstate, *, t_total):
    """One T-chunk of a 2-layer LSTM with wavefront-fused recurrent matmuls."""
    B_pad, Hp = out_ref.shape
    G = 4 * Hp
    ct = x_ref.shape[0] // B_pad                 # timesteps in this chunk
    base_t = pl.program_id(0) * ct               # global time of local step 0

    # Zero initial (h, c) for both layers (PyTorch default).
    @pl.when(pl.program_id(0) == 0)
    def _init():
        hcat[...] = jnp.zeros_like(hcat)
        cstate[...] = jnp.zeros_like(cstate)

    # Phase 1: time-invariant layer-0 input projection for the whole chunk,
    # one large MXU matmul (bf16 operands, f32 accumulate), bias folded in.
    gates0[...] = (jnp.dot(x_ref[...], wih0_ref[...],
                           preferred_element_type=jnp.float32) + b0_ref[...])

    # Hoist loop-invariant weight load and bias broadcast out of the loop.
    bigw = bigw_ref[...]                                   # (2Hp, 8Hp) bf16
    b1 = jnp.broadcast_to(b1_ref[...], (B_pad, G))         # (B_pad, 4Hp) f32

    def gate_math(g, c_prev):
        i = jax.nn.sigmoid(g[:, 0 * Hp:1 * Hp])
        f = jax.nn.sigmoid(g[:, 1 * Hp:2 * Hp])
        gg = jnp.tanh(g[:, 2 * Hp:3 * Hp])
        o = jax.nn.sigmoid(g[:, 3 * Hp:4 * Hp])
        c_new = f * c_prev + i * gg
        return o * jnp.tanh(c_new), c_new

    # ---- Prologue: advance layer 0 to local time 0 (every chunk has >=1
    # valid step by construction).  Uses only the W_hh0 block of W_big.
    c0 = cstate[0]
    c1 = cstate[1]
    g0 = (gates0[pl.ds(0, B_pad), :]
          + jnp.dot(hcat[:, :Hp], bigw_ref[:Hp, :G],
                    preferred_element_type=jnp.float32))
    h0, c0 = gate_math(g0, c0)
    hcat[:, :Hp] = h0.astype(jnp.bfloat16)

    # ---- Wavefront loop: step s -> layer-1 gates @ local s and layer-0
    # gates @ local s+1 from ONE fused matmul.  Padded-T steps are masked.
    def step(s, carry):
        c0, c1, h1_out = carry
        hc = hcat[...]                                       # [h0 | h1] bf16
        comb = jnp.dot(hc, bigw, preferred_element_type=jnp.float32)
        valid1 = base_t + s < t_total                        # layer-1 @ s
        valid0 = base_t + s + 1 < t_total                    # layer-0 @ s+1

        # layer 1 @ local s
        h1n, c1n = gate_math(comb[:, G:] + b1, c1)

        # layer 0 @ local s+1
        row = pl.multiple_of((s + 1) * B_pad, B_pad)
        g0n = gates0[pl.ds(row, B_pad), :] + comb[:, :G]
        h0n, c0n = gate_math(g0n, c0)

        c1 = jnp.where(valid1, c1n, c1)
        c0 = jnp.where(valid0, c0n, c0)
        h1_out = jnp.where(valid1, h1n, h1_out)
        hcat[:, :Hp] = jnp.where(valid0, h0n.astype(jnp.bfloat16), hc[:, :Hp])
        hcat[:, Hp:] = jnp.where(valid1, h1n.astype(jnp.bfloat16), hc[:, Hp:])
        return c0, c1, h1_out

    carry0 = (c0, c1, hcat[:, Hp:].astype(jnp.float32))
    unroll = max(1, min(8, ct - 1))                          # partial unroll
    c0, c1, h1_out = lax.fori_loop(0, ct - 1, step, carry0, unroll=unroll)

    # ---- Epilogue: finish layer 1 at local time ct-1 (one extra matmul per
    # chunk; only the layer-1 half of the fused result is used).
    hc = hcat[...]
    comb = jnp.dot(hc, bigw, preferred_element_type=jnp.float32)
    h1n, c1n = gate_math(comb[:, G:] + b1, c1)
    valid_e = base_t + (ct - 1) < t_total
    c1 = jnp.where(valid_e, c1n, c1)
    h1_out = jnp.where(valid_e, h1n, h1_out)
    hcat[:, Hp:] = jnp.where(valid_e, h1n.astype(jnp.bfloat16), hc[:, Hp:])

    # Persist cell state for the next chunk (h persists in hcat already).
    cstate[0] = c0
    cstate[1] = c1

    # Store only once, on the last chunk (resident output block).
    @pl.when(pl.program_id(0) == pl.num_programs(0) - 1)
    def _store():
        out_ref[...] = h1_out


def _pack_params(params, n_in, n_hidden, n_in_pad, h_pad):
    """Pad gate blocks to h_pad lanes, build the fused wavefront weight
    W_big = [[W_hh0, W_ih1], [0, W_hh1]], cast matmul weights to bf16."""
    G = 4 * h_pad

    def pad_w(w, rows, r_pad):
        out = jnp.zeros((r_pad, G), jnp.float32)
        for g in range(4):
            out = out.at[:rows, g * h_pad:g * h_pad + n_hidden].set(
                w[:, g * n_hidden:(g + 1) * n_hidden])
        return out

    def pad_b(b):
        out = jnp.zeros((1, G), jnp.float32)
        for g in range(4):
            out = out.at[0, g * h_pad:g * h_pad + n_hidden].set(
                b[0, g * n_hidden:(g + 1) * n_hidden])
        return out

    wih0 = pad_w(params["wih0"], n_in, n_in_pad).astype(jnp.bfloat16)
    whh0 = pad_w(params["whh0"], n_hidden, h_pad)
    wih1 = pad_w(params["wih1"], n_hidden, h_pad)
    whh1 = pad_w(params["whh1"], n_hidden, h_pad)
    top = jnp.concatenate([whh0, wih1], axis=1)             # (h_pad, 8*h_pad)
    bot = jnp.concatenate([jnp.zeros_like(whh1), whh1], axis=1)
    bigw = jnp.concatenate([top, bot], axis=0).astype(jnp.bfloat16)
    return {"wih0": wih0, "bigw": bigw,
            "b0": pad_b(params["b0"]), "b1": pad_b(params["b1"])}


def encoder_forward(x, params, *, chunk_t=32):
    """Pallas equivalent of Encoder.forward: final h of layer 2, (B, nHidden)."""
    T, B, n_in = x.shape
    H = params["whh0"].shape[0]
    B_pad = _round_up(B, 8)
    H_pad = _round_up(H, 128)
    n_in_pad = _round_up(n_in, 128)
    G = 4 * H_pad

    pk = _pack_params(params, n_in, H, n_in_pad, H_pad)

    # Fixed chunk size + masked tail (no divisor fallback / ct=1 cliff).
    ct = max(1, min(chunk_t, T))
    n_chunks = pl.cdiv(T, ct)
    T_pad = n_chunks * ct

    # Cast to bf16 BEFORE padding (halves wrapper HBM traffic), single pad.
    x_bf = x.astype(jnp.bfloat16)
    x_pad = jnp.pad(x_bf, ((0, T_pad - T), (0, B_pad - B), (0, n_in_pad - n_in)))
    x2d = x_pad.reshape(T_pad * B_pad, n_in_pad)

    kernel = functools.partial(_lstm2_wavefront_kernel, t_total=T)

    out_pad = pl.pallas_call(
        kernel,
        out_shape=jax.ShapeDtypeStruct((B_pad, H_pad), jnp.float32),
        grid_spec=pltpu.PrefetchScalarGridSpec(
            num_scalar_prefetch=0,
            grid=(n_chunks,),
            in_specs=[
                pl.BlockSpec((ct * B_pad, n_in_pad), lambda c: (c, 0)),
                pl.BlockSpec((n_in_pad, G), lambda c: (0, 0)),
                pl.BlockSpec((2 * H_pad, 2 * G), lambda c: (0, 0)),
                pl.BlockSpec((1, G), lambda c: (0, 0)),
                pl.BlockSpec((1, G), lambda c: (0, 0)),
            ],
            out_specs=pl.BlockSpec((B_pad, H_pad), lambda c: (0, 0)),
            scratch_shapes=[
                pltpu.VMEM((ct * B_pad, G), jnp.float32),      # chunk input gates
                pltpu.VMEM((B_pad, 2 * H_pad), jnp.bfloat16),  # [h0 | h1] carry
                pltpu.VMEM((2, B_pad, H_pad), jnp.float32),    # c0, c1 carry
            ]),
        compiler_params=pltpu.CompilerParams(
            dimension_semantics=("arbitrary",),
            vmem_limit_bytes=32 * 1024 * 1024),
    )(x2d, pk["wih0"], pk["bigw"], pk["b0"], pk["b1"])

    return out_pad[:B, :H]


def init_params(key, n_in, n_hidden):
    """Deterministic synthetic init mirroring nn.LSTM parameter shapes."""
    k = 1.0 / jnp.sqrt(jnp.float32(n_hidden))
    keys = jax.random.split(key, 8)

    def u(kk, shape):
        return jax.random.uniform(kk, shape, jnp.float32, -k, k)

    wih0 = u(keys[0], (4 * n_hidden, n_in)).T          # stored as (nIn, 4H)
    whh0 = u(keys[1], (4 * n_hidden, n_hidden)).T      # stored as (H, 4H)
    b0 = (u(keys[2], (4 * n_hidden,)) + u(keys[3], (4 * n_hidden,)))[None, :]
    wih1 = u(keys[4], (4 * n_hidden, n_hidden)).T
    whh1 = u(keys[5], (4 * n_hidden, n_hidden)).T
    b1 = (u(keys[6], (4 * n_hidden,)) + u(keys[7], (4 * n_hidden,)))[None, :]
    return {"wih0": wih0, "whh0": whh0, "b0": b0,
            "wih1": wih1, "whh1": whh1, "b1": b1}


def encoder_ref(x, params):
    """Pure-JAX reference (torch.nn.LSTM num_layers=2 math), with the same
    bf16 MXU-operand rounding the kernel uses; accumulation and gates in f32."""
    T, B, _ = x.shape
    H = params["whh0"].shape[0]

    def mm(a, w):
        return jnp.dot(a.astype(jnp.bfloat16), w.astype(jnp.bfloat16),
                       preferred_element_type=jnp.float32)

    def cell(x_t, h, c, wih, whh, b):
        g = mm(x_t, wih) + mm(h, whh) + b
        i = jax.nn.sigmoid(g[:, 0 * H:1 * H])
        f = jax.nn.sigmoid(g[:, 1 * H:2 * H])
        gg = jnp.tanh(g[:, 2 * H:3 * H])
        o = jax.nn.sigmoid(g[:, 3 * H:4 * H])
        c_new = f * c + i * gg
        return o * jnp.tanh(c_new), c_new

    def step(carry, x_t):
        h0, c0, h1, c1 = carry
        h0, c0 = cell(x_t, h0, c0, params["wih0"], params["whh0"], params["b0"])
        h1, c1 = cell(h0, h1, c1, params["wih1"], params["whh1"], params["b1"])
        return (h0, c0, h1, c1), None

    z = jnp.zeros((B, H), jnp.float32)
    (h0, c0, h1, c1), _ = lax.scan(step, (z, z, z, z), x)
    return h1


if __name__ == "__main__":
    # Awkward T on purpose: exercises both multi-chunk state carry and the
    # masked ragged tail (2 chunks of 8, second chunk has 5 valid steps).
    T, B, N_IN, N_HIDDEN = 13, 2, 16, 32

    key = jax.random.PRNGKey(0)
    kx, kp = jax.random.split(key)
    x = jax.random.normal(kx, (T, B, N_IN), jnp.float32)
    params = init_params(kp, N_IN, N_HIDDEN)

    ref = jax.block_until_ready(encoder_ref(x, params))

    out = jax.block_until_ready(encoder_forward(x, params, chunk_t=8))
    assert out.shape == (B, N_HIDDEN)
    assert jnp.allclose(out, ref, rtol=1e-4, atol=1e-4), "mismatch (chunk_t=8)"

    out2 = jax.block_until_ready(encoder_forward(x, params))   # single chunk
    assert jnp.allclose(out2, ref, rtol=1e-4, atol=1e-4), "mismatch (default)"

    print("KERNEL_OK")
</pallas_src>

<mosaic_0001>
module attributes {stable_mosaic.version = 11 : i64} {
  func.func @_lstm2_wavefront_kernel(%arg0: i32, %arg1: memref<64x128xbf16, #tpu.memory_space<vmem>>, %arg2: memref<128x512xbf16, #tpu.memory_space<vmem>>, %arg3: memref<256x1024xbf16, #tpu.memory_space<vmem>>, %arg4: memref<1x512xf32, #tpu.memory_space<vmem>>, %arg5: memref<1x512xf32, #tpu.memory_space<vmem>>, %arg6: memref<8x128xf32, #tpu.memory_space<vmem>>, %arg7: memref<64x512xf32, #tpu.memory_space<vmem>>, %arg8: memref<8x256xbf16, #tpu.memory_space<vmem>>, %arg9: memref<2x8x128xf32, #tpu.memory_space<vmem>>) attributes {dimension_semantics = [#tpu.dimension_semantics<arbitrary>], iteration_bounds = array<i64: 2>, scalar_prefetch = 0 : i64, scratch_operands = 3 : i64, tpu.core_type = #tpu.core_type<tc>, window_params = [{transform_indices = @transform_0, window_bounds = array<i64: 64, 128>}, {pipeline_mode = #tpu.pipeline_mode<synchronous>, transform_indices = @transform_1, window_bounds = array<i64: 128, 512>}, {pipeline_mode = #tpu.pipeline_mode<synchronous>, transform_indices = @transform_2, window_bounds = array<i64: 256, 1024>}, {pipeline_mode = #tpu.pipeline_mode<synchronous>, transform_indices = @transform_3, window_bounds = array<i64: 1, 512>}, {pipeline_mode = #tpu.pipeline_mode<synchronous>, transform_indices = @transform_4, window_bounds = array<i64: 1, 512>}, {pipeline_mode = #tpu.pipeline_mode<synchronous>, transform_indices = @transform_5, window_bounds = array<i64: 8, 128>}]} {
    %c8_i32 = arith.constant 8 : i32
    %0 = arith.muli %arg0, %c8_i32 : i32
    %c0_i32 = arith.constant 0 : i32
    %1 = arith.cmpi eq, %arg0, %c0_i32 : i32
    %2 = arith.extui %1 : i1 to i32
    %c0_i32_0 = arith.constant 0 : i32
    %3 = arith.cmpi ne, %2, %c0_i32_0 : i32
    scf.if %3 {
      %cst_181 = arith.constant 0.000000e+00 : bf16
      %638 = vector.broadcast %cst_181 : bf16 to vector<8x256xbf16>
      %c0_182 = arith.constant 0 : index
      %c0_183 = arith.constant 0 : index
      %639 = vector.load %arg8[%c0_182, %c0_183] : memref<8x256xbf16, #tpu.memory_space<vmem>>, vector<8x256xbf16>
      tpu.vector_store %arg8[%c0_182, %c0_183], %638 {strides = array<i32>} : memref<8x256xbf16, #tpu.memory_space<vmem>>, vector<8x256xbf16>,
      %cst_184 = arith.constant 0.000000e+00 : f32
      %640 = vector.broadcast %cst_184 : f32 to vector<2x8x128xf32>
      %c0_185 = arith.constant 0 : index
      %c0_186 = arith.constant 0 : index
      %c0_187 = arith.constant 0 : index
      %641 = vector.load %arg9[%c0_185, %c0_186, %c0_187] : memref<2x8x128xf32, #tpu.memory_space<vmem>>, vector<2x8x128xf32>
      tpu.vector_store %arg9[%c0_185, %c0_186, %c0_187], %640 {strides = array<i32>} : memref<2x8x128xf32, #tpu.memory_space<vmem>>, vector<2x8x128xf32>,
    } else {
    }
    %c0 = arith.constant 0 : index
    %c0_1 = arith.constant 0 : index
    %4 = vector.load %arg1[%c0, %c0_1] : memref<64x128xbf16, #tpu.memory_space<vmem>>, vector<64x128xbf16>
    %c0_2 = arith.constant 0 : index
    %c0_3 = arith.constant 0 : index
    %5 = vector.load %arg2[%c0_2, %c0_3] : memref<128x512xbf16, #tpu.memory_space<vmem>>, vector<128x512xbf16>
    %cst = arith.constant dense<0.000000e+00> : vector<64x512xf32>
    %6 = tpu.matmul %4, %5, %cst {dimension_numbers = #tpu.dot_dimension_numbers<[1], [0], [0], [1], [0, 0, 1, 1], [], []>} : vector<64x128xbf16>, vector<128x512xbf16>, vector<64x512xf32> -> vector<64x512xf32>
    %c0_4 = arith.constant 0 : index
    %c0_5 = arith.constant 0 : index
    %7 = vector.load %arg4[%c0_4, %c0_5] : memref<1x512xf32, #tpu.memory_space<vmem>>, vector<1x512xf32>
    %8 = vector.broadcast %7 : vector<1x512xf32> to vector<64x512xf32>
    %9 = arith.addf %6, %8 : vector<64x512xf32>
    %c0_6 = arith.constant 0 : index
    %c0_7 = arith.constant 0 : index
    %10 = vector.load %arg7[%c0_6, %c0_7] : memref<64x512xf32, #tpu.memory_space<vmem>>, vector<64x512xf32>
    tpu.vector_store %arg7[%c0_6, %c0_7], %9 {strides = array<i32>} : memref<64x512xf32, #tpu.memory_space<vmem>>, vector<64x512xf32>,
    %c0_8 = arith.constant 0 : index
    %c0_9 = arith.constant 0 : index
    %11 = vector.load %arg3[%c0_8, %c0_9] : memref<256x1024xbf16, #tpu.memory_space<vmem>>, vector<256x1024xbf16>
    %c0_10 = arith.constant 0 : index
    %c0_11 = arith.constant 0 : index
    %12 = vector.load %arg5[%c0_10, %c0_11] : memref<1x512xf32, #tpu.memory_space<vmem>>, vector<1x512xf32>
    %13 = vector.shape_cast %12 : vector<1x512xf32> to vector<1x512xf32>
    %14 = vector.broadcast %13 : vector<1x512xf32> to vector<8x512xf32>
    %c0_12 = arith.constant 0 : index
    %c0_13 = arith.constant 0 : index
    %c0_14 = arith.constant 0 : index
    %15 = vector.load %arg9[%c0_12, %c0_13, %c0_14] : memref<2x8x128xf32, #tpu.memory_space<vmem>>, vector<1x8x128xf32>
    %16 = vector.shape_cast %15 : vector<1x8x128xf32> to vector<8x128xf32>
    %c1 = arith.constant 1 : index
    %c0_15 = arith.constant 0 : index
    %c0_16 = arith.constant 0 : index
    %17 = vector.load %arg9[%c1, %c0_15, %c0_16] : memref<2x8x128xf32, #tpu.memory_space<vmem>>, vector<1x8x128xf32>
    %18 = vector.shape_cast %17 : vector<1x8x128xf32> to vector<8x128xf32>
    %c0_17 = arith.constant 0 : index
    %c0_18 = arith.constant 0 : index
    %19 = vector.load %arg7[%c0_17, %c0_18] : memref<64x512xf32, #tpu.memory_space<vmem>>, vector<8x512xf32>
    %c0_19 = arith.constant 0 : index
    %c0_20 = arith.constant 0 : index
    %20 = vector.load %arg8[%c0_19, %c0_20] : memref<8x256xbf16, #tpu.memory_space<vmem>>, vector<8x128xbf16>
    %c0_21 = arith.constant 0 : index
    %c0_22 = arith.constant 0 : index
    %21 = vector.load %arg3[%c0_21, %c0_22] : memref<256x1024xbf16, #tpu.memory_space<vmem>>, vector<128x512xbf16>
    %cst_23 = arith.constant dense<0.000000e+00> : vector<8x512xf32>
    %22 = tpu.matmul %20, %21, %cst_23 {dimension_numbers = #tpu.dot_dimension_numbers<[1], [0], [0], [1], [0, 0, 1, 1], [], []>} : vector<8x128xbf16>, vector<128x512xbf16>, vector<8x512xf32> -> vector<8x512xf32>
    %23 = arith.addf %19, %22 : vector<8x512xf32>
    %24 = vector.extract_strided_slice %23 {offsets = [0, 0], sizes = [8, 128], strides = [1, 1]} : vector<8x512xf32> to vector<8x128xf32>
    %25 = arith.negf %24 : vector<8x128xf32>
    %26 = math.exp %25 : vector<8x128xf32>
    %cst_24 = arith.constant 1.000000e+00 : f32
    %27 = vector.broadcast %cst_24 : f32 to vector<8x128xf32>
    %28 = arith.addf %27, %26 : vector<8x128xf32>
    %29 = arith.divf %27, %28 : vector<8x128xf32>
    %30 = vector.extract_strided_slice %23 {offsets = [0, 128], sizes = [8, 128], strides = [1, 1]} : vector<8x512xf32> to vector<8x128xf32>
    %31 = arith.negf %30 : vector<8x128xf32>
    %32 = math.exp %31 : vector<8x128xf32>
    %cst_25 = arith.constant 1.000000e+00 : f32
    %33 = vector.broadcast %cst_25 : f32 to vector<8x128xf32>
    %34 = arith.addf %33, %32 : vector<8x128xf32>
    %35 = arith.divf %33, %34 : vector<8x128xf32>
    %36 = vector.extract_strided_slice %23 {offsets = [0, 256], sizes = [8, 128], strides = [1, 1]} : vector<8x512xf32> to vector<8x128xf32>
    %37 = math.tanh %36 : vector<8x128xf32>
    %38 = vector.extract_strided_slice %23 {offsets = [0, 384], sizes = [8, 128], strides = [1, 1]} : vector<8x512xf32> to vector<8x128xf32>
    %39 = arith.negf %38 : vector<8x128xf32>
    %40 = math.exp %39 : vector<8x128xf32>
    %cst_26 = arith.constant 1.000000e+00 : f32
    %41 = vector.broadcast %cst_26 : f32 to vector<8x128xf32>
    %42 = arith.addf %41, %40 : vector<8x128xf32>
    %43 = arith.divf %41, %42 : vector<8x128xf32>
    %44 = arith.mulf %35, %16 : vector<8x128xf32>
    %45 = arith.mulf %29, %37 : vector<8x128xf32>
    %46 = arith.addf %44, %45 : vector<8x128xf32>
    %47 = math.tanh %46 : vector<8x128xf32>
    %48 = arith.mulf %43, %47 : vector<8x128xf32>
    %49 = arith.truncf %48 : vector<8x128xf32> to vector<8x128xbf16>
    %c0_27 = arith.constant 0 : index
    %c0_28 = arith.constant 0 : index
    %50 = vector.load %arg8[%c0_27, %c0_28] : memref<8x256xbf16, #tpu.memory_space<vmem>>, vector<8x128xbf16>
    tpu.vector_store %arg8[%c0_27, %c0_28], %49 {strides = array<i32>} : memref<8x256xbf16, #tpu.memory_space<vmem>>, vector<8x128xbf16>,
    %c0_29 = arith.constant 0 : index
    %c128 = arith.constant 128 : index
    %51 = vector.load %arg8[%c0_29, %c128] : memref<8x256xbf16, #tpu.memory_space<vmem>>, vector<8x128xbf16>
    %52 = arith.extf %51 : vector<8x128xbf16> to vector<8x128xf32>
    %c0_i32_30 = arith.constant 0 : i32
    %c0_31 = arith.constant 0 : index
    %c0_32 = arith.constant 0 : index
    %53 = vector.load %arg8[%c0_31, %c0_32] : memref<8x256xbf16, #tpu.memory_space<vmem>>, vector<8x256xbf16>
    %cst_33 = arith.constant dense<0.000000e+00> : vector<8x1024xf32>
    %54 = tpu.matmul %53, %11, %cst_33 {dimension_numbers = #tpu.dot_dimension_numbers<[1], [0], [0], [1], [0, 0, 1, 1], [], []>} : vector<8x256xbf16>, vector<256x1024xbf16>, vector<8x1024xf32> -> vector<8x1024xf32>
    %55 = arith.addi %0, %c0_i32_30 : i32
    %c13_i32 = arith.constant 13 : i32
    %56 = arith.cmpi slt, %55, %c13_i32 : i32
    %57 = arith.addi %0, %c0_i32_30 : i32
    %c1_i32 = arith.constant 1 : i32
    %58 = arith.addi %57, %c1_i32 : i32
    %c13_i32_34 = arith.constant 13 : i32
    %59 = arith.cmpi slt, %58, %c13_i32_34 : i32
    %60 = vector.extract_strided_slice %54 {offsets = [0, 512], sizes = [8, 512], strides = [1, 1]} : vector<8x1024xf32> to vector<8x512xf32>
    %61 = arith.addf %60, %14 : vector<8x512xf32>
    %62 = vector.extract_strided_slice %61 {offsets = [0, 0], sizes = [8, 128], strides = [1, 1]} : vector<8x512xf32> to vector<8x128xf32>
    %63 = arith.negf %62 : vector<8x128xf32>
    %64 = math.exp %63 : vector<8x128xf32>
    %cst_35 = arith.constant 1.000000e+00 : f32
    %65 = vector.broadcast %cst_35 : f32 to vector<8x128xf32>
    %66 = arith.addf %65, %64 : vector<8x128xf32>
    %67 = arith.divf %65, %66 : vector<8x128xf32>
    %68 = vector.extract_strided_slice %61 {offsets = [0, 128], sizes = [8, 128], strides = [1, 1]} : vector<8x512xf32> to vector<8x128xf32>
    %69 = arith.negf %68 : vector<8x128xf32>
    %70 = math.exp %69 : vector<8x128xf32>
    %cst_36 = arith.constant 1.000000e+00 : f32
    %71 = vector.broadcast %cst_36 : f32 to vector<8x128xf32>
    %72 = arith.addf %71, %70 : vector<8x128xf32>
    %73 = arith.divf %71, %72 : vector<8x128xf32>
    %74 = vector.extract_strided_slice %61 {offsets = [0, 256], sizes = [8, 128], strides = [1, 1]} : vector<8x512xf32> to vector<8x128xf32>
    %75 = math.tanh %74 : vector<8x128xf32>
    %76 = vector.extract_strided_slice %61 {offsets = [0, 384], sizes = [8, 128], strides = [1, 1]} : vector<8x512xf32> to vector<8x128xf32>
    %77 = arith.negf %76 : vector<8x128xf32>
    %78 = math.exp %77 : vector<8x128xf32>
    %cst_37 = arith.constant 1.000000e+00 : f32
    %79 = vector.broadcast %cst_37 : f32 to vector<8x128xf32>
    %80 = arith.addf %79, %78 : vector<8x128xf32>
    %81 = arith.divf %79, %80 : vector<8x128xf32>
    %82 = arith.mulf %73, %18 : vector<8x128xf32>
    %83 = arith.mulf %67, %75 : vector<8x128xf32>
    %84 = arith.addf %82, %83 : vector<8x128xf32>
    %85 = math.tanh %84 : vector<8x128xf32>
    %86 = arith.mulf %81, %85 : vector<8x128xf32>
    %c1_i32_38 = arith.constant 1 : i32
    %87 = arith.addi %c0_i32_30, %c1_i32_38 : i32
    %c8_i32_39 = arith.constant 8 : i32
    %88 = arith.muli %87, %c8_i32_39 : i32
    %89 = tpu.assume_multiple %88, 8 : i32
    %90 = arith.index_cast %89 : i32 to index
    %c0_40 = arith.constant 0 : index
    %91 = vector.load %arg7[%90, %c0_40] : memref<64x512xf32, #tpu.memory_space<vmem>>, vector<8x512xf32>
    %92 = vector.extract_strided_slice %54 {offsets = [0, 0], sizes = [8, 512], strides = [1, 1]} : vector<8x1024xf32> to vector<8x512xf32>
    %93 = arith.addf %91, %92 : vector<8x512xf32>
    %94 = vector.extract_strided_slice %93 {offsets = [0, 0], sizes = [8, 128], strides = [1, 1]} : vector<8x512xf32> to vector<8x128xf32>
    %95 = arith.negf %94 : vector<8x128xf32>
    %96 = math.exp %95 : vector<8x128xf32>
    %cst_41 = arith.constant 1.000000e+00 : f32
    %97 = vector.broadcast %cst_41 : f32 to vector<8x128xf32>
    %98 = arith.addf %97, %96 : vector<8x128xf32>
    %99 = arith.divf %97, %98 : vector<8x128xf32>
    %100 = vector.extract_strided_slice %93 {offsets = [0, 128], sizes = [8, 128], strides = [1, 1]} : vector<8x512xf32> to vector<8x128xf32>
    %101 = arith.negf %100 : vector<8x128xf32>
    %102 = math.exp %101 : vector<8x128xf32>
    %cst_42 = arith.constant 1.000000e+00 : f32
    %103 = vector.broadcast %cst_42 : f32 to vector<8x128xf32>
    %104 = arith.addf %103, %102 : vector<8x128xf32>
    %105 = arith.divf %103, %104 : vector<8x128xf32>
    %106 = vector.extract_strided_slice %93 {offsets = [0, 256], sizes = [8, 128], strides = [1, 1]} : vector<8x512xf32> to vector<8x128xf32>
    %107 = math.tanh %106 : vector<8x128xf32>
    %108 = vector.extract_strided_slice %93 {offsets = [0, 384], sizes = [8, 128], strides = [1, 1]} : vector<8x512xf32> to vector<8x128xf32>
    %109 = arith.negf %108 : vector<8x128xf32>
    %110 = math.exp %109 : vector<8x128xf32>
    %cst_43 = arith.constant 1.000000e+00 : f32
    %111 = vector.broadcast %cst_43 : f32 to vector<8x128xf32>
    %112 = arith.addf %111, %110 : vector<8x128xf32>
    %113 = arith.divf %111, %112 : vector<8x128xf32>
    %114 = arith.mulf %105, %46 : vector<8x128xf32>
    %115 = arith.mulf %99, %107 : vector<8x128xf32>
    %116 = arith.addf %114, %115 : vector<8x128xf32>
    %117 = math.tanh %116 : vector<8x128xf32>
    %118 = arith.mulf %113, %117 : vector<8x128xf32>
    %119 = arith.select %56, %84, %18 : vector<8x128xf32>
    %120 = arith.select %59, %116, %46 : vector<8x128xf32>
    %121 = arith.select %56, %86, %52 : vector<8x128xf32>
    %122 = arith.truncf %118 : vector<8x128xf32> to vector<8x128xbf16>
    %123 = vector.extract_strided_slice %53 {offsets = [0, 0], sizes = [8, 128], strides = [1, 1]} : vector<8x256xbf16> to vector<8x128xbf16>
    %124 = arith.select %59, %122, %123 : vector<8x128xbf16>
    %c0_44 = arith.constant 0 : index
    %c0_45 = arith.constant 0 : index
    %125 = vector.load %arg8[%c0_44, %c0_45] : memref<8x256xbf16, #tpu.memory_space<vmem>>, vector<8x128xbf16>
    tpu.vector_store %arg8[%c0_44, %c0_45], %124 {strides = array<i32>} : memref<8x256xbf16, #tpu.memory_space<vmem>>, vector<8x128xbf16>,
    %126 = arith.truncf %86 : vector<8x128xf32> to vector<8x128xbf16>
    %127 = vector.extract_strided_slice %53 {offsets = [0, 128], sizes = [8, 128], strides = [1, 1]} : vector<8x256xbf16> to vector<8x128xbf16>
    %128 = arith.select %56, %126, %127 : vector<8x128xbf16>
    %c0_46 = arith.constant 0 : index
    %c128_47 = arith.constant 128 : index
    %129 = vector.load %arg8[%c0_46, %c128_47] : memref<8x256xbf16, #tpu.memory_space<vmem>>, vector<8x128xbf16>
    tpu.vector_store %arg8[%c0_46, %c128_47], %128 {strides = array<i32>} : memref<8x256xbf16, #tpu.memory_space<vmem>>, vector<8x128xbf16>,
    %c1_i32_48 = arith.constant 1 : i32
    %c0_49 = arith.constant 0 : index
    %c0_50 = arith.constant 0 : index
    %130 = vector.load %arg8[%c0_49, %c0_50] : memref<8x256xbf16, #tpu.memory_space<vmem>>, vector<8x256xbf16>
    %cst_51 = arith.constant dense<0.000000e+00> : vector<8x1024xf32>
    %131 = tpu.matmul %130, %11, %cst_51 {dimension_numbers = #tpu.dot_dimension_numbers<[1], [0], [0], [1], [0, 0, 1, 1], [], []>} : vector<8x256xbf16>, vector<256x1024xbf16>, vector<8x1024xf32> -> vector<8x1024xf32>
    %132 = arith.addi %0, %c1_i32_48 : i32
    %c13_i32_52 = arith.constant 13 : i32
    %133 = arith.cmpi slt, %132, %c13_i32_52 : i32
    %134 = arith.addi %0, %c1_i32_48 : i32
    %c1_i32_53 = arith.constant 1 : i32
    %135 = arith.addi %134, %c1_i32_53 : i32
    %c13_i32_54 = arith.constant 13 : i32
    %136 = arith.cmpi slt, %135, %c13_i32_54 : i32
    %137 = vector.extract_strided_slice %131 {offsets = [0, 512], sizes = [8, 512], strides = [1, 1]} : vector<8x1024xf32> to vector<8x512xf32>
    %138 = arith.addf %137, %14 : vector<8x512xf32>
    %139 = vector.extract_strided_slice %138 {offsets = [0, 0], sizes = [8, 128], strides = [1, 1]} : vector<8x512xf32> to vector<8x128xf32>
    %140 = arith.negf %139 : vector<8x128xf32>
    %141 = math.exp %140 : vector<8x128xf32>
    %cst_55 = arith.constant 1.000000e+00 : f32
    %142 = vector.broadcast %cst_55 : f32 to vector<8x128xf32>
    %143 = arith.addf %142, %141 : vector<8x128xf32>
    %144 = arith.divf %142, %143 : vector<8x128xf32>
    %145 = vector.extract_strided_slice %138 {offsets = [0, 128], sizes = [8, 128], strides = [1, 1]} : vector<8x512xf32> to vector<8x128xf32>
    %146 = arith.negf %145 : vector<8x128xf32>
    %147 = math.exp %146 : vector<8x128xf32>
    %cst_56 = arith.constant 1.000000e+00 : f32
    %148 = vector.broadcast %cst_56 : f32 to vector<8x128xf32>
    %149 = arith.addf %148, %147 : vector<8x128xf32>
    %150 = arith.divf %148, %149 : vector<8x128xf32>
    %151 = vector.extract_strided_slice %138 {offsets = [0, 256], sizes = [8, 128], strides = [1, 1]} : vector<8x512xf32> to vector<8x128xf32>
    %152 = math.tanh %151 : vector<8x128xf32>
    %153 = vector.extract_strided_slice %138 {offsets = [0, 384], sizes = [8, 128], strides = [1, 1]} : vector<8x512xf32> to vector<8x128xf32>
    %154 = arith.negf %153 : vector<8x128xf32>
    %155 = math.exp %154 : vector<8x128xf32>
    %cst_57 = arith.constant 1.000000e+00 : f32
    %156 = vector.broadcast %cst_57 : f32 to vector<8x128xf32>
    %157 = arith.addf %156, %155 : vector<8x128xf32>
    %158 = arith.divf %156, %157 : vector<8x128xf32>
    %159 = arith.mulf %150, %119 : vector<8x128xf32>
    %160 = arith.mulf %144, %152 : vector<8x128xf32>
    %161 = arith.addf %159, %160 : vector<8x128xf32>
    %162 = math.tanh %161 : vector<8x128xf32>
    %163 = arith.mulf %158, %162 : vector<8x128xf32>
    %c1_i32_58 = arith.constant 1 : i32
    %164 = arith.addi %c1_i32_48, %c1_i32_58 : i32
    %c8_i32_59 = arith.constant 8 : i32
    %165 = arith.muli %164, %c8_i32_59 : i32
    %166 = tpu.assume_multiple %165, 8 : i32
    %167 = arith.index_cast %166 : i32 to index
    %c0_60 = arith.constant 0 : index
    %168 = vector.load %arg7[%167, %c0_60] : memref<64x512xf32, #tpu.memory_space<vmem>>, vector<8x512xf32>
    %169 = vector.extract_strided_slice %131 {offsets = [0, 0], sizes = [8, 512], strides = [1, 1]} : vector<8x1024xf32> to vector<8x512xf32>
    %170 = arith.addf %168, %169 : vector<8x512xf32>
    %171 = vector.extract_strided_slice %170 {offsets = [0, 0], sizes = [8, 128], strides = [1, 1]} : vector<8x512xf32> to vector<8x128xf32>
    %172 = arith.negf %171 : vector<8x128xf32>
    %173 = math.exp %172 : vector<8x128xf32>
    %cst_61 = arith.constant 1.000000e+00 : f32
    %174 = vector.broadcast %cst_61 : f32 to vector<8x128xf32>
    %175 = arith.addf %174, %173 : vector<8x128xf32>
    %176 = arith.divf %174, %175 : vector<8x128xf32>
    %177 = vector.extract_strided_slice %170 {offsets = [0, 128], sizes = [8, 128], strides = [1, 1]} : vector<8x512xf32> to vector<8x128xf32>
    %178 = arith.negf %177 : vector<8x128xf32>
    %179 = math.exp %178 : vector<8x128xf32>
    %cst_62 = arith.constant 1.000000e+00 : f32
    %180 = vector.broadcast %cst_62 : f32 to vector<8x128xf32>
    %181 = arith.addf %180, %179 : vector<8x128xf32>
    %182 = arith.divf %180, %181 : vector<8x128xf32>
    %183 = vector.extract_strided_slice %170 {offsets = [0, 256], sizes = [8, 128], strides = [1, 1]} : vector<8x512xf32> to vector<8x128xf32>
    %184 = math.tanh %183 : vector<8x128xf32>
    %185 = vector.extract_strided_slice %170 {offsets = [0, 384], sizes = [8, 128], strides = [1, 1]} : vector<8x512xf32> to vector<8x128xf32>
    %186 = arith.negf %185 : vector<8x128xf32>
    %187 = math.exp %186 : vector<8x128xf32>
    %cst_63 = arith.constant 1.000000e+00 : f32
    %188 = vector.broadcast %cst_63 : f32 to vector<8x128xf32>
    %189 = arith.addf %188, %187 : vector<8x128xf32>
    %190 = arith.divf %188, %189 : vector<8x128xf32>
    %191 = arith.mulf %182, %120 : vector<8x128xf32>
    %192 = arith.mulf %176, %184 : vector<8x128xf32>
    %193 = arith.addf %191, %192 : vector<8x128xf32>
    %194 = math.tanh %193 : vector<8x128xf32>
    %195 = arith.mulf %190, %194 : vector<8x128xf32>
    %196 = arith.select %133, %161, %119 : vector<8x128xf32>
    %197 = arith.select %136, %193, %120 : vector<8x128xf32>
    %198 = arith.select %133, %163, %121 : vector<8x128xf32>
    %199 = arith.truncf %195 : vector<8x128xf32> to vector<8x128xbf16>
    %200 = vector.extract_strided_slice %130 {offsets = [0, 0], sizes = [8, 128], strides = [1, 1]} : vector<8x256xbf16> to vector<8x128xbf16>
    %201 = arith.select %136, %199, %200 : vector<8x128xbf16>
    %c0_64 = arith.constant 0 : index
    %c0_65 = arith.constant 0 : index
    %202 = vector.load %arg8[%c0_64, %c0_65] : memref<8x256xbf16, #tpu.memory_space<vmem>>, vector<8x128xbf16>
    tpu.vector_store %arg8[%c0_64, %c0_65], %201 {strides = array<i32>} : memref<8x256xbf16, #tpu.memory_space<vmem>>, vector<8x128xbf16>,
    %203 = arith.truncf %163 : vector<8x128xf32> to vector<8x128xbf16>
    %204 = vector.extract_strided_slice %130 {offsets = [0, 128], sizes = [8, 128], strides = [1, 1]} : vector<8x256xbf16> to vector<8x128xbf16>
    %205 = arith.select %133, %203, %204 : vector<8x128xbf16>
    %c0_66 = arith.constant 0 : index
    %c128_67 = arith.constant 128 : index
    %206 = vector.load %arg8[%c0_66, %c128_67] : memref<8x256xbf16, #tpu.memory_space<vmem>>, vector<8x128xbf16>
    tpu.vector_store %arg8[%c0_66, %c128_67], %205 {strides = array<i32>} : memref<8x256xbf16, #tpu.memory_space<vmem>>, vector<8x128xbf16>,
    %c2_i32 = arith.constant 2 : i32
    %c0_68 = arith.constant 0 : index
    %c0_69 = arith.constant 0 : index
    %207 = vector.load %arg8[%c0_68, %c0_69] : memref<8x256xbf16, #tpu.memory_space<vmem>>, vector<8x256xbf16>
    %cst_70 = arith.constant dense<0.000000e+00> : vector<8x1024xf32>
    %208 = tpu.matmul %207, %11, %cst_70 {dimension_numbers = #tpu.dot_dimension_numbers<[1], [0], [0], [1], [0, 0, 1, 1], [], []>} : vector<8x256xbf16>, vector<256x1024xbf16>, vector<8x1024xf32> -> vector<8x1024xf32>
    %209 = arith.addi %0, %c2_i32 : i32
    %c13_i32_71 = arith.constant 13 : i32
    %210 = arith.cmpi slt, %209, %c13_i32_71 : i32
    %211 = arith.addi %0, %c2_i32 : i32
    %c1_i32_72 = arith.constant 1 : i32
    %212 = arith.addi %211, %c1_i32_72 : i32
    %c13_i32_73 = arith.constant 13 : i32
    %213 = arith.cmpi slt, %212, %c13_i32_73 : i32
    %214 = vector.extract_strided_slice %208 {offsets = [0, 512], sizes = [8, 512], strides = [1, 1]} : vector<8x1024xf32> to vector<8x512xf32>
    %215 = arith.addf %214, %14 : vector<8x512xf32>
    %216 = vector.extract_strided_slice %215 {offsets = [0, 0], sizes = [8, 128], strides = [1, 1]} : vector<8x512xf32> to vector<8x128xf32>
    %217 = arith.negf %216 : vector<8x128xf32>
    %218 = math.exp %217 : vector<8x128xf32>
    %cst_74 = arith.constant 1.000000e+00 : f32
    %219 = vector.broadcast %cst_74 : f32 to vector<8x128xf32>
    %220 = arith.addf %219, %218 : vector<8x128xf32>
    %221 = arith.divf %219, %220 : vector<8x128xf32>
    %222 = vector.extract_strided_slice %215 {offsets = [0, 128], sizes = [8, 128], strides = [1, 1]} : vector<8x512xf32> to vector<8x128xf32>
    %223 = arith.negf %222 : vector<8x128xf32>
    %224 = math.exp %223 : vector<8x128xf32>
    %cst_75 = arith.constant 1.000000e+00 : f32
    %225 = vector.broadcast %cst_75 : f32 to vector<8x128xf32>
    %226 = arith.addf %225, %224 : vector<8x128xf32>
    %227 = arith.divf %225, %226 : vector<8x128xf32>
    %228 = vector.extract_strided_slice %215 {offsets = [0, 256], sizes = [8, 128], strides = [1, 1]} : vector<8x512xf32> to vector<8x128xf32>
    %229 = math.tanh %228 : vector<8x128xf32>
    %230 = vector.extract_strided_slice %215 {offsets = [0, 384], sizes = [8, 128], strides = [1, 1]} : vector<8x512xf32> to vector<8x128xf32>
    %231 = arith.negf %230 : vector<8x128xf32>
    %232 = math.exp %231 : vector<8x128xf32>
    %cst_76 = arith.constant 1.000000e+00 : f32
    %233 = vector.broadcast %cst_76 : f32 to vector<8x128xf32>
    %234 = arith.addf %233, %232 : vector<8x128xf32>
    %235 = arith.divf %233, %234 : vector<8x128xf32>
    %236 = arith.mulf %227, %196 : vector<8x128xf32>
    %237 = arith.mulf %221, %229 : vector<8x128xf32>
    %238 = arith.addf %236, %237 : vector<8x128xf32>
    %239 = math.tanh %238 : vector<8x128xf32>
    %240 = arith.mulf %235, %239 : vector<8x128xf32>
    %c1_i32_77 = arith.constant 1 : i32
    %241 = arith.addi %c2_i32, %c1_i32_77 : i32
    %c8_i32_78 = arith.constant 8 : i32
    %242 = arith.muli %241, %c8_i32_78 : i32
    %243 = tpu.assume_multiple %242, 8 : i32
    %244 = arith.index_cast %243 : i32 to index
    %c0_79 = arith.constant 0 : index
    %245 = vector.load %arg7[%244, %c0_79] : memref<64x512xf32, #tpu.memory_space<vmem>>, vector<8x512xf32>
    %246 = vector.extract_strided_slice %208 {offsets = [0, 0], sizes = [8, 512], strides = [1, 1]} : vector<8x1024xf32> to vector<8x512xf32>
    %247 = arith.addf %245, %246 : vector<8x512xf32>
    %248 = vector.extract_strided_slice %247 {offsets = [0, 0], sizes = [8, 128], strides = [1, 1]} : vector<8x512xf32> to vector<8x128xf32>
    %249 = arith.negf %248 : vector<8x128xf32>
    %250 = math.exp %249 : vector<8x128xf32>
    %cst_80 = arith.constant 1.000000e+00 : f32
    %251 = vector.broadcast %cst_80 : f32 to vector<8x128xf32>
    %252 = arith.addf %251, %250 : vector<8x128xf32>
    %253 = arith.divf %251, %252 : vector<8x128xf32>
    %254 = vector.extract_strided_slice %247 {offsets = [0, 128], sizes = [8, 128], strides = [1, 1]} : vector<8x512xf32> to vector<8x128xf32>
    %255 = arith.negf %254 : vector<8x128xf32>
    %256 = math.exp %255 : vector<8x128xf32>
    %cst_81 = arith.constant 1.000000e+00 : f32
    %257 = vector.broadcast %cst_81 : f32 to vector<8x128xf32>
    %258 = arith.addf %257, %256 : vector<8x128xf32>
    %259 = arith.divf %257, %258 : vector<8x128xf32>
    %260 = vector.extract_strided_slice %247 {offsets = [0, 256], sizes = [8, 128], strides = [1, 1]} : vector<8x512xf32> to vector<8x128xf32>
    %261 = math.tanh %260 : vector<8x128xf32>
    %262 = vector.extract_strided_slice %247 {offsets = [0, 384], sizes = [8, 128], strides = [1, 1]} : vector<8x512xf32> to vector<8x128xf32>
    %263 = arith.negf %262 : vector<8x128xf32>
    %264 = math.exp %263 : vector<8x128xf32>
    %cst_82 = arith.constant 1.000000e+00 : f32
    %265 = vector.broadcast %cst_82 : f32 to vector<8x128xf32>
    %266 = arith.addf %265, %264 : vector<8x128xf32>
    %267 = arith.divf %265, %266 : vector<8x128xf32>
    %268 = arith.mulf %259, %197 : vector<8x128xf32>
    %269 = arith.mulf %253, %261 : vector<8x128xf32>
    %270 = arith.addf %268, %269 : vector<8x128xf32>
    %271 = math.tanh %270 : vector<8x128xf32>
    %272 = arith.mulf %267, %271 : vector<8x128xf32>
    %273 = arith.select %210, %238, %196 : vector<8x128xf32>
    %274 = arith.select %213, %270, %197 : vector<8x128xf32>
    %275 = arith.select %210, %240, %198 : vector<8x128xf32>
    %276 = arith.truncf %272 : vector<8x128xf32> to vector<8x128xbf16>
    %277 = vector.extract_strided_slice %207 {offsets = [0, 0], sizes = [8, 128], strides = [1, 1]} : vector<8x256xbf16> to vector<8x128xbf16>
    %278 = arith.select %213, %276, %277 : vector<8x128xbf16>
    %c0_83 = arith.constant 0 : index
    %c0_84 = arith.constant 0 : index
    %279 = vector.load %arg8[%c0_83, %c0_84] : memref<8x256xbf16, #tpu.memory_space<vmem>>, vector<8x128xbf16>
    tpu.vector_store %arg8[%c0_83, %c0_84], %278 {strides = array<i32>} : memref<8x256xbf16, #tpu.memory_space<vmem>>, vector<8x128xbf16>,
    %280 = arith.truncf %240 : vector<8x128xf32> to vector<8x128xbf16>
    %281 = vector.extract_strided_slice %207 {offsets = [0, 128], sizes = [8, 128], strides = [1, 1]} : vector<8x256xbf16> to vector<8x128xbf16>
    %282 = arith.select %210, %280, %281 : vector<8x128xbf16>
    %c0_85 = arith.constant 0 : index
    %c128_86 = arith.constant 128 : index
    %283 = vector.load %arg8[%c0_85, %c128_86] : memref<8x256xbf16, #tpu.memory_space<vmem>>, vector<8x128xbf16>
    tpu.vector_store %arg8[%c0_85, %c128_86], %282 {strides = array<i32>} : memref<8x256xbf16, #tpu.memory_space<vmem>>, vector<8x128xbf16>,
    %c3_i32 = arith.constant 3 : i32
    %c0_87 = arith.constant 0 : index
    %c0_88 = arith.constant 0 : index
    %284 = vector.load %arg8[%c0_87, %c0_88] : memref<8x256xbf16, #tpu.memory_space<vmem>>, vector<8x256xbf16>
    %cst_89 = arith.constant dense<0.000000e+00> : vector<8x1024xf32>
    %285 = tpu.matmul %284, %11, %cst_89 {dimension_numbers = #tpu.dot_dimension_numbers<[1], [0], [0], [1], [0, 0, 1, 1], [], []>} : vector<8x256xbf16>, vector<256x1024xbf16>, vector<8x1024xf32> -> vector<8x1024xf32>
    %286 = arith.addi %0, %c3_i32 : i32
    %c13_i32_90 = arith.constant 13 : i32
    %287 = arith.cmpi slt, %286, %c13_i32_90 : i32
    %288 = arith.addi %0, %c3_i32 : i32
    %c1_i32_91 = arith.constant 1 : i32
    %289 = arith.addi %288, %c1_i32_91 : i32
    %c13_i32_92 = arith.constant 13 : i32
    %290 = arith.cmpi slt, %289, %c13_i32_92 : i32
    %291 = vector.extract_strided_slice %285 {offsets = [0, 512], sizes = [8, 512], strides = [1, 1]} : vector<8x1024xf32> to vector<8x512xf32>
    %292 = arith.addf %291, %14 : vector<8x512xf32>
    %293 = vector.extract_strided_slice %292 {offsets = [0, 0], sizes = [8, 128], strides = [1, 1]} : vector<8x512xf32> to vector<8x128xf32>
    %294 = arith.negf %293 : vector<8x128xf32>
    %295 = math.exp %294 : vector<8x128xf32>
    %cst_93 = arith.constant 1.000000e+00 : f32
    %296 = vector.broadcast %cst_93 : f32 to vector<8x128xf32>
    %297 = arith.addf %296, %295 : vector<8x128xf32>
    %298 = arith.divf %296, %297 : vector<8x128xf32>
    %299 = vector.extract_strided_slice %292 {offsets = [0, 128], sizes = [8, 128], strides = [1, 1]} : vector<8x512xf32> to vector<8x128xf32>
    %300 = arith.negf %299 : vector<8x128xf32>
    %301 = math.exp %300 : vector<8x128xf32>
    %cst_94 = arith.constant 1.000000e+00 : f32
    %302 = vector.broadcast %cst_94 : f32 to vector<8x128xf32>
    %303 = arith.addf %302, %301 : vector<8x128xf32>
    %304 = arith.divf %302, %303 : vector<8x128xf32>
    %305 = vector.extract_strided_slice %292 {offsets = [0, 256], sizes = [8, 128], strides = [1, 1]} : vector<8x512xf32> to vector<8x128xf32>
    %306 = math.tanh %305 : vector<8x128xf32>
    %307 = vector.extract_strided_slice %292 {offsets = [0, 384], sizes = [8, 128], strides = [1, 1]} : vector<8x512xf32> to vector<8x128xf32>
    %308 = arith.negf %307 : vector<8x128xf32>
    %309 = math.exp %308 : vector<8x128xf32>
    %cst_95 = arith.constant 1.000000e+00 : f32
    %310 = vector.broadcast %cst_95 : f32 to vector<8x128xf32>
    %311 = arith.addf %310, %309 : vector<8x128xf32>
    %312 = arith.divf %310, %311 : vector<8x128xf32>
    %313 = arith.mulf %304, %273 : vector<8x128xf32>
    %314 = arith.mulf %298, %306 : vector<8x128xf32>
    %315 = arith.addf %313, %314 : vector<8x128xf32>
    %316 = math.tanh %315 : vector<8x128xf32>
    %317 = arith.mulf %312, %316 : vector<8x128xf32>
    %c1_i32_96 = arith.constant 1 : i32
    %318 = arith.addi %c3_i32, %c1_i32_96 : i32
    %c8_i32_97 = arith.constant 8 : i32
    %319 = arith.muli %318, %c8_i32_97 : i32
    %320 = tpu.assume_multiple %319, 8 : i32
    %321 = arith.index_cast %320 : i32 to index
    %c0_98 = arith.constant 0 : index
    %322 = vector.load %arg7[%321, %c0_98] : memref<64x512xf32, #tpu.memory_space<vmem>>, vector<8x512xf32>
    %323 = vector.extract_strided_slice %285 {offsets = [0, 0], sizes = [8, 512], strides = [1, 1]} : vector<8x1024xf32> to vector<8x512xf32>
    %324 = arith.addf %322, %323 : vector<8x512xf32>
    %325 = vector.extract_strided_slice %324 {offsets = [0, 0], sizes = [8, 128], strides = [1, 1]} : vector<8x512xf32> to vector<8x128xf32>
    %326 = arith.negf %325 : vector<8x128xf32>
    %327 = math.exp %326 : vector<8x128xf32>
    %cst_99 = arith.constant 1.000000e+00 : f32
    %328 = vector.broadcast %cst_99 : f32 to vector<8x128xf32>
    %329 = arith.addf %328, %327 : vector<8x128xf32>
    %330 = arith.divf %328, %329 : vector<8x128xf32>
    %331 = vector.extract_strided_slice %324 {offsets = [0, 128], sizes = [8, 128], strides = [1, 1]} : vector<8x512xf32> to vector<8x128xf32>
    %332 = arith.negf %331 : vector<8x128xf32>
    %333 = math.exp %332 : vector<8x128xf32>
    %cst_100 = arith.constant 1.000000e+00 : f32
    %334 = vector.broadcast %cst_100 : f32 to vector<8x128xf32>
    %335 = arith.addf %334, %333 : vector<8x128xf32>
    %336 = arith.divf %334, %335 : vector<8x128xf32>
    %337 = vector.extract_strided_slice %324 {offsets = [0, 256], sizes = [8, 128], strides = [1, 1]} : vector<8x512xf32> to vector<8x128xf32>
    %338 = math.tanh %337 : vector<8x128xf32>
    %339 = vector.extract_strided_slice %324 {offsets = [0, 384], sizes = [8, 128], strides = [1, 1]} : vector<8x512xf32> to vector<8x128xf32>
    %340 = arith.negf %339 : vector<8x128xf32>
    %341 = math.exp %340 : vector<8x128xf32>
    %cst_101 = arith.constant 1.000000e+00 : f32
    %342 = vector.broadcast %cst_101 : f32 to vector<8x128xf32>
    %343 = arith.addf %342, %341 : vector<8x128xf32>
    %344 = arith.divf %342, %343 : vector<8x128xf32>
    %345 = arith.mulf %336, %274 : vector<8x128xf32>
    %346 = arith.mulf %330, %338 : vector<8x128xf32>
    %347 = arith.addf %345, %346 : vector<8x128xf32>
    %348 = math.tanh %347 : vector<8x128xf32>
    %349 = arith.mulf %344, %348 : vector<8x128xf32>
    %350 = arith.select %287, %315, %273 : vector<8x128xf32>
    %351 = arith.select %290, %347, %274 : vector<8x128xf32>
    %352 = arith.select %287, %317, %275 : vector<8x128xf32>
    %353 = arith.truncf %349 : vector<8x128xf32> to vector<8x128xbf16>
    %354 = vector.extract_strided_slice %284 {offsets = [0, 0], sizes = [8, 128], strides = [1, 1]} : vector<8x256xbf16> to vector<8x128xbf16>
    %355 = arith.select %290, %353, %354 : vector<8x128xbf16>
    %c0_102 = arith.constant 0 : index
    %c0_103 = arith.constant 0 : index
    %356 = vector.load %arg8[%c0_102, %c0_103] : memref<8x256xbf16, #tpu.memory_space<vmem>>, vector<8x128xbf16>
    tpu.vector_store %arg8[%c0_102, %c0_103], %355 {strides = array<i32>} : memref<8x256xbf16, #tpu.memory_space<vmem>>, vector<8x128xbf16>,
    %357 = arith.truncf %317 : vector<8x128xf32> to vector<8x128xbf16>
    %358 = vector.extract_strided_slice %284 {offsets = [0, 128], sizes = [8, 128], strides = [1, 1]} : vector<8x256xbf16> to vector<8x128xbf16>
    %359 = arith.select %287, %357, %358 : vector<8x128xbf16>
    %c0_104 = arith.constant 0 : index
    %c128_105 = arith.constant 128 : index
    %360 = vector.load %arg8[%c0_104, %c128_105] : memref<8x256xbf16, #tpu.memory_space<vmem>>, vector<8x128xbf16>
    tpu.vector_store %arg8[%c0_104, %c128_105], %359 {strides = array<i32>} : memref<8x256xbf16, #tpu.memory_space<vmem>>, vector<8x128xbf16>,
    %c4_i32 = arith.constant 4 : i32
    %c0_106 = arith.constant 0 : index
    %c0_107 = arith.constant 0 : index
    %361 = vector.load %arg8[%c0_106, %c0_107] : memref<8x256xbf16, #tpu.memory_space<vmem>>, vector<8x256xbf16>
    %cst_108 = arith.constant dense<0.000000e+00> : vector<8x1024xf32>
    %362 = tpu.matmul %361, %11, %cst_108 {dimension_numbers = #tpu.dot_dimension_numbers<[1], [0], [0], [1], [0, 0, 1, 1], [], []>} : vector<8x256xbf16>, vector<256x1024xbf16>, vector<8x1024xf32> -> vector<8x1024xf32>
    %363 = arith.addi %0, %c4_i32 : i32
    %c13_i32_109 = arith.constant 13 : i32
    %364 = arith.cmpi slt, %363, %c13_i32_109 : i32
    %365 = arith.addi %0, %c4_i32 : i32
    %c1_i32_110 = arith.constant 1 : i32
    %366 = arith.addi %365, %c1_i32_110 : i32
    %c13_i32_111 = arith.constant 13 : i32
    %367 = arith.cmpi slt, %366, %c13_i32_111 : i32
    %368 = vector.extract_strided_slice %362 {offsets = [0, 512], sizes = [8, 512], strides = [1, 1]} : vector<8x1024xf32> to vector<8x512xf32>
    %369 = arith.addf %368, %14 : vector<8x512xf32>
    %370 = vector.extract_strided_slice %369 {offsets = [0, 0], sizes = [8, 128], strides = [1, 1]} : vector<8x512xf32> to vector<8x128xf32>
    %371 = arith.negf %370 : vector<8x128xf32>
    %372 = math.exp %371 : vector<8x128xf32>
    %cst_112 = arith.constant 1.000000e+00 : f32
    %373 = vector.broadcast %cst_112 : f32 to vector<8x128xf32>
    %374 = arith.addf %373, %372 : vector<8x128xf32>
    %375 = arith.divf %373, %374 : vector<8x128xf32>
    %376 = vector.extract_strided_slice %369 {offsets = [0, 128], sizes = [8, 128], strides = [1, 1]} : vector<8x512xf32> to vector<8x128xf32>
    %377 = arith.negf %376 : vector<8x128xf32>
    %378 = math.exp %377 : vector<8x128xf32>
    %cst_113 = arith.constant 1.000000e+00 : f32
    %379 = vector.broadcast %cst_113 : f32 to vector<8x128xf32>
    %380 = arith.addf %379, %378 : vector<8x128xf32>
    %381 = arith.divf %379, %380 : vector<8x128xf32>
    %382 = vector.extract_strided_slice %369 {offsets = [0, 256], sizes = [8, 128], strides = [1, 1]} : vector<8x512xf32> to vector<8x128xf32>
    %383 = math.tanh %382 : vector<8x128xf32>
    %384 = vector.extract_strided_slice %369 {offsets = [0, 384], sizes = [8, 128], strides = [1, 1]} : vector<8x512xf32> to vector<8x128xf32>
    %385 = arith.negf %384 : vector<8x128xf32>
    %386 = math.exp %385 : vector<8x128xf32>
    %cst_114 = arith.constant 1.000000e+00 : f32
    %387 = vector.broadcast %cst_114 : f32 to vector<8x128xf32>
    %388 = arith.addf %387, %386 : vector<8x128xf32>
    %389 = arith.divf %387, %388 : vector<8x128xf32>
    %390 = arith.mulf %381, %350 : vector<8x128xf32>
    %391 = arith.mulf %375, %383 : vector<8x128xf32>
    %392 = arith.addf %390, %391 : vector<8x128xf32>
    %393 = math.tanh %392 : vector<8x128xf32>
    %394 = arith.mulf %389, %393 : vector<8x128xf32>
    %c1_i32_115 = arith.constant 1 : i32
    %395 = arith.addi %c4_i32, %c1_i32_115 : i32
    %c8_i32_116 = arith.constant 8 : i32
    %396 = arith.muli %395, %c8_i32_116 : i32
    %397 = tpu.assume_multiple %396, 8 : i32
    %398 = arith.index_cast %397 : i32 to index
    %c0_117 = arith.constant 0 : index
    %399 = vector.load %arg7[%398, %c0_117] : memref<64x512xf32, #tpu.memory_space<vmem>>, vector<8x512xf32>
    %400 = vector.extract_strided_slice %362 {offsets = [0, 0], sizes = [8, 512], strides = [1, 1]} : vector<8x1024xf32> to vector<8x512xf32>
    %401 = arith.addf %399, %400 : vector<8x512xf32>
    %402 = vector.extract_strided_slice %401 {offsets = [0, 0], sizes = [8, 128], strides = [1, 1]} : vector<8x512xf32> to vector<8x128xf32>
    %403 = arith.negf %402 : vector<8x128xf32>
    %404 = math.exp %403 : vector<8x128xf32>
    %cst_118 = arith.constant 1.000000e+00 : f32
    %405 = vector.broadcast %cst_118 : f32 to vector<8x128xf32>
    %406 = arith.addf %405, %404 : vector<8x128xf32>
    %407 = arith.divf %405, %406 : vector<8x128xf32>
    %408 = vector.extract_strided_slice %401 {offsets = [0, 128], sizes = [8, 128], strides = [1, 1]} : vector<8x512xf32> to vector<8x128xf32>
    %409 = arith.negf %408 : vector<8x128xf32>
    %410 = math.exp %409 : vector<8x128xf32>
    %cst_119 = arith.constant 1.000000e+00 : f32
    %411 = vector.broadcast %cst_119 : f32 to vector<8x128xf32>
    %412 = arith.addf %411, %410 : vector<8x128xf32>
    %413 = arith.divf %411, %412 : vector<8x128xf32>
    %414 = vector.extract_strided_slice %401 {offsets = [0, 256], sizes = [8, 128], strides = [1, 1]} : vector<8x512xf32> to vector<8x128xf32>
    %415 = math.tanh %414 : vector<8x128xf32>
    %416 = vector.extract_strided_slice %401 {offsets = [0, 384], sizes = [8, 128], strides = [1, 1]} : vector<8x512xf32> to vector<8x128xf32>
    %417 = arith.negf %416 : vector<8x128xf32>
    %418 = math.exp %417 : vector<8x128xf32>
    %cst_120 = arith.constant 1.000000e+00 : f32
    %419 = vector.broadcast %cst_120 : f32 to vector<8x128xf32>
    %420 = arith.addf %419, %418 : vector<8x128xf32>
    %421 = arith.divf %419, %420 : vector<8x128xf32>
    %422 = arith.mulf %413, %351 : vector<8x128xf32>
    %423 = arith.mulf %407, %415 : vector<8x128xf32>
    %424 = arith.addf %422, %423 : vector<8x128xf32>
    %425 = math.tanh %424 : vector<8x128xf32>
    %426 = arith.mulf %421, %425 : vector<8x128xf32>
    %427 = arith.select %364, %392, %350 : vector<8x128xf32>
    %428 = arith.select %367, %424, %351 : vector<8x128xf32>
    %429 = arith.select %364, %394, %352 : vector<8x128xf32>
    %430 = arith.truncf %426 : vector<8x128xf32> to vector<8x128xbf16>
    %431 = vector.extract_strided_slice %361 {offsets = [0, 0], sizes = [8, 128], strides = [1, 1]} : vector<8x256xbf16> to vector<8x128xbf16>
    %432 = arith.select %367, %430, %431 : vector<8x128xbf16>
    %c0_121 = arith.constant 0 : index
    %c0_122 = arith.constant 0 : index
    %433 = vector.load %arg8[%c0_121, %c0_122] : memref<8x256xbf16, #tpu.memory_space<vmem>>, vector<8x128xbf16>
    tpu.vector_store %arg8[%c0_121, %c0_122], %432 {strides = array<i32>} : memref<8x256xbf16, #tpu.memory_space<vmem>>, vector<8x128xbf16>,
    %434 = arith.truncf %394 : vector<8x128xf32> to vector<8x128xbf16>
    %435 = vector.extract_strided_slice %361 {offsets = [0, 128], sizes = [8, 128], strides = [1, 1]} : vector<8x256xbf16> to vector<8x128xbf16>
    %436 = arith.select %364, %434, %435 : vector<8x128xbf16>
    %c0_123 = arith.constant 0 : index
    %c128_124 = arith.constant 128 : index
    %437 = vector.load %arg8[%c0_123, %c128_124] : memref<8x256xbf16, #tpu.memory_space<vmem>>, vector<8x128xbf16>
    tpu.vector_store %arg8[%c0_123, %c128_124], %436 {strides = array<i32>} : memref<8x256xbf16, #tpu.memory_space<vmem>>, vector<8x128xbf16>,
    %c5_i32 = arith.constant 5 : i32
    %c0_125 = arith.constant 0 : index
    %c0_126 = arith.constant 0 : index
    %438 = vector.load %arg8[%c0_125, %c0_126] : memref<8x256xbf16, #tpu.memory_space<vmem>>, vector<8x256xbf16>
    %cst_127 = arith.constant dense<0.000000e+00> : vector<8x1024xf32>
    %439 = tpu.matmul %438, %11, %cst_127 {dimension_numbers = #tpu.dot_dimension_numbers<[1], [0], [0], [1], [0, 0, 1, 1], [], []>} : vector<8x256xbf16>, vector<256x1024xbf16>, vector<8x1024xf32> -> vector<8x1024xf32>
    %440 = arith.addi %0, %c5_i32 : i32
    %c13_i32_128 = arith.constant 13 : i32
    %441 = arith.cmpi slt, %440, %c13_i32_128 : i32
    %442 = arith.addi %0, %c5_i32 : i32
    %c1_i32_129 = arith.constant 1 : i32
    %443 = arith.addi %442, %c1_i32_129 : i32
    %c13_i32_130 = arith.constant 13 : i32
    %444 = arith.cmpi slt, %443, %c13_i32_130 : i32
    %445 = vector.extract_strided_slice %439 {offsets = [0, 512], sizes = [8, 512], strides = [1, 1]} : vector<8x1024xf32> to vector<8x512xf32>
    %446 = arith.addf %445, %14 : vector<8x512xf32>
    %447 = vector.extract_strided_slice %446 {offsets = [0, 0], sizes = [8, 128], strides = [1, 1]} : vector<8x512xf32> to vector<8x128xf32>
    %448 = arith.negf %447 : vector<8x128xf32>
    %449 = math.exp %448 : vector<8x128xf32>
    %cst_131 = arith.constant 1.000000e+00 : f32
    %450 = vector.broadcast %cst_131 : f32 to vector<8x128xf32>
    %451 = arith.addf %450, %449 : vector<8x128xf32>
    %452 = arith.divf %450, %451 : vector<8x128xf32>
    %453 = vector.extract_strided_slice %446 {offsets = [0, 128], sizes = [8, 128], strides = [1, 1]} : vector<8x512xf32> to vector<8x128xf32>
    %454 = arith.negf %453 : vector<8x128xf32>
    %455 = math.exp %454 : vector<8x128xf32>
    %cst_132 = arith.constant 1.000000e+00 : f32
    %456 = vector.broadcast %cst_132 : f32 to vector<8x128xf32>
    %457 = arith.addf %456, %455 : vector<8x128xf32>
    %458 = arith.divf %456, %457 : vector<8x128xf32>
    %459 = vector.extract_strided_slice %446 {offsets = [0, 256], sizes = [8, 128], strides = [1, 1]} : vector<8x512xf32> to vector<8x128xf32>
    %460 = math.tanh %459 : vector<8x128xf32>
    %461 = vector.extract_strided_slice %446 {offsets = [0, 384], sizes = [8, 128], strides = [1, 1]} : vector<8x512xf32> to vector<8x128xf32>
    %462 = arith.negf %461 : vector<8x128xf32>
    %463 = math.exp %462 : vector<8x128xf32>
    %cst_133 = arith.constant 1.000000e+00 : f32
    %464 = vector.broadcast %cst_133 : f32 to vector<8x128xf32>
    %465 = arith.addf %464, %463 : vector<8x128xf32>
    %466 = arith.divf %464, %465 : vector<8x128xf32>
    %467 = arith.mulf %458, %427 : vector<8x128xf32>
    %468 = arith.mulf %452, %460 : vector<8x128xf32>
    %469 = arith.addf %467, %468 : vector<8x128xf32>
    %470 = math.tanh %469 : vector<8x128xf32>
    %471 = arith.mulf %466, %470 : vector<8x128xf32>
    %c1_i32_134 = arith.constant 1 : i32
    %472 = arith.addi %c5_i32, %c1_i32_134 : i32
    %c8_i32_135 = arith.constant 8 : i32
    %473 = arith.muli %472, %c8_i32_135 : i32
    %474 = tpu.assume_multiple %473, 8 : i32
    %475 = arith.index_cast %474 : i32 to index
    %c0_136 = arith.constant 0 : index
    %476 = vector.load %arg7[%475, %c0_136] : memref<64x512xf32, #tpu.memory_space<vmem>>, vector<8x512xf32>
    %477 = vector.extract_strided_slice %439 {offsets = [0, 0], sizes = [8, 512], strides = [1, 1]} : vector<8x1024xf32> to vector<8x512xf32>
    %478 = arith.addf %476, %477 : vector<8x512xf32>
    %479 = vector.extract_strided_slice %478 {offsets = [0, 0], sizes = [8, 128], strides = [1, 1]} : vector<8x512xf32> to vector<8x128xf32>
    %480 = arith.negf %479 : vector<8x128xf32>
    %481 = math.exp %480 : vector<8x128xf32>
    %cst_137 = arith.constant 1.000000e+00 : f32
    %482 = vector.broadcast %cst_137 : f32 to vector<8x128xf32>
    %483 = arith.addf %482, %481 : vector<8x128xf32>
    %484 = arith.divf %482, %483 : vector<8x128xf32>
    %485 = vector.extract_strided_slice %478 {offsets = [0, 128], sizes = [8, 128], strides = [1, 1]} : vector<8x512xf32> to vector<8x128xf32>
    %486 = arith.negf %485 : vector<8x128xf32>
    %487 = math.exp %486 : vector<8x128xf32>
    %cst_138 = arith.constant 1.000000e+00 : f32
    %488 = vector.broadcast %cst_138 : f32 to vector<8x128xf32>
    %489 = arith.addf %488, %487 : vector<8x128xf32>
    %490 = arith.divf %488, %489 : vector<8x128xf32>
    %491 = vector.extract_strided_slice %478 {offsets = [0, 256], sizes = [8, 128], strides = [1, 1]} : vector<8x512xf32> to vector<8x128xf32>
    %492 = math.tanh %491 : vector<8x128xf32>
    %493 = vector.extract_strided_slice %478 {offsets = [0, 384], sizes = [8, 128], strides = [1, 1]} : vector<8x512xf32> to vector<8x128xf32>
    %494 = arith.negf %493 : vector<8x128xf32>
    %495 = math.exp %494 : vector<8x128xf32>
    %cst_139 = arith.constant 1.000000e+00 : f32
    %496 = vector.broadcast %cst_139 : f32 to vector<8x128xf32>
    %497 = arith.addf %496, %495 : vector<8x128xf32>
    %498 = arith.divf %496, %497 : vector<8x128xf32>
    %499 = arith.mulf %490, %428 : vector<8x128xf32>
    %500 = arith.mulf %484, %492 : vector<8x128xf32>
    %501 = arith.addf %499, %500 : vector<8x128xf32>
    %502 = math.tanh %501 : vector<8x128xf32>
    %503 = arith.mulf %498, %502 : vector<8x128xf32>
    %504 = arith.select %441, %469, %427 : vector<8x128xf32>
    %505 = arith.select %444, %501, %428 : vector<8x128xf32>
    %506 = arith.select %441, %471, %429 : vector<8x128xf32>
    %507 = arith.truncf %503 : vector<8x128xf32> to vector<8x128xbf16>
    %508 = vector.extract_strided_slice %438 {offsets = [0, 0], sizes = [8, 128], strides = [1, 1]} : vector<8x256xbf16> to vector<8x128xbf16>
    %509 = arith.select %444, %507, %508 : vector<8x128xbf16>
    %c0_140 = arith.constant 0 : index
    %c0_141 = arith.constant 0 : index
    %510 = vector.load %arg8[%c0_140, %c0_141] : memref<8x256xbf16, #tpu.memory_space<vmem>>, vector<8x128xbf16>
    tpu.vector_store %arg8[%c0_140, %c0_141], %509 {strides = array<i32>} : memref<8x256xbf16, #tpu.memory_space<vmem>>, vector<8x128xbf16>,
    %511 = arith.truncf %471 : vector<8x128xf32> to vector<8x128xbf16>
    %512 = vector.extract_strided_slice %438 {offsets = [0, 128], sizes = [8, 128], strides = [1, 1]} : vector<8x256xbf16> to vector<8x128xbf16>
    %513 = arith.select %441, %511, %512 : vector<8x128xbf16>
    %c0_142 = arith.constant 0 : index
    %c128_143 = arith.constant 128 : index
    %514 = vector.load %arg8[%c0_142, %c128_143] : memref<8x256xbf16, #tpu.memory_space<vmem>>, vector<8x128xbf16>
    tpu.vector_store %arg8[%c0_142, %c128_143], %513 {strides = array<i32>} : memref<8x256xbf16, #tpu.memory_space<vmem>>, vector<8x128xbf16>,
    %c6_i32 = arith.constant 6 : i32
    %c0_144 = arith.constant 0 : index
    %c0_145 = arith.constant 0 : index
    %515 = vector.load %arg8[%c0_144, %c0_145] : memref<8x256xbf16, #tpu.memory_space<vmem>>, vector<8x256xbf16>
    %cst_146 = arith.constant dense<0.000000e+00> : vector<8x1024xf32>
    %516 = tpu.matmul %515, %11, %cst_146 {dimension_numbers = #tpu.dot_dimension_numbers<[1], [0], [0], [1], [0, 0, 1, 1], [], []>} : vector<8x256xbf16>, vector<256x1024xbf16>, vector<8x1024xf32> -> vector<8x1024xf32>
    %517 = arith.addi %0, %c6_i32 : i32
    %c13_i32_147 = arith.constant 13 : i32
    %518 = arith.cmpi slt, %517, %c13_i32_147 : i32
    %519 = arith.addi %0, %c6_i32 : i32
    %c1_i32_148 = arith.constant 1 : i32
    %520 = arith.addi %519, %c1_i32_148 : i32
    %c13_i32_149 = arith.constant 13 : i32
    %521 = arith.cmpi slt, %520, %c13_i32_149 : i32
    %522 = vector.extract_strided_slice %516 {offsets = [0, 512], sizes = [8, 512], strides = [1, 1]} : vector<8x1024xf32> to vector<8x512xf32>
    %523 = arith.addf %522, %14 : vector<8x512xf32>
    %524 = vector.extract_strided_slice %523 {offsets = [0, 0], sizes = [8, 128], strides = [1, 1]} : vector<8x512xf32> to vector<8x128xf32>
    %525 = arith.negf %524 : vector<8x128xf32>
    %526 = math.exp %525 : vector<8x128xf32>
    %cst_150 = arith.constant 1.000000e+00 : f32
    %527 = vector.broadcast %cst_150 : f32 to vector<8x128xf32>
    %528 = arith.addf %527, %526 : vector<8x128xf32>
    %529 = arith.divf %527, %528 : vector<8x128xf32>
    %530 = vector.extract_strided_slice %523 {offsets = [0, 128], sizes = [8, 128], strides = [1, 1]} : vector<8x512xf32> to vector<8x128xf32>
    %531 = arith.negf %530 : vector<8x128xf32>
    %532 = math.exp %531 : vector<8x128xf32>
    %cst_151 = arith.constant 1.000000e+00 : f32
    %533 = vector.broadcast %cst_151 : f32 to vector<8x128xf32>
    %534 = arith.addf %533, %532 : vector<8x128xf32>
    %535 = arith.divf %533, %534 : vector<8x128xf32>
    %536 = vector.extract_strided_slice %523 {offsets = [0, 256], sizes = [8, 128], strides = [1, 1]} : vector<8x512xf32> to vector<8x128xf32>
    %537 = math.tanh %536 : vector<8x128xf32>
    %538 = vector.extract_strided_slice %523 {offsets = [0, 384], sizes = [8, 128], strides = [1, 1]} : vector<8x512xf32> to vector<8x128xf32>
    %539 = arith.negf %538 : vector<8x128xf32>
    %540 = math.exp %539 : vector<8x128xf32>
    %cst_152 = arith.constant 1.000000e+00 : f32
    %541 = vector.broadcast %cst_152 : f32 to vector<8x128xf32>
    %542 = arith.addf %541, %540 : vector<8x128xf32>
    %543 = arith.divf %541, %542 : vector<8x128xf32>
    %544 = arith.mulf %535, %504 : vector<8x128xf32>
    %545 = arith.mulf %529, %537 : vector<8x128xf32>
    %546 = arith.addf %544, %545 : vector<8x128xf32>
    %547 = math.tanh %546 : vector<8x128xf32>
    %548 = arith.mulf %543, %547 : vector<8x128xf32>
    %c1_i32_153 = arith.constant 1 : i32
    %549 = arith.addi %c6_i32, %c1_i32_153 : i32
    %c8_i32_154 = arith.constant 8 : i32
    %550 = arith.muli %549, %c8_i32_154 : i32
    %551 = tpu.assume_multiple %550, 8 : i32
    %552 = arith.index_cast %551 : i32 to index
    %c0_155 = arith.constant 0 : index
    %553 = vector.load %arg7[%552, %c0_155] : memref<64x512xf32, #tpu.memory_space<vmem>>, vector<8x512xf32>
    %554 = vector.extract_strided_slice %516 {offsets = [0, 0], sizes = [8, 512], strides = [1, 1]} : vector<8x1024xf32> to vector<8x512xf32>
    %555 = arith.addf %553, %554 : vector<8x512xf32>
    %556 = vector.extract_strided_slice %555 {offsets = [0, 0], sizes = [8, 128], strides = [1, 1]} : vector<8x512xf32> to vector<8x128xf32>
    %557 = arith.negf %556 : vector<8x128xf32>
    %558 = math.exp %557 : vector<8x128xf32>
    %cst_156 = arith.constant 1.000000e+00 : f32
    %559 = vector.broadcast %cst_156 : f32 to vector<8x128xf32>
    %560 = arith.addf %559, %558 : vector<8x128xf32>
    %561 = arith.divf %559, %560 : vector<8x128xf32>
    %562 = vector.extract_strided_slice %555 {offsets = [0, 128], sizes = [8, 128], strides = [1, 1]} : vector<8x512xf32> to vector<8x128xf32>
    %563 = arith.negf %562 : vector<8x128xf32>
    %564 = math.exp %563 : vector<8x128xf32>
    %cst_157 = arith.constant 1.000000e+00 : f32
    %565 = vector.broadcast %cst_157 : f32 to vector<8x128xf32>
    %566 = arith.addf %565, %564 : vector<8x128xf32>
    %567 = arith.divf %565, %566 : vector<8x128xf32>
    %568 = vector.extract_strided_slice %555 {offsets = [0, 256], sizes = [8, 128], strides = [1, 1]} : vector<8x512xf32> to vector<8x128xf32>
    %569 = math.tanh %568 : vector<8x128xf32>
    %570 = vector.extract_strided_slice %555 {offsets = [0, 384], sizes = [8, 128], strides = [1, 1]} : vector<8x512xf32> to vector<8x128xf32>
    %571 = arith.negf %570 : vector<8x128xf32>
    %572 = math.exp %571 : vector<8x128xf32>
    %cst_158 = arith.constant 1.000000e+00 : f32
    %573 = vector.broadcast %cst_158 : f32 to vector<8x128xf32>
    %574 = arith.addf %573, %572 : vector<8x128xf32>
    %575 = arith.divf %573, %574 : vector<8x128xf32>
    %576 = arith.mulf %567, %505 : vector<8x128xf32>
    %577 = arith.mulf %561, %569 : vector<8x128xf32>
    %578 = arith.addf %576, %577 : vector<8x128xf32>
    %579 = math.tanh %578 : vector<8x128xf32>
    %580 = arith.mulf %575, %579 : vector<8x128xf32>
    %581 = arith.select %518, %546, %504 : vector<8x128xf32>
    %582 = arith.select %521, %578, %505 : vector<8x128xf32>
    %583 = arith.select %518, %548, %506 : vector<8x128xf32>
    %584 = arith.truncf %580 : vector<8x128xf32> to vector<8x128xbf16>
    %585 = vector.extract_strided_slice %515 {offsets = [0, 0], sizes = [8, 128], strides = [1, 1]} : vector<8x256xbf16> to vector<8x128xbf16>
    %586 = arith.select %521, %584, %585 : vector<8x128xbf16>
    %c0_159 = arith.constant 0 : index
    %c0_160 = arith.constant 0 : index
    %587 = vector.load %arg8[%c0_159, %c0_160] : memref<8x256xbf16, #tpu.memory_space<vmem>>, vector<8x128xbf16>
    tpu.vector_store %arg8[%c0_159, %c0_160], %586 {strides = array<i32>} : memref<8x256xbf16, #tpu.memory_space<vmem>>, vector<8x128xbf16>,
    %588 = arith.truncf %548 : vector<8x128xf32> to vector<8x128xbf16>
    %589 = vector.extract_strided_slice %515 {offsets = [0, 128], sizes = [8, 128], strides = [1, 1]} : vector<8x256xbf16> to vector<8x128xbf16>
    %590 = arith.select %518, %588, %589 : vector<8x128xbf16>
    %c0_161 = arith.constant 0 : index
    %c128_162 = arith.constant 128 : index
    %591 = vector.load %arg8[%c0_161, %c128_162] : memref<8x256xbf16, #tpu.memory_space<vmem>>, vector<8x128xbf16>
    tpu.vector_store %arg8[%c0_161, %c128_162], %590 {strides = array<i32>} : memref<8x256xbf16, #tpu.memory_space<vmem>>, vector<8x128xbf16>,
    %c7_i32 = arith.constant 7 : i32
    %c0_163 = arith.constant 0 : index
    %c0_164 = arith.constant 0 : index
    %592 = vector.load %arg8[%c0_163, %c0_164] : memref<8x256xbf16, #tpu.memory_space<vmem>>, vector<8x256xbf16>
    %cst_165 = arith.constant dense<0.000000e+00> : vector<8x1024xf32>
    %593 = tpu.matmul %592, %11, %cst_165 {dimension_numbers = #tpu.dot_dimension_numbers<[1], [0], [0], [1], [0, 0, 1, 1], [], []>} : vector<8x256xbf16>, vector<256x1024xbf16>, vector<8x1024xf32> -> vector<8x1024xf32>
    %594 = vector.extract_strided_slice %593 {offsets = [0, 512], sizes = [8, 512], strides = [1, 1]} : vector<8x1024xf32> to vector<8x512xf32>
    %595 = arith.addf %594, %14 : vector<8x512xf32>
    %596 = vector.extract_strided_slice %595 {offsets = [0, 0], sizes = [8, 128], strides = [1, 1]} : vector<8x512xf32> to vector<8x128xf32>
    %597 = arith.negf %596 : vector<8x128xf32>
    %598 = math.exp %597 : vector<8x128xf32>
    %cst_166 = arith.constant 1.000000e+00 : f32
    %599 = vector.broadcast %cst_166 : f32 to vector<8x128xf32>
    %600 = arith.addf %599, %598 : vector<8x128xf32>
    %601 = arith.divf %599, %600 : vector<8x128xf32>
    %602 = vector.extract_strided_slice %595 {offsets = [0, 128], sizes = [8, 128], strides = [1, 1]} : vector<8x512xf32> to vector<8x128xf32>
    %603 = arith.negf %602 : vector<8x128xf32>
    %604 = math.exp %603 : vector<8x128xf32>
    %cst_167 = arith.constant 1.000000e+00 : f32
    %605 = vector.broadcast %cst_167 : f32 to vector<8x128xf32>
    %606 = arith.addf %605, %604 : vector<8x128xf32>
    %607 = arith.divf %605, %606 : vector<8x128xf32>
    %608 = vector.extract_strided_slice %595 {offsets = [0, 256], sizes = [8, 128], strides = [1, 1]} : vector<8x512xf32> to vector<8x128xf32>
    %609 = math.tanh %608 : vector<8x128xf32>
    %610 = vector.extract_strided_slice %595 {offsets = [0, 384], sizes = [8, 128], strides = [1, 1]} : vector<8x512xf32> to vector<8x128xf32>
    %611 = arith.negf %610 : vector<8x128xf32>
    %612 = math.exp %611 : vector<8x128xf32>
    %cst_168 = arith.constant 1.000000e+00 : f32
    %613 = vector.broadcast %cst_168 : f32 to vector<8x128xf32>
    %614 = arith.addf %613, %612 : vector<8x128xf32>
    %615 = arith.divf %613, %614 : vector<8x128xf32>
    %616 = arith.mulf %607, %581 : vector<8x128xf32>
    %617 = arith.mulf %601, %609 : vector<8x128xf32>
    %618 = arith.addf %616, %617 : vector<8x128xf32>
    %619 = math.tanh %618 : vector<8x128xf32>
    %620 = arith.mulf %615, %619 : vector<8x128xf32>
    %c7_i32_169 = arith.constant 7 : i32
    %621 = arith.addi %0, %c7_i32_169 : i32
    %c13_i32_170 = arith.constant 13 : i32
    %622 = arith.cmpi slt, %621, %c13_i32_170 : i32
    %623 = arith.select %622, %618, %581 : vector<8x128xf32>
    %624 = arith.select %622, %620, %583 : vector<8x128xf32>
    %625 = arith.truncf %620 : vector<8x128xf32> to vector<8x128xbf16>
    %626 = vector.extract_strided_slice %592 {offsets = [0, 128], sizes = [8, 128], strides = [1, 1]} : vector<8x256xbf16> to vector<8x128xbf16>
    %627 = arith.select %622, %625, %626 : vector<8x128xbf16>
    %c0_171 = arith.constant 0 : index
    %c128_172 = arith.constant 128 : index
    %628 = vector.load %arg8[%c0_171, %c128_172] : memref<8x256xbf16, #tpu.memory_space<vmem>>, vector<8x128xbf16>
    tpu.vector_store %arg8[%c0_171, %c128_172], %627 {strides = array<i32>} : memref<8x256xbf16, #tpu.memory_space<vmem>>, vector<8x128xbf16>,
    %c0_173 = arith.constant 0 : index
    %c0_174 = arith.constant 0 : index
    %c0_175 = arith.constant 0 : index
    %629 = vector.load %arg9[%c0_173, %c0_174, %c0_175] : memref<2x8x128xf32, #tpu.memory_space<vmem>>, vector<1x8x128xf32>
    %630 = vector.shape_cast %629 : vector<1x8x128xf32> to vector<8x128xf32>
    %631 = vector.shape_cast %582 : vector<8x128xf32> to vector<1x8x128xf32>
    tpu.vector_store %arg9[%c0_173, %c0_174, %c0_175], %631 {strides = array<i32>} : memref<2x8x128xf32, #tpu.memory_space<vmem>>, vector<1x8x128xf32>,
    %c1_176 = arith.constant 1 : index
    %c0_177 = arith.constant 0 : index
    %c0_178 = arith.constant 0 : index
    %632 = vector.load %arg9[%c1_176, %c0_177, %c0_178] : memref<2x8x128xf32, #tpu.memory_space<vmem>>, vector<1x8x128xf32>
    %633 = vector.shape_cast %632 : vector<1x8x128xf32> to vector<8x128xf32>
    %634 = vector.shape_cast %623 : vector<8x128xf32> to vector<1x8x128xf32>
    tpu.vector_store %arg9[%c1_176, %c0_177, %c0_178], %634 {strides = array<i32>} : memref<2x8x128xf32, #tpu.memory_space<vmem>>, vector<1x8x128xf32>,
    %c1_i32_179 = arith.constant 1 : i32
    %635 = arith.cmpi eq, %arg0, %c1_i32_179 : i32
    %636 = arith.extui %635 : i1 to i32
    %c0_i32_180 = arith.constant 0 : i32
    %637 = arith.cmpi ne, %636, %c0_i32_180 : i32
    scf.if %637 {
      %c0_181 = arith.constant 0 : index
      %c0_182 = arith.constant 0 : index
      %638 = vector.load %arg6[%c0_181, %c0_182] : memref<8x128xf32, #tpu.memory_space<vmem>>, vector<8x128xf32>
      tpu.vector_store %arg6[%c0_181, %c0_182], %624 {strides = array<i32>} : memref<8x128xf32, #tpu.memory_space<vmem>>, vector<8x128xf32>,
    } else {
    }
    return
  }
  func.func @transform_0(%arg0: i32) -> (i32, i32) {
    %c0_i32 = arith.constant 0 : i32
    %c0_i32_0 = arith.constant 0 : i32
    return %arg0, %c0_i32 : i32, i32
  }
  func.func @transform_1(%arg0: i32) -> (i32, i32) {
    %c0_i32 = arith.constant 0 : i32
    %c0_i32_0 = arith.constant 0 : i32
    %c0_i32_1 = arith.constant 0 : i32
    return %c0_i32, %c0_i32_0 : i32, i32
  }
  func.func @transform_2(%arg0: i32) -> (i32, i32) {
    %c0_i32 = arith.constant 0 : i32
    %c0_i32_0 = arith.constant 0 : i32
    %c0_i32_1 = arith.constant 0 : i32
    return %c0_i32, %c0_i32_0 : i32, i32
  }
  func.func @transform_3(%arg0: i32) -> (i32, i32) {
    %c0_i32 = arith.constant 0 : i32
    %c0_i32_0 = arith.constant 0 : i32
    %c0_i32_1 = arith.constant 0 : i32
    return %c0_i32, %c0_i32_0 : i32, i32
  }
  func.func @transform_4(%arg0: i32) -> (i32, i32) {
    %c0_i32 = arith.constant 0 : i32
    %c0_i32_0 = arith.constant 0 : i32
    %c0_i32_1 = arith.constant 0 : i32
    return %c0_i32, %c0_i32_0 : i32, i32
  }
  func.func @transform_5(%arg0: i32) -> (i32, i32) {
    %c0_i32 = arith.constant 0 : i32
    %c0_i32_0 = arith.constant 0 : i32
    %c0_i32_1 = arith.constant 0 : i32
    return %c0_i32, %c0_i32_0 : i32, i32
  }
}

</mosaic_0001>

<llo_original>
// kernel: tpu_custom_call.1
$region0: #{tpu_custom_call.1}
  #allocation0 [shape = 'u32[]', space=smem, size = 0x4, offset = 0x4, fixed_abs, tag = 'smem constant byte address 0x4 - core index']
  #allocation1 [shape = 'u32[72,128]{1,0:T(1,128)}', space=vmem, size = 0x9000, scoped, tag = 'internal scratch']
  #allocation2 [shape = 'f32[64,512]{1,0:T(8,128)}', space=vmem, size = 0x20000, scoped, tag = 'scratch operand']
  #allocation3 [shape = 'bf16[8,256]{1,0:T(8,128)(2,1)}', space=vmem, size = 0x1000, scoped, tag = 'scratch operand']
  #allocation4 [shape = 'f32[2,8,128]{2,1,0:T(8,128)}', space=vmem, size = 0x2000, scoped, tag = 'scratch operand']
  %s0 = inlined_call_operand.hbm [shape: bf16[128,128], index: 0, kind: input, shape index: {}]
  %s1 = inlined_call_operand.hbm [shape: bf16[128,512], index: 1, kind: input, shape index: {}]
  %s2 = inlined_call_operand.hbm [shape: bf16[256,1024], index: 2, kind: input, shape index: {}]
  %s3 = inlined_call_operand.hbm [shape: f32[1,512], index: 3, kind: input, shape index: {}]
  %s4 = inlined_call_operand.hbm [shape: f32[1,512], index: 4, kind: input, shape index: {}]
  %s5 = inlined_call_operand.hbm [shape: f32[8,128], index: 5, kind: output, shape index: {}]
  %s6 = sld [smem:[#allocation0]]
  $region81: #{tpu_custom_call.1} parent=0
    _
  %s8 = ssub.s32 1, %s6
  %s9 = scalar_select 0, %s8, %s6
  $region1: #{tpu_custom_call.1} parent=0
    #allocation5 [shape = 'u8[32768]{0}', space=vmem, size = 0x8000, scoped, tag = 'input window, operand 0']
    #allocation6 [shape = 's32[2]{0}', space=sflag, size = 0x8, scoped, tag = 'scoped memory for tpu_custom_call.1']
    #allocation7 [shape = 's32[2]{0}', space=sflag, size = 0x8, scoped, tag = 'scoped memory for tpu_custom_call.1']
    #allocation8 [shape = 'u8[131072]{0}', space=vmem, size = 0x20000, scoped, tag = 'input window, operand 1, single buffered']
    #allocation9 [shape = 's32[1]{0}', space=sflag, size = 0x4, scoped, tag = 'scoped memory for tpu_custom_call.1']
    #allocation10 [shape = 'u8[524288]{0}', space=vmem, size = 0x80000, scoped, tag = 'input window, operand 2, single buffered']
    #allocation11 [shape = 'u8[2048]{0}', space=vmem, size = 0x800, scoped, tag = 'input window, operand 3, single buffered']
    #allocation12 [shape = 's32[1]{0}', space=sflag, size = 0x4, scoped, tag = 'scoped memory for tpu_custom_call.1']
    #allocation13 [shape = 'u8[2048]{0}', space=vmem, size = 0x800, scoped, tag = 'input window, operand 4, single buffered']
    #allocation14 [shape = 'u8[4096]{0}', space=vmem, size = 0x1000, scoped, tag = 'output window, operand 0, single buffered']
    %10 = vsyncpa [#allocation6], 0
    %s11 = scalar_lea.sflag [#allocation6], 1
    %12 = vsyncpa %s11, 0
    %13 = vsyncpa [#allocation9], 0
    %14 = vsyncpa [#allocation12], 0
    %15 = vsyncpa [#allocation7], 0
    loop: start=0, step=1, limit=4
    $region2: #{tpu_custom_call.1} parent=1 // loop_pre_header
      _
    $region3: #{tpu_custom_call.1} parent=1 // loop_header
      %s17 = sphi 0, %s21
      %p18 = scmp.ge.s32.totalorder %s17, 4
      %s27 = sphi 0, %s29
      %s30 = sphi 0, %s27
      %s31 = sphi 0, %s30
      %s47 = sphi 0, %s31
      %s51 = sphi 0, %s51
      %s53 = sphi 0, %s51
      %s54 = sphi 0, %s53
      %s68 = sphi 0, %s54
      %s72 = sphi 0, %s72
      %s74 = sphi 0, %s72
      %s75 = sphi 0, %s74
      %s89 = sphi 0, %s75
      %s93 = sphi 0, %s93
      %s95 = sphi 0, %s93
      %s96 = sphi 0, %s95
      %s110 = sphi 0, %s96
      %s114 = sphi 0, %s114
      %s116 = sphi 0, %s114
      %s117 = sphi 0, %s116
      %s131 = sphi 0, %s117
      %s135 = sphi 0, %s135
      %s137 = sphi 0, %s135
      %s138 = sphi 0, %s137
      %s152 = sphi 0, %s138
    $region4: #{tpu_custom_call.1} parent=1 // loop_header_branch
      %20 = sbr.rel (%p18) target = $region8
    $region5: #{tpu_custom_call.1} parent=1 // loop_body
      %s22 = ssub.s32 %s17, 1
      %s23 = ssub.s32 %s17, 2
      %s24 = sadd.s32 %s17, 1
      %s25 = ssub.s32 %s17, %s24
      %p26 = scmp.eq.s32.totalorder %s25, 0
      %s28 = sadd.s32 %s27, 1
      %s29 = scalar_select %p26, %s27, %s28
      %p32 = pneg %p26
      %p33 = scmp.eq.s32.totalorder %s17, 1
      %p34 = por %p32, %p33
      %p35 = scmp.ne.s32.totalorder %s27, %s30
      %p36 = scmp.eq.s32.totalorder %s17, 0
      %p37 = por %p35, %p36
      %p38 = scmp.ne.s32.totalorder %s27, %s30
      %p39 = scmp.eq.s32.totalorder %s22, 1
      %p40 = por %p38, %p39
      %p41 = scmp.ne.s32.totalorder %s30, %s31
      %p42 = scmp.eq.s32.totalorder %s22, 0
      %p43 = por %p41, %p42
      %p44 = scmp.ne.s32.totalorder %s30, %s31
      %p45 = scmp.eq.s32.totalorder %s23, 1
      %p46 = por %p44, %p45
      %p48 = scmp.ne.s32.totalorder %s31, %s47
      %p49 = scmp.eq.s32.totalorder %s23, 0
      %p50 = por %p48, %p49
      %s52 = sadd.s32 %s51, 1
      %p55 = scmp.eq.s32.totalorder %s17, 1
      %p56 = scmp.ne.s32.totalorder %s51, %s53
      %p57 = scmp.eq.s32.totalorder %s17, 0
      %p58 = por %p56, %p57
      %p59 = scmp.ne.s32.totalorder %s51, %s53
      %p60 = scmp.eq.s32.totalorder %s22, 1
      %p61 = por %p59, %p60
      %p62 = scmp.ne.s32.totalorder %s53, %s54
      %p63 = scmp.eq.s32.totalorder %s22, 0
      %p64 = por %p62, %p63
      %p65 = scmp.ne.s32.totalorder %s53, %s54
      %p66 = scmp.eq.s32.totalorder %s23, 1
      %p67 = por %p65, %p66
      %p69 = scmp.ne.s32.totalorder %s54, %s68
      %p70 = scmp.eq.s32.totalorder %s23, 0
      %p71 = por %p69, %p70
      %s73 = sadd.s32 %s72, 1
      %p76 = scmp.eq.s32.totalorder %s17, 1
      %p77 = scmp.ne.s32.totalorder %s72, %s74
      %p78 = scmp.eq.s32.totalorder %s17, 0
      %p79 = por %p77, %p78
      %p80 = scmp.ne.s32.totalorder %s72, %s74
      %p81 = scmp.eq.s32.totalorder %s22, 1
      %p82 = por %p80, %p81
      %p83 = scmp.ne.s32.totalorder %s74, %s75
      %p84 = scmp.eq.s32.totalorder %s22, 0
      %p85 = por %p83, %p84
      %p86 = scmp.ne.s32.totalorder %s74, %s75
      %p87 = scmp.eq.s32.totalorder %s23, 1
      %p88 = por %p86, %p87
      %p90 = scmp.ne.s32.totalorder %s75, %s89
      %p91 = scmp.eq.s32.totalorder %s23, 0
      %p92 = por %p90, %p91
      %s94 = sadd.s32 %s93, 1
      %p97 = scmp.eq.s32.totalorder %s17, 1
      %p98 = scmp.ne.s32.totalorder %s93, %s95
      %p99 = scmp.eq.s32.totalorder %s17, 0
      %p100 = por %p98, %p99
      %p101 = scmp.ne.s32.totalorder %s93, %s95
      %p102 = scmp.eq.s32.totalorder %s22, 1
      %p103 = por %p101, %p102
      %p104 = scmp.ne.s32.totalorder %s95, %s96
      %p105 = scmp.eq.s32.totalorder %s22, 0
      %p106 = por %p104, %p105
      %p107 = scmp.ne.s32.totalorder %s95, %s96
      %p108 = scmp.eq.s32.totalorder %s23, 1
      %p109 = por %p107, %p108
      %p111 = scmp.ne.s32.totalorder %s96, %s110
      %p112 = scmp.eq.s32.totalorder %s23, 0
      %p113 = por %p111, %p112
      %s115 = sadd.s32 %s114, 1
      %p118 = scmp.eq.s32.totalorder %s17, 1
      %p119 = scmp.ne.s32.totalorder %s114, %s116
      %p120 = scmp.eq.s32.totalorder %s17, 0
      %p121 = por %p119, %p120
      %p122 = scmp.ne.s32.totalorder %s114, %s116
      %p123 = scmp.eq.s32.totalorder %s22, 1
      %p124 = por %p122, %p123
      %p125 = scmp.ne.s32.totalorder %s116, %s117
      %p126 = scmp.eq.s32.totalorder %s22, 0
      %p127 = por %p125, %p126
      %p128 = scmp.ne.s32.totalorder %s116, %s117
      %p129 = scmp.eq.s32.totalorder %s23, 1
      %p130 = por %p128, %p129
      %p132 = scmp.ne.s32.totalorder %s117, %s131
      %p133 = scmp.eq.s32.totalorder %s23, 0
      %p134 = por %p132, %p133
      %s136 = sadd.s32 %s135, 1
      %p139 = scmp.eq.s32.totalorder %s17, 1
      %p140 = scmp.ne.s32.totalorder %s135, %s137
      %p141 = scmp.eq.s32.totalorder %s17, 0
      %p142 = por %p140, %p141
      %p143 = scmp.ne.s32.totalorder %s135, %s137
      %p144 = scmp.eq.s32.totalorder %s22, 1
      %p145 = por %p143, %p144
      %p146 = scmp.ne.s32.totalorder %s137, %s138
      %p147 = scmp.eq.s32.totalorder %s22, 0
      %p148 = por %p146, %p147
      %p149 = scmp.ne.s32.totalorder %s137, %s138
      %p150 = scmp.eq.s32.totalorder %s23, 1
      %p151 = por %p149, %p150
      %p153 = scmp.ne.s32.totalorder %s138, %s152
      %p154 = scmp.eq.s32.totalorder %s23, 0
      %p155 = por %p153, %p154
      %p156 = scmp.le.s32.totalorder 1, %s17
      %p157 = scmp.lt.s32.totalorder %s17, 3
      %p158 = pnand %p156, %p157
      %p159 = pneg %p158
      // Predicated region
      $region9: #{tpu_custom_call.1} parent=5 // pred_check
        _
      $region10: #{tpu_custom_call.1} parent=5 // pred_check_branch
        %161 = sbr.rel (%p158) target = $region12
      $region11: #{tpu_custom_call.1} parent=5 // pred_region
        %s162 = ssub.s32 %s17, 1
        // Predicated region
        $region13: #{tpu_custom_call.1} parent=11 // pred_check
          %p163 = pneg %p64
        $region14: #{tpu_custom_call.1} parent=11 // pred_check_branch
          %165 = sbr.rel (%p163) target = $region16
        $region15: #{tpu_custom_call.1} parent=11 // pred_region
          %167 = vsyncadd [#allocation9], 0
          %s168 = sshll.u32 %s1, 4
          %s169 = int_to_ptr.hbm [resolvable:$true] %s168
          %s170 = sshll.u32 [#allocation8], 4
          %s171 = int_to_ptr.vmem [resolvable:$true] %s170
          %176 = dma.hbm_to_vmem [thread:$0]  %s169, 4096, %s171, [#allocation9], 256, 256, 16
        $region16: #{tpu_custom_call.1} parent=11 // pred_fallthru
          _
        // Predicated region
        $region17: #{tpu_custom_call.1} parent=11 // pred_check
          %p177 = pneg %p85
        $region18: #{tpu_custom_call.1} parent=11 // pred_check_branch
          %179 = sbr.rel (%p177) target = $region20
        $region19: #{tpu_custom_call.1} parent=11 // pred_region
          %181 = vsyncadd [#allocation9], 0
          %s182 = sshll.u32 %s2, 4
          %s183 = int_to_ptr.hbm [resolvable:$true] %s182
          %s184 = sshll.u32 [#allocation10], 4
          %s185 = int_to_ptr.vmem [resolvable:$true] %s184
          %190 = dma.hbm_to_vmem [thread:$0]  %s183, 16384, %s185, [#allocation9], 512, 512, 32
        $region20: #{tpu_custom_call.1} parent=11 // pred_fallthru
          _
        // Predicated region
        $region21: #{tpu_custom_call.1} parent=11 // pred_check
          %p191 = pneg %p106
        $region22: #{tpu_custom_call.1} parent=11 // pred_check_branch
          %193 = sbr.rel (%p191) target = $region24
        $region23: #{tpu_custom_call.1} parent=11 // pred_region
          %195 = vsyncadd [#allocation12], 0
          %s197 = sshll.u32 %s3, 4
          %s198 = int_to_ptr.hbm [resolvable:$true] %s197
          %s199 = sshll.u32 [#allocation11], 4
          %s200 = int_to_ptr.vmem [resolvable:$true] %s199
          %202 = dma.hbm_to_vmem [thread:$0]  %s198, 64, %s200, [#allocation12]
        $region24: #{tpu_custom_call.1} parent=11 // pred_fallthru
          _
        // Predicated region
        $region25: #{tpu_custom_call.1} parent=11 // pred_check
          %p203 = pneg %p127
        $region26: #{tpu_custom_call.1} parent=11 // pred_check_branch
          %205 = sbr.rel (%p203) target = $region28
        $region27: #{tpu_custom_call.1} parent=11 // pred_region
          %207 = vsyncadd [#allocation12], 0
          %s209 = sshll.u32 %s4, 4
          %s210 = int_to_ptr.hbm [resolvable:$true] %s209
          %s211 = sshll.u32 [#allocation13], 4
          %s212 = int_to_ptr.vmem [resolvable:$true] %s211
          %214 = dma.hbm_to_vmem [thread:$0]  %s210, 64, %s212, [#allocation12]
        $region28: #{tpu_custom_call.1} parent=11 // pred_fallthru
          _
      $region12: #{tpu_custom_call.1} parent=5 // pred_fallthru
        _
      %p215 = scmp.lt.s32.totalorder %s17, 2
      // Predicated region
      $region29: #{tpu_custom_call.1} parent=5 // pred_check
        %p216 = pneg %p215
      $region30: #{tpu_custom_call.1} parent=5 // pred_check_branch
        %218 = sbr.rel (%p216) target = $region32
      $region31: #{tpu_custom_call.1} parent=5 // pred_region
        // Predicated region
        $region33: #{tpu_custom_call.1} parent=31 // pred_check
          %p219 = pneg %p37
        $region34: #{tpu_custom_call.1} parent=31 // pred_check_branch
          %221 = sbr.rel (%p219) target = $region36
        $region35: #{tpu_custom_call.1} parent=31 // pred_region
          %s222 = sand.u32 %s27, 1
          %s223 = scalar_lea.sflag [#allocation6], %s222
          %s224 = sand.u32 %s27, 1
          %s225 = smul.addr %s224, 32
          %s226 = scalar_lea.vmem [#allocation5], %s225
          %s227 = smul.u32 8, %s17
          %229 = vsyncadd %s223, 0
          %s230 = smul.addr %s227, 4
          %s231 = scalar_lea.hbm %s0, %s230
          %s232 = sshll.u32 %s231, 4
          %s233 = int_to_ptr.hbm [resolvable:$true] %s232
          %s234 = sshll.u32 %s226, 4
          %s235 = int_to_ptr.vmem [resolvable:$true] %s234
          %240 = dma.hbm_to_vmem [thread:$0]  %s233, 512, %s235, %s223, 64, 64, 4
        $region36: #{tpu_custom_call.1} parent=31 // pred_fallthru
          _
      $region32: #{tpu_custom_call.1} parent=5 // pred_fallthru
        _
      %p241 = scmp.le.s32.totalorder 1, %s17
      %p242 = scmp.lt.s32.totalorder %s17, 3
      %p243 = pnand %p241, %p242
      %p244 = pneg %p243
      // Predicated region
      $region37: #{tpu_custom_call.1} parent=5 // pred_check
        _
      $region38: #{tpu_custom_call.1} parent=5 // pred_check_branch
        %246 = sbr.rel (%p243) target = $region40
      $region39: #{tpu_custom_call.1} parent=5 // pred_region
        %s247 = ssub.s32 %s17, 1
        %s248 = sand.u32 %s30, 1
        %s249 = scalar_lea.sflag [#allocation6], %s248
        %s250 = sand.u32 %s30, 1
        %s251 = smul.addr %s250, 32
        %s252 = scalar_lea.vmem [#allocation5], %s251
        // Predicated region
        $region41: #{tpu_custom_call.1} parent=39 // pred_check
          %p253 = pneg %p43
        $region42: #{tpu_custom_call.1} parent=39 // pred_check_branch
          %255 = sbr.rel (%p253) target = $region44
        $region43: #{tpu_custom_call.1} parent=39 // pred_region
          %257 = dma.done %s249, 512
        $region44: #{tpu_custom_call.1} parent=39 // pred_fallthru
          _
        // Predicated region
        $region45: #{tpu_custom_call.1} parent=39 // pred_check
          %p258 = pneg %p64
        $region46: #{tpu_custom_call.1} parent=39 // pred_check_branch
          %260 = sbr.rel (%p258) target = $region48
        $region47: #{tpu_custom_call.1} parent=39 // pred_region
          %262 = dma.done [#allocation9], 4096
        $region48: #{tpu_custom_call.1} parent=39 // pred_fallthru
          _
        // Predicated region
        $region49: #{tpu_custom_call.1} parent=39 // pred_check
          %p263 = pneg %p85
        $region50: #{tpu_custom_call.1} parent=39 // pred_check_branch
          %265 = sbr.rel (%p263) target = $region52
        $region51: #{tpu_custom_call.1} parent=39 // pred_region
          %267 = dma.done [#allocation9], 16384
        $region52: #{tpu_custom_call.1} parent=39 // pred_fallthru
          _
        // Predicated region
        $region53: #{tpu_custom_call.1} parent=39 // pred_check
          %p268 = pneg %p106
        $region54: #{tpu_custom_call.1} parent=39 // pred_check_branch
          %270 = sbr.rel (%p268) target = $region56
        $region55: #{tpu_custom_call.1} parent=39 // pred_region
          %272 = dma.done [#allocation12], 64
        $region56: #{tpu_custom_call.1} parent=39 // pred_fallthru
          _
        // Predicated region
        $region57: #{tpu_custom_call.1} parent=39 // pred_check
          %p273 = pneg %p127
        $region58: #{tpu_custom_call.1} parent=39 // pred_check_branch
          %275 = sbr.rel (%p273) target = $region60
        $region59: #{tpu_custom_call.1} parent=39 // pred_region
          %277 = dma.done [#allocation12], 64
        $region60: #{tpu_custom_call.1} parent=39 // pred_fallthru
          _
        %s278 = sand.u32 %s30, 1
        %s279 = scalar_lea.sflag [#allocation6], %s278
        %s280 = sand.u32 %s30, 1
        %s281 = smul.addr %s280, 32
        %s282 = scalar_lea.vmem [#allocation5], %s281
        %p283 = pneg %p43
        %p284 = pneg %p40
        %p285 = pneg %p64
        %p286 = pneg %p61
        %p287 = pneg %p85
        %p288 = pneg %p82
        %p289 = pneg %p106
        %p290 = pneg %p103
        %p291 = pneg %p127
        %p292 = pneg %p124
        %p293 = pneg %p148
        %p294 = pneg %p145
        %s295 = smul.u32 8, %s22
        %s297 = smul.u32 %s22, 8
        %p298 = scmp.eq.s32.totalorder %s22, 0
        // Predicated region
        $region61: #{tpu_custom_call.1} parent=39 // pred_check
          %p299 = pneg %p298
        $region62: #{tpu_custom_call.1} parent=39 // pred_check_branch
          %301 = sbr.rel (%p299) target = $region64
        $region63: #{tpu_custom_call.1} parent=39 // pred_region
          %302 = vst [vmem:[#allocation3] sm:$0xff] 0
          %303 = vst [vmem:[#allocation4] sm:$0xff] 0.0
          %304 = vst [vmem:[#allocation4 + $0x8] sm:$0xff] 0.0
        $region64: #{tpu_custom_call.1} parent=39 // pred_fallthru
          _
        %v305 = vld [vmem:[%s252] sm:$0xf]
        %v306 = vld [vmem:[%s252 + $0x4] sm:$0xf]
        %v307 = vld [vmem:[%s252 + $0x8] sm:$0xf]
        %v308 = vld [vmem:[%s252 + $0xc] sm:$0xf]
        %v309 = vld [vmem:[%s252 + $0x10] sm:$0xf]
        %v310 = vld [vmem:[%s252 + $0x14] sm:$0xf]
        %v311 = vld [vmem:[%s252 + $0x18] sm:$0xf]
        %v312 = vld [vmem:[%s252 + $0x1c] sm:$0xf]
        %v313 = vld [vmem:[#allocation8] sm:$0xff]
        %v314 = vld [vmem:[#allocation8 + $0x8] sm:$0xff]
        %v315 = vld [vmem:[#allocation8 + $0x10] sm:$0xff]
        %v316 = vld [vmem:[#allocation8 + $0x18] sm:$0xff]
        %v317 = vld [vmem:[#allocation8 + $0x20] sm:$0xff]
        %v318 = vld [vmem:[#allocation8 + $0x28] sm:$0xff]
        %v319 = vld [vmem:[#allocation8 + $0x30] sm:$0xff]
        %v320 = vld [vmem:[#allocation8 + $0x38] sm:$0xff]
        %v321 = vld [vmem:[#allocation8 + $0x40] sm:$0xff]
        %v322 = vld [vmem:[#allocation8 + $0x48] sm:$0xff]
        %v323 = vld [vmem:[#allocation8 + $0x50] sm:$0xff]
        %v324 = vld [vmem:[#allocation8 + $0x58] sm:$0xff]
        %v325 = vld [vmem:[#allocation8 + $0x60] sm:$0xff]
        %v326 = vld [vmem:[#allocation8 + $0x68] sm:$0xff]
        %v327 = vld [vmem:[#allocation8 + $0x70] sm:$0xff]
        %v328 = vld [vmem:[#allocation8 + $0x78] sm:$0xff]
        %v329 = vld [vmem:[#allocation8 + $0x80] sm:$0xff]
        %v330 = vld [vmem:[#allocation8 + $0x88] sm:$0xff]
        %v331 = vld [vmem:[#allocation8 + $0x90] sm:$0xff]
        %v332 = vld [vmem:[#allocation8 + $0x98] sm:$0xff]
        %v333 = vld [vmem:[#allocation8 + $0xa0] sm:$0xff]
        %v334 = vld [vmem:[#allocation8 + $0xa8] sm:$0xff]
        %v335 = vld [vmem:[#allocation8 + $0xb0] sm:$0xff]
        %v336 = vld [vmem:[#allocation8 + $0xb8] sm:$0xff]
        %v337 = vld [vmem:[#allocation8 + $0xc0] sm:$0xff]
        %v338 = vld [vmem:[#allocation8 + $0xc8] sm:$0xff]
        %v339 = vld [vmem:[#allocation8 + $0xd0] sm:$0xff]
        %v340 = vld [vmem:[#allocation8 + $0xd8] sm:$0xff]
        %v341 = vld [vmem:[#allocation8 + $0xe0] sm:$0xff]
        %v342 = vld [vmem:[#allocation8 + $0xe8] sm:$0xff]
        %v343 = vld [vmem:[#allocation8 + $0xf0] sm:$0xff]
        %v344 = vld [vmem:[#allocation8 + $0xf8] sm:$0xff]
        %v345 = vld [vmem:[#allocation11] sm:$0xf]
        %v347 = vperm.slane %v345, 0
        %v348 = vperm.slane %v345, 1
        %v349 = vperm.slane %v345, 2
        %v350 = vperm.slane %v345, 3
        %v363 = vunpack.c.l.b16 %v305
        %v364 = vunpack.c.l.b16 %v306
        %v365 = vunpack.c.l.b16 %v307
        %v366 = vunpack.c.l.b16 %v308
        %v367 = vunpack.c.l.b16 %v309
        %v368 = vunpack.c.l.b16 %v310
        %v369 = vunpack.c.l.b16 %v311
        %v370 = vunpack.c.l.b16 %v312
        %v371 = vpack.c.b16 %v364, %v363
        %v372 = vpack.c.b16 %v366, %v365
        %v373 = vpack.c.b16 %v368, %v367
        %v374 = vpack.c.b16 %v370, %v369
        %v411 = vunpack.c.l.b16 %v313
        %v412 = vunpack.c.h.b16 %v313
        %v413 = vunpack.c.l.b16 %v314
        %v414 = vunpack.c.h.b16 %v314
        %v415 = vunpack.c.l.b16 %v315
        %v416 = vunpack.c.h.b16 %v315
        %v417 = vunpack.c.l.b16 %v316
        %v418 = vunpack.c.h.b16 %v316
        %v419 = vunpack.c.l.b16 %v317
        %v420 = vunpack.c.h.b16 %v317
        %v421 = vunpack.c.l.b16 %v318
        %v422 = vunpack.c.h.b16 %v318
        %v423 = vunpack.c.l.b16 %v319
        %v424 = vunpack.c.h.b16 %v319
        %v425 = vunpack.c.l.b16 %v320
        %v426 = vunpack.c.h.b16 %v320
        %v427 = vunpack.c.l.b16 %v321
        %v428 = vunpack.c.h.b16 %v321
        %v429 = vunpack.c.l.b16 %v322
        %v430 = vunpack.c.h.b16 %v322
        %v431 = vunpack.c.l.b16 %v323
        %v432 = vunpack.c.h.b16 %v323
        %v433 = vunpack.c.l.b16 %v324
        %v434 = vunpack.c.h.b16 %v324
        %v435 = vunpack.c.l.b16 %v325
        %v436 = vunpack.c.h.b16 %v325
        %v437 = vunpack.c.l.b16 %v326
        %v438 = vunpack.c.h.b16 %v326
        %v439 = vunpack.c.l.b16 %v327
        %v440 = vunpack.c.h.b16 %v327
        %v441 = vunpack.c.l.b16 %v328
        %v442 = vunpack.c.h.b16 %v328
        %v443 = vunpack.c.l.b16 %v329
        %v444 = vunpack.c.h.b16 %v329
        %v445 = vunpack.c.l.b16 %v330
        %v446 = vunpack.c.h.b16 %v330
        %v447 = vunpack.c.l.b16 %v331
        %v448 = vunpack.c.h.b16 %v331
        %v449 = vunpack.c.l.b16 %v332
        %v450 = vunpack.c.h.b16 %v332
        %v451 = vunpack.c.l.b16 %v333
        %v452 = vunpack.c.h.b16 %v333
        %v453 = vunpack.c.l.b16 %v334
        %v454 = vunpack.c.h.b16 %v334
        %v455 = vunpack.c.l.b16 %v335
        %v456 = vunpack.c.h.b16 %v335
        %v457 = vunpack.c.l.b16 %v336
        %v458 = vunpack.c.h.b16 %v336
        %v459 = vunpack.c.l.b16 %v337
        %v460 = vunpack.c.h.b16 %v337
        %v461 = vunpack.c.l.b16 %v338
        %v462 = vunpack.c.h.b16 %v338
        %v463 = vunpack.c.l.b16 %v339
        %v464 = vunpack.c.h.b16 %v339
        %v465 = vunpack.c.l.b16 %v340
        %v466 = vunpack.c.h.b16 %v340
        %v467 = vunpack.c.l.b16 %v341
        %v468 = vunpack.c.h.b16 %v341
        %v469 = vunpack.c.l.b16 %v342
        %v470 = vunpack.c.h.b16 %v342
        %v471 = vunpack.c.l.b16 %v343
        %v472 = vunpack.c.h.b16 %v343
        %v473 = vunpack.c.l.b16 %v344
        %v474 = vunpack.c.h.b16 %v344
        %v475 = vpack.c.b16 %v415, %v411
        %v476 = vpack.c.b16 %v416, %v412
        %v477 = vpack.c.b16 %v417, %v413
        %v478 = vpack.c.b16 %v418, %v414
        %v479 = vpack.c.b16 %v423, %v419
        %v480 = vpack.c.b16 %v424, %v420
        %v481 = vpack.c.b16 %v425, %v421
        %v482 = vpack.c.b16 %v426, %v422
        %v483 = vpack.c.b16 %v431, %v427
        %v484 = vpack.c.b16 %v432, %v428
        %v485 = vpack.c.b16 %v433, %v429
        %v486 = vpack.c.b16 %v434, %v430
        %v487 = vpack.c.b16 %v439, %v435
        %v488 = vpack.c.b16 %v440, %v436
        %v489 = vpack.c.b16 %v441, %v437
        %v490 = vpack.c.b16 %v442, %v438
        %v491 = vpack.c.b16 %v447, %v443
        %v492 = vpack.c.b16 %v448, %v444
        %v493 = vpack.c.b16 %v449, %v445
        %v494 = vpack.c.b16 %v450, %v446
        %v495 = vpack.c.b16 %v455, %v451
        %v496 = vpack.c.b16 %v456, %v452
        %v497 = vpack.c.b16 %v457, %v453
        %v498 = vpack.c.b16 %v458, %v454
        %v499 = vpack.c.b16 %v463, %v459
        %v500 = vpack.c.b16 %v464, %v460
        %v501 = vpack.c.b16 %v465, %v461
        %v502 = vpack.c.b16 %v466, %v462
        %v503 = vpack.c.b16 %v471, %v467
        %v504 = vpack.c.b16 %v472, %v468
        %v505 = vpack.c.b16 %v473, %v469
        %v506 = vpack.c.b16 %v474, %v470
        %539 = vmatpush.bf16.msra.mxu0 %v503
        %540 = vmatpush.bf16.msra.mxu0 %v499
        %541 = vmatpush.bf16.msra.mxu0 %v495
        %542 = vmatpush.bf16.msra.mxu0 %v491
        %543 = vmatpush.bf16.msra.mxu0 %v487
        %544 = vmatpush.bf16.msra.mxu0 %v483
        %545 = vmatpush.bf16.msra.mxu0 %v479
        %546 = vmatpush.bf16.msra.mxu0 %v475
        %547 = vmatmul.bf16.gmra.mxu0 %v371
        %v548 = vpop.f32.mrf.mxu0
        %v549 = vadd.f32 %v347, %v548
        %v550 = vpop.f32.mrf.mxu0
        %v551 = vadd.f32 %v347, %v550
        %552 = vmatmul.bf16.gmra.mxu0 %v372
        %v553 = vpop.f32.mrf.mxu0
        %v554 = vadd.f32 %v347, %v553
        %v555 = vpop.f32.mrf.mxu0
        %v556 = vadd.f32 %v347, %v555
        %557 = vmatmul.bf16.gmra.mxu0 %v373
        %v558 = vpop.f32.mrf.mxu0
        %v559 = vadd.f32 %v347, %v558
        %v560 = vpop.f32.mrf.mxu0
        %v561 = vadd.f32 %v347, %v560
        %562 = vmatmul.bf16.gmra.mxu0 %v374
        %v563 = vpop.f32.mrf.mxu0
        %v564 = vadd.f32 %v347, %v563
        %v565 = vpop.f32.mrf.mxu0
        %v566 = vadd.f32 %v347, %v565
        %567 = vdwg.mxu0
        %568 = vmatpush.bf16.msra.mxu0 %v504
        %569 = vmatpush.bf16.msra.mxu0 %v500
        %570 = vmatpush.bf16.msra.mxu0 %v496
        %571 = vmatpush.bf16.msra.mxu0 %v492
        %572 = vmatpush.bf16.msra.mxu0 %v488
        %573 = vmatpush.bf16.msra.mxu0 %v484
        %574 = vmatpush.bf16.msra.mxu0 %v480
        %575 = vmatpush.bf16.msra.mxu0 %v476
        %576 = vmatmul.bf16.gmra.mxu0 %v371
        %v577 = vpop.f32.mrf.mxu0
        %v578 = vadd.f32 %v348, %v577
        %v579 = vpop.f32.mrf.mxu0
        %v580 = vadd.f32 %v348, %v579
        %581 = vmatmul.bf16.gmra.mxu0 %v372
        %v582 = vpop.f32.mrf.mxu0
        %v583 = vadd.f32 %v348, %v582
        %v584 = vpop.f32.mrf.mxu0
        %v585 = vadd.f32 %v348, %v584
        %586 = vmatmul.bf16.gmra.mxu0 %v373
        %v587 = vpop.f32.mrf.mxu0
        %v588 = vadd.f32 %v348, %v587
        %v589 = vpop.f32.mrf.mxu0
        %v590 = vadd.f32 %v348, %v589
        %591 = vmatmul.bf16.gmra.mxu0 %v374
        %v592 = vpop.f32.mrf.mxu0
        %v593 = vadd.f32 %v348, %v592
        %v594 = vpop.f32.mrf.mxu0
        %v595 = vadd.f32 %v348, %v594
        %596 = vdwg.mxu0
        %597 = vmatpush.bf16.msra.mxu0 %v505
        %598 = vmatpush.bf16.msra.mxu0 %v501
        %599 = vmatpush.bf16.msra.mxu0 %v497
        %600 = vmatpush.bf16.msra.mxu0 %v493
        %601 = vmatpush.bf16.msra.mxu0 %v489
        %602 = vmatpush.bf16.msra.mxu0 %v485
        %603 = vmatpush.bf16.msra.mxu0 %v481
        %604 = vmatpush.bf16.msra.mxu0 %v477
        %605 = vmatmul.bf16.gmra.mxu0 %v371
        %v606 = vpop.f32.mrf.mxu0
        %v607 = vadd.f32 %v349, %v606
        %v608 = vpop.f32.mrf.mxu0
        %v609 = vadd.f32 %v349, %v608
        %610 = vmatmul.bf16.gmra.mxu0 %v372
        %v611 = vpop.f32.mrf.mxu0
        %v612 = vadd.f32 %v349, %v611
        %v613 = vpop.f32.mrf.mxu0
        %v614 = vadd.f32 %v349, %v613
        %615 = vmatmul.bf16.gmra.mxu0 %v373
        %v616 = vpop.f32.mrf.mxu0
        %v617 = vadd.f32 %v349, %v616
        %v618 = vpop.f32.mrf.mxu0
        %v619 = vadd.f32 %v349, %v618
        %620 = vmatmul.bf16.gmra.mxu0 %v374
        %v621 = vpop.f32.mrf.mxu0
        %v622 = vadd.f32 %v349, %v621
        %v623 = vpop.f32.mrf.mxu0
        %v624 = vadd.f32 %v349, %v623
        %625 = vdwg.mxu0
        %626 = vmatpush.bf16.msra.mxu0 %v506
        %627 = vmatpush.bf16.msra.mxu0 %v502
        %628 = vmatpush.bf16.msra.mxu0 %v498
        %629 = vmatpush.bf16.msra.mxu0 %v494
        %630 = vmatpush.bf16.msra.mxu0 %v490
        %631 = vmatpush.bf16.msra.mxu0 %v486
        %632 = vmatpush.bf16.msra.mxu0 %v482
        %633 = vmatpush.bf16.msra.mxu0 %v478
        %634 = vmatmul.bf16.gmra.mxu0 %v371
        %v635 = vpop.f32.mrf.mxu0
        %v636 = vadd.f32 %v350, %v635
        %v637 = vpop.f32.mrf.mxu0
        %v638 = vadd.f32 %v350, %v637
        %639 = vmatmul.bf16.gmra.mxu0 %v372
        %v640 = vpop.f32.mrf.mxu0
        %v641 = vadd.f32 %v350, %v640
        %v642 = vpop.f32.mrf.mxu0
        %v643 = vadd.f32 %v350, %v642
        %644 = vmatmul.bf16.gmra.mxu0 %v373
        %v645 = vpop.f32.mrf.mxu0
        %v646 = vadd.f32 %v350, %v645
        %v647 = vpop.f32.mrf.mxu0
        %v648 = vadd.f32 %v350, %v647
        %649 = vmatmul.bf16.gmra.mxu0 %v374
        %v650 = vpop.f32.mrf.mxu0
        %v651 = vadd.f32 %v350, %v650
        %v652 = vpop.f32.mrf.mxu0
        %v653 = vadd.f32 %v350, %v652
        %654 = vdwg.mxu0
        %655 = vst [vmem:[#allocation2] sm:$0xff] %v549
        %656 = vst [vmem:[#allocation2 + $0x8] sm:$0xff] %v578
        %657 = vst [vmem:[#allocation2 + $0x10] sm:$0xff] %v607
        %658 = vst [vmem:[#allocation2 + $0x18] sm:$0xff] %v636
        %659 = vst [vmem:[#allocation2 + $0x20] sm:$0xff] %v551
        %660 = vst [vmem:[#allocation2 + $0x28] sm:$0xff] %v580
        %661 = vst [vmem:[#allocation2 + $0x30] sm:$0xff] %v609
        %662 = vst [vmem:[#allocation2 + $0x38] sm:$0xff] %v638
        %663 = vst [vmem:[#allocation2 + $0x40] sm:$0xff] %v554
        %664 = vst [vmem:[#allocation2 + $0x48] sm:$0xff] %v583
        %665 = vst [vmem:[#allocation2 + $0x50] sm:$0xff] %v612
        %666 = vst [vmem:[#allocation2 + $0x58] sm:$0xff] %v641
        %667 = vst [vmem:[#allocation2 + $0x60] sm:$0xff] %v556
        %668 = vst [vmem:[#allocation2 + $0x68] sm:$0xff] %v585
        %669 = vst [vmem:[#allocation2 + $0x70] sm:$0xff] %v614
        %670 = vst [vmem:[#allocation2 + $0x78] sm:$0xff] %v643
        %671 = vst [vmem:[#allocation2 + $0x80] sm:$0xff] %v559
        %672 = vst [vmem:[#allocation2 + $0x88] sm:$0xff] %v588
        %673 = vst [vmem:[#allocation2 + $0x90] sm:$0xff] %v617
        %674 = vst [vmem:[#allocation2 + $0x98] sm:$0xff] %v646
        %675 = vst [vmem:[#allocation2 + $0xa0] sm:$0xff] %v561
        %676 = vst [vmem:[#allocation2 + $0xa8] sm:$0xff] %v590
        %677 = vst [vmem:[#allocation2 + $0xb0] sm:$0xff] %v619
        %678 = vst [vmem:[#allocation2 + $0xb8] sm:$0xff] %v648
        %679 = vst [vmem:[#allocation2 + $0xc0] sm:$0xff] %v564
        %680 = vst [vmem:[#allocation2 + $0xc8] sm:$0xff] %v593
        %681 = vst [vmem:[#allocation2 + $0xd0] sm:$0xff] %v622
        %682 = vst [vmem:[#allocation2 + $0xd8] sm:$0xff] %v651
        %683 = vst [vmem:[#allocation2 + $0xe0] sm:$0xff] %v566
        %684 = vst [vmem:[#allocation2 + $0xe8] sm:$0xff] %v595
        %685 = vst [vmem:[#allocation2 + $0xf0] sm:$0xff] %v624
        %686 = vst [vmem:[#allocation2 + $0xf8] sm:$0xff] %v653
        %v687 = vld [vmem:[#allocation10] sm:$0xff]
        %v688 = vld [vmem:[#allocation10 + $0x8] sm:$0xff]
        %v689 = vld [vmem:[#allocation10 + $0x10] sm:$0xff]
        %v690 = vld [vmem:[#allocation10 + $0x18] sm:$0xff]
        %v691 = vld [vmem:[#allocation10 + $0x20] sm:$0xff]
        %v692 = vld [vmem:[#allocation10 + $0x28] sm:$0xff]
        %v693 = vld [vmem:[#allocation10 + $0x30] sm:$0xff]
        %v694 = vld [vmem:[#allocation10 + $0x38] sm:$0xff]
        %v695 = vld [vmem:[#allocation10 + $0x40] sm:$0xff]
        %v696 = vld [vmem:[#allocation10 + $0x48] sm:$0xff]
        %v697 = vld [vmem:[#allocation10 + $0x50] sm:$0xff]
        %v698 = vld [vmem:[#allocation10 + $0x58] sm:$0xff]
        %v699 = vld [vmem:[#allocation10 + $0x60] sm:$0xff]
        %v700 = vld [vmem:[#allocation10 + $0x68] sm:$0xff]
        %v701 = vld [vmem:[#allocation10 + $0x70] sm:$0xff]
        %v702 = vld [vmem:[#allocation10 + $0x78] sm:$0xff]
        %v703 = vld [vmem:[#allocation10 + $0x80] sm:$0xff]
        %v704 = vld [vmem:[#allocation10 + $0x88] sm:$0xff]
        %v705 = vld [vmem:[#allocation10 + $0x90] sm:$0xff]
        %v706 = vld [vmem:[#allocation10 + $0x98] sm:$0xff]
        %v707 = vld [vmem:[#allocation10 + $0xa0] sm:$0xff]
        %v708 = vld [vmem:[#allocation10 + $0xa8] sm:$0xff]
        %v709 = vld [vmem:[#allocation10 + $0xb0] sm:$0xff]
        %v710 = vld [vmem:[#allocation10 + $0xb8] sm:$0xff]
        %v711 = vld [vmem:[#allocation10 + $0xc0] sm:$0xff]
        %v712 = vld [vmem:[#allocation10 + $0xc8] sm:$0xff]
        %v713 = vld [vmem:[#allocation10 + $0xd0] sm:$0xff]
        %v714 = vld [vmem:[#allocation10 + $0xd8] sm:$0xff]
        %v715 = vld [vmem:[#allocation10 + $0xe0] sm:$0xff]
        %v716 = vld [vmem:[#allocation10 + $0xe8] sm:$0xff]
        %v717 = vld [vmem:[#allocation10 + $0xf0] sm:$0xff]
        %v718 = vld [vmem:[#allocation10 + $0xf8] sm:$0xff]
        %v719 = vld [vmem:[#allocation10 + $0x100] sm:$0xff]
        %v720 = vld [vmem:[#allocation10 + $0x108] sm:$0xff]
        %v721 = vld [vmem:[#allocation10 + $0x110] sm:$0xff]
        %v722 = vld [vmem:[#allocation10 + $0x118] sm:$0xff]
        %v723 = vld [vmem:[#allocation10 + $0x120] sm:$0xff]
        %v724 = vld [vmem:[#allocation10 + $0x128] sm:$0xff]
        %v725 = vld [vmem:[#allocation10 + $0x130] sm:$0xff]
        %v726 = vld [vmem:[#allocation10 + $0x138] sm:$0xff]
        %v727 = vld [vmem:[#allocation10 + $0x140] sm:$0xff]
        %v728 = vld [vmem:[#allocation10 + $0x148] sm:$0xff]
        %v729 = vld [vmem:[#allocation10 + $0x150] sm:$0xff]
        %v730 = vld [vmem:[#allocation10 + $0x158] sm:$0xff]
        %v731 = vld [vmem:[#allocation10 + $0x160] sm:$0xff]
        %v732 = vld [vmem:[#allocation10 + $0x168] sm:$0xff]
        %v733 = vld [vmem:[#allocation10 + $0x170] sm:$0xff]
        %v734 = vld [vmem:[#allocation10 + $0x178] sm:$0xff]
        %v735 = vld [vmem:[#allocation10 + $0x180] sm:$0xff]
        %v736 = vld [vmem:[#allocation10 + $0x188] sm:$0xff]
        %v737 = vld [vmem:[#allocation10 + $0x190] sm:$0xff]
        %v738 = vld [vmem:[#allocation10 + $0x198] sm:$0xff]
        %v739 = vld [vmem:[#allocation10 + $0x1a0] sm:$0xff]
        %v740 = vld [vmem:[#allocation10 + $0x1a8] sm:$0xff]
        %v741 = vld [vmem:[#allocation10 + $0x1b0] sm:$0xff]
        %v742 = vld [vmem:[#allocation10 + $0x1b8] sm:$0xff]
        %v743 = vld [vmem:[#allocation10 + $0x1c0] sm:$0xff]
        %v744 = vld [vmem:[#allocation10 + $0x1c8] sm:$0xff]
        %v745 = vld [vmem:[#allocation10 + $0x1d0] sm:$0xff]
        %v746 = vld [vmem:[#allocation10 + $0x1d8] sm:$0xff]
        %v747 = vld [vmem:[#allocation10 + $0x1e0] sm:$0xff]
        %v748 = vld [vmem:[#allocation10 + $0x1e8] sm:$0xff]
        %v749 = vld [vmem:[#allocation10 + $0x1f0] sm:$0xff]
        %v750 = vld [vmem:[#allocation10 + $0x1f8] sm:$0xff]
        %v751 = vld [vmem:[#allocation10 + $0x200] sm:$0xff]
        %v752 = vld [vmem:[#allocation10 + $0x208] sm:$0xff]
        %v753 = vld [vmem:[#allocation10 + $0x210] sm:$0xff]
        %v754 = vld [vmem:[#allocation10 + $0x218] sm:$0xff]
        %v755 = vld [vmem:[#allocation10 + $0x220] sm:$0xff]
        %v756 = vld [vmem:[#allocation10 + $0x228] sm:$0xff]
        %v757 = vld [vmem:[#allocation10 + $0x230] sm:$0xff]
        %v758 = vld [vmem:[#allocation10 + $0x238] sm:$0xff]
        %v759 = vld [vmem:[#allocation10 + $0x240] sm:$0xff]
        %v760 = vld [vmem:[#allocation10 + $0x248] sm:$0xff]
        %v761 = vld [vmem:[#allocation10 + $0x250] sm:$0xff]
        %v762 = vld [vmem:[#allocation10 + $0x258] sm:$0xff]
        %v763 = vld [vmem:[#allocation10 + $0x260] sm:$0xff]
        %v764 = vld [vmem:[#allocation10 + $0x268] sm:$0xff]
        %v765 = vld [vmem:[#allocation10 + $0x270] sm:$0xff]
        %v766 = vld [vmem:[#allocation10 + $0x278] sm:$0xff]
        %v767 = vld [vmem:[#allocation10 + $0x280] sm:$0xff]
        %v768 = vld [vmem:[#allocation10 + $0x288] sm:$0xff]
        %v769 = vld [vmem:[#allocation10 + $0x290] sm:$0xff]
        %v770 = vld [vmem:[#allocation10 + $0x298] sm:$0xff]
        %v771 = vld [vmem:[#allocation10 + $0x2a0] sm:$0xff]
        %v772 = vld [vmem:[#allocation10 + $0x2a8] sm:$0xff]
        %v773 = vld [vmem:[#allocation10 + $0x2b0] sm:$0xff]
        %v774 = vld [vmem:[#allocation10 + $0x2b8] sm:$0xff]
        %v775 = vld [vmem:[#allocation10 + $0x2c0] sm:$0xff]
        %v776 = vld [vmem:[#allocation10 + $0x2c8] sm:$0xff]
        %v777 = vld [vmem:[#allocation10 + $0x2d0] sm:$0xff]
        %v778 = vld [vmem:[#allocation10 + $0x2d8] sm:$0xff]
        %v779 = vld [vmem:[#allocation10 + $0x2e0] sm:$0xff]
        %v780 = vld [vmem:[#allocation10 + $0x2e8] sm:$0xff]
        %v781 = vld [vmem:[#allocation10 + $0x2f0] sm:$0xff]
        %v782 = vld [vmem:[#allocation10 + $0x2f8] sm:$0xff]
        %v783 = vld [vmem:[#allocation10 + $0x300] sm:$0xff]
        %v784 = vld [vmem:[#allocation10 + $0x308] sm:$0xff]
        %v785 = vld [vmem:[#allocation10 + $0x310] sm:$0xff]
        %v786 = vld [vmem:[#allocation10 + $0x318] sm:$0xff]
        %v787 = vld [vmem:[#allocation10 + $0x320] sm:$0xff]
        %v788 = vld [vmem:[#allocation10 + $0x328] sm:$0xff]
        %v789 = vld [vmem:[#allocation10 + $0x330] sm:$0xff]
        %v790 = vld [vmem:[#allocation10 + $0x338] sm:$0xff]
        %v791 = vld [vmem:[#allocation10 + $0x340] sm:$0xff]
        %v792 = vld [vmem:[#allocation10 + $0x348] sm:$0xff]
        %v793 = vld [vmem:[#allocation10 + $0x350] sm:$0xff]
        %v794 = vld [vmem:[#allocation10 + $0x358] sm:$0xff]
        %v795 = vld [vmem:[#allocation10 + $0x360] sm:$0xff]
        %v796 = vld [vmem:[#allocation10 + $0x368] sm:$0xff]
        %v797 = vld [vmem:[#allocation10 + $0x370] sm:$0xff]
        %v798 = vld [vmem:[#allocation10 + $0x378] sm:$0xff]
        %v799 = vld [vmem:[#allocation10 + $0x380] sm:$0xff]
        %v800 = vld [vmem:[#allocation10 + $0x388] sm:$0xff]
        %v801 = vld [vmem:[#allocation10 + $0x390] sm:$0xff]
        %v802 = vld [vmem:[#allocation10 + $0x398] sm:$0xff]
        %v803 = vld [vmem:[#allocation10 + $0x3a0] sm:$0xff]
        %v804 = vld [vmem:[#allocation10 + $0x3a8] sm:$0xff]
        %v805 = vld [vmem:[#allocation10 + $0x3b0] sm:$0xff]
        %v806 = vld [vmem:[#allocation10 + $0x3b8] sm:$0xff]
        %v807 = vld [vmem:[#allocation10 + $0x3c0] sm:$0xff]
        %v808 = vld [vmem:[#allocation10 + $0x3c8] sm:$0xff]
        %v809 = vld [vmem:[#allocation10 + $0x3d0] sm:$0xff]
        %v810 = vld [vmem:[#allocation10 + $0x3d8] sm:$0xff]
        %v811 = vld [vmem:[#allocation10 + $0x3e0] sm:$0xff]
        %v812 = vld [vmem:[#allocation10 + $0x3e8] sm:$0xff]
        %v813 = vld [vmem:[#allocation10 + $0x3f0] sm:$0xff]
        %v814 = vld [vmem:[#allocation10 + $0x3f8] sm:$0xff]
        %v815 = vld [vmem:[#allocation13] sm:$0xf]
        %v817 = vperm.slane %v815, 0
        %v818 = vperm.slane %v815, 1
        %v819 = vperm.slane %v815, 2
        %v820 = vperm.slane %v815, 3
        %v825 = vld [vmem:[#allocation4] sm:$0xff]
        %s826 = scalar_lea.vmem [#allocation4], 8
        %v827 = vld [vmem:[%s826] sm:$0xff]
        %v828 = vld [vmem:[#allocation2] sm:$0xff]
        %v829 = vld [vmem:[#allocation2 + $0x8] sm:$0xff]
        %v830 = vld [vmem:[#allocation2 + $0x10] sm:$0xff]
        %v831 = vld [vmem:[#allocation2 + $0x18] sm:$0xff]
        %v832 = vld [vmem:[#allocation3] sm:$0xf]
        %v833 = vld [vmem:[#allocation10] sm:$0xff]
        %v834 = vld [vmem:[#allocation10 + $0x8] sm:$0xff]
        %v835 = vld [vmem:[#allocation10 + $0x20] sm:$0xff]
        %v836 = vld [vmem:[#allocation10 + $0x28] sm:$0xff]
        %v837 = vld [vmem:[#allocation10 + $0x40] sm:$0xff]
        %v838 = vld [vmem:[#allocation10 + $0x48] sm:$0xff]
        %v839 = vld [vmem:[#allocation10 + $0x60] sm:$0xff]
        %v840 = vld [vmem:[#allocation10 + $0x68] sm:$0xff]
        %v841 = vld [vmem:[#allocation10 + $0x80] sm:$0xff]
        %v842 = vld [vmem:[#allocation10 + $0x88] sm:$0xff]
        %v843 = vld [vmem:[#allocation10 + $0xa0] sm:$0xff]
        %v844 = vld [vmem:[#allocation10 + $0xa8] sm:$0xff]
        %v845 = vld [vmem:[#allocation10 + $0xc0] sm:$0xff]
        %v846 = vld [vmem:[#allocation10 + $0xc8] sm:$0xff]
        %v847 = vld [vmem:[#allocation10 + $0xe0] sm:$0xff]
        %v848 = vld [vmem:[#allocation10 + $0xe8] sm:$0xff]
        %v849 = vld [vmem:[#allocation10 + $0x100] sm:$0xff]
        %v850 = vld [vmem:[#allocation10 + $0x108] sm:$0xff]
        %v851 = vld [vmem:[#allocation10 + $0x120] sm:$0xff]
        %v852 = vld [vmem:[#allocation10 + $0x128] sm:$0xff]
        %v853 = vld [vmem:[#allocation10 + $0x140] sm:$0xff]
        %v854 = vld [vmem:[#allocation10 + $0x148] sm:$0xff]
        %v855 = vld [vmem:[#allocation10 + $0x160] sm:$0xff]
        %v856 = vld [vmem:[#allocation10 + $0x168] sm:$0xff]
        %v857 = vld [vmem:[#allocation10 + $0x180] sm:$0xff]
        %v858 = vld [vmem:[#allocation10 + $0x188] sm:$0xff]
        %v859 = vld [vmem:[#allocation10 + $0x1a0] sm:$0xff]
        %v860 = vld [vmem:[#allocation10 + $0x1a8] sm:$0xff]
        %v861 = vld [vmem:[#allocation10 + $0x1c0] sm:$0xff]
        %v862 = vld [vmem:[#allocation10 + $0x1c8] sm:$0xff]
        %v863 = vld [vmem:[#allocation10 + $0x1e0] sm:$0xff]
        %v864 = vld [vmem:[#allocation10 + $0x1e8] sm:$0xff]
        %v897 = vunpack.c.l.b16 %v833
        %v898 = vunpack.c.h.b16 %v833
        %v899 = vunpack.c.l.b16 %v834
        %v900 = vunpack.c.h.b16 %v834
        %v901 = vunpack.c.l.b16 %v835
        %v902 = vunpack.c.h.b16 %v835
        %v903 = vunpack.c.l.b16 %v836
        %v904 = vunpack.c.h.b16 %v836
        %v905 = vunpack.c.l.b16 %v837
        %v906 = vunpack.c.h.b16 %v837
        %v907 = vunpack.c.l.b16 %v838
        %v908 = vunpack.c.h.b16 %v838
        %v909 = vunpack.c.l.b16 %v839
        %v910 = vunpack.c.h.b16 %v839
        %v911 = vunpack.c.l.b16 %v840
        %v912 = vunpack.c.h.b16 %v840
        %v913 = vunpack.c.l.b16 %v841
        %v914 = vunpack.c.h.b16 %v841
        %v915 = vunpack.c.l.b16 %v842
        %v916 = vunpack.c.h.b16 %v842
        %v917 = vunpack.c.l.b16 %v843
        %v918 = vunpack.c.h.b16 %v843
        %v919 = vunpack.c.l.b16 %v844
        %v920 = vunpack.c.h.b16 %v844
        %v921 = vunpack.c.l.b16 %v845
        %v922 = vunpack.c.h.b16 %v845
        %v923 = vunpack.c.l.b16 %v846
        %v924 = vunpack.c.h.b16 %v846
        %v925 = vunpack.c.l.b16 %v847
        %v926 = vunpack.c.h.b16 %v847
        %v927 = vunpack.c.l.b16 %v848
        %v928 = vunpack.c.h.b16 %v848
        %v929 = vunpack.c.l.b16 %v849
        %v930 = vunpack.c.h.b16 %v849
        %v931 = vunpack.c.l.b16 %v850
        %v932 = vunpack.c.h.b16 %v850
        %v933 = vunpack.c.l.b16 %v851
        %v934 = vunpack.c.h.b16 %v851
        %v935 = vunpack.c.l.b16 %v852
        %v936 = vunpack.c.h.b16 %v852
        %v937 = vunpack.c.l.b16 %v853
        %v938 = vunpack.c.h.b16 %v853
        %v939 = vunpack.c.l.b16 %v854
        %v940 = vunpack.c.h.b16 %v854
        %v941 = vunpack.c.l.b16 %v855
        %v942 = vunpack.c.h.b16 %v855
        %v943 = vunpack.c.l.b16 %v856
        %v944 = vunpack.c.h.b16 %v856
        %v945 = vunpack.c.l.b16 %v857
        %v946 = vunpack.c.h.b16 %v857
        %v947 = vunpack.c.l.b16 %v858
        %v948 = vunpack.c.h.b16 %v858
        %v949 = vunpack.c.l.b16 %v859
        %v950 = vunpack.c.h.b16 %v859
        %v951 = vunpack.c.l.b16 %v860
        %v952 = vunpack.c.h.b16 %v860
        %v953 = vunpack.c.l.b16 %v861
        %v954 = vunpack.c.h.b16 %v861
        %v955 = vunpack.c.l.b16 %v862
        %v956 = vunpack.c.h.b16 %v862
        %v957 = vunpack.c.l.b16 %v863
        %v958 = vunpack.c.h.b16 %v863
        %v959 = vunpack.c.l.b16 %v864
        %v960 = vunpack.c.h.b16 %v864
        %v961 = vpack.c.b16 %v901, %v897
        %v962 = vpack.c.b16 %v902, %v898
        %v963 = vpack.c.b16 %v903, %v899
        %v964 = vpack.c.b16 %v904, %v900
        %v965 = vpack.c.b16 %v909, %v905
        %v966 = vpack.c.b16 %v910, %v906
        %v967 = vpack.c.b16 %v911, %v907
        %v968 = vpack.c.b16 %v912, %v908
        %v969 = vpack.c.b16 %v917, %v913
        %v970 = vpack.c.b16 %v918, %v914
        %v971 = vpack.c.b16 %v919, %v915
        %v972 = vpack.c.b16 %v920, %v916
        %v973 = vpack.c.b16 %v925, %v921
        %v974 = vpack.c.b16 %v926, %v922
        %v975 = vpack.c.b16 %v927, %v923
        %v976 = vpack.c.b16 %v928, %v924
        %v977 = vpack.c.b16 %v933, %v929
        %v978 = vpack.c.b16 %v934, %v930
        %v979 = vpack.c.b16 %v935, %v931
        %v980 = vpack.c.b16 %v936, %v932
        %v981 = vpack.c.b16 %v941, %v937
        %v982 = vpack.c.b16 %v942, %v938
        %v983 = vpack.c.b16 %v943, %v939
        %v984 = vpack.c.b16 %v944, %v940
        %v985 = vpack.c.b16 %v949, %v945
        %v986 = vpack.c.b16 %v950, %v946
        %v987 = vpack.c.b16 %v951, %v947
        %v988 = vpack.c.b16 %v952, %v948
        %v989 = vpack.c.b16 %v957, %v953
        %v990 = vpack.c.b16 %v958, %v954
        %v991 = vpack.c.b16 %v959, %v955
        %v992 = vpack.c.b16 %v960, %v956
        %1025 = vmatpush.bf16.msra.mxu0 %v989
        %1026 = vmatpush.bf16.msra.mxu0 %v985
        %1027 = vmatpush.bf16.msra.mxu0 %v981
        %1028 = vmatpush.bf16.msra.mxu0 %v977
        %1029 = vmatpush.bf16.msra.mxu0 %v973
        %1030 = vmatpush.bf16.msra.mxu0 %v969
        %1031 = vmatpush.bf16.msra.mxu0 %v965
        %1032 = vmatpush.bf16.msra.mxu0 %v961
        %1033 = vmatmul.bf16.gmra.mxu0 %v832
        %v1034 = vpop.f32.mrf.mxu0
        %v1035 = vadd.f32 0.0, %v1034
        %v1036 = vpop.f32.mrf.mxu0
        %1037 = vdwg.mxu0
        %1038 = vmatpush.bf16.msra.mxu0 %v990
        %1039 = vmatpush.bf16.msra.mxu0 %v986
        %1040 = vmatpush.bf16.msra.mxu0 %v982
        %1041 = vmatpush.bf16.msra.mxu0 %v978
        %1042 = vmatpush.bf16.msra.mxu0 %v974
        %1043 = vmatpush.bf16.msra.mxu0 %v970
        %1044 = vmatpush.bf16.msra.mxu0 %v966
        %1045 = vmatpush.bf16.msra.mxu0 %v962
        %1046 = vmatmul.bf16.gmra.mxu0 %v832
        %v1047 = vpop.f32.mrf.mxu0
        %v1048 = vadd.f32 0.0, %v1047
        %v1049 = vpop.f32.mrf.mxu0
        %1050 = vdwg.mxu0
        %1051 = vmatpush.bf16.msra.mxu0 %v991
        %1052 = vmatpush.bf16.msra.mxu0 %v987
        %1053 = vmatpush.bf16.msra.mxu0 %v983
        %1054 = vmatpush.bf16.msra.mxu0 %v979
        %1055 = vmatpush.bf16.msra.mxu0 %v975
        %1056 = vmatpush.bf16.msra.mxu0 %v971
        %1057 = vmatpush.bf16.msra.mxu0 %v967
        %1058 = vmatpush.bf16.msra.mxu0 %v963
        %1059 = vmatmul.bf16.gmra.mxu0 %v832
        %v1060 = vpop.f32.mrf.mxu0
        %v1061 = vadd.f32 0.0, %v1060
        %v1062 = vpop.f32.mrf.mxu0
        %1063 = vdwg.mxu0
        %1064 = vmatpush.bf16.msra.mxu0 %v992
        %1065 = vmatpush.bf16.msra.mxu0 %v988
        %1066 = vmatpush.bf16.msra.mxu0 %v984
        %1067 = vmatpush.bf16.msra.mxu0 %v980
        %1068 = vmatpush.bf16.msra.mxu0 %v976
        %1069 = vmatpush.bf16.msra.mxu0 %v972
        %1070 = vmatpush.bf16.msra.mxu0 %v968
        %1071 = vmatpush.bf16.msra.mxu0 %v964
        %1072 = vmatmul.bf16.gmra.mxu0 %v832
        %v1073 = vpop.f32.mrf.mxu0
        %v1074 = vadd.f32 0.0, %v1073
        %v1075 = vpop.f32.mrf.mxu0
        %1076 = vdwg.mxu0
        %v1077 = vadd.f32 %v828, %v1035
        %v1078 = vadd.f32 %v829, %v1048
        %v1079 = vadd.f32 %v830, %v1061
        %v1080 = vadd.f32 %v831, %v1074
        %v1081 = vxor.u32 %v1077, 2147483648
        %v1082 = vmul.f32 %v1081, 1.442695
        %v1083 = vpow.pop %v1082
        %v1084 = vadd.f32 %v1083, 1.0
        %v1085 = vrcp.pop %v1084
        %v1086 = vmul.f32 %v1084, %v1085
        %v1087 = vsub.f32 1.0, %v1086
        %v1088 = vmul.f32 %v1085, %v1087
        %v1089 = vadd.f32 %v1085, %v1088
        %vm1090 = vweird.f32 %v1084
        %vm1091 = vweird.f32 %v1085
        %vm1092 = vmor %vm1090, %vm1091
        %v1093 = vsel %vm1092, %v1085, %v1089
        %v1094 = vand.u32 2147483647, %v1084
        %vm1095 = vcmp.eq.f32.partialorder %v1094, 8.507059e+37
        %v1096 = vand.u32 %v1084, 2147483648
        %v1097 = vor.u32 1.1754944e-38, %v1096
        %v1098 = vsel %vm1095, %v1097, %v1093
        %v1099 = vmul.f32 1.0, %v1098
        %v1100 = vxor.u32 %v1078, 2147483648
        %v1101 = vmul.f32 %v1100, 1.442695
        %v1102 = vpow.pop %v1101
        %v1103 = vadd.f32 %v1102, 1.0
        %v1104 = vrcp.pop %v1103
        %v1105 = vmul.f32 %v1103, %v1104
        %v1106 = vsub.f32 1.0, %v1105
        %v1107 = vmul.f32 %v1104, %v1106
        %v1108 = vadd.f32 %v1104, %v1107
        %vm1109 = vweird.f32 %v1103
        %vm1110 = vweird.f32 %v1104
        %vm1111 = vmor %vm1109, %vm1110
        %v1112 = vsel %vm1111, %v1104, %v1108
        %v1113 = vand.u32 2147483647, %v1103
        %vm1114 = vcmp.eq.f32.partialorder %v1113, 8.507059e+37
        %v1115 = vand.u32 %v1103, 2147483648
        %v1116 = vor.u32 1.1754944e-38, %v1115
        %v1117 = vsel %vm1114, %v1116, %v1112
        %v1118 = vmul.f32 1.0, %v1117
        %v1119 = vtanh.pop %v1079
        %v1120 = vxor.u32 %v1080, 2147483648
        %v1121 = vmul.f32 %v1120, 1.442695
        %v1122 = vpow.pop %v1121
        %v1123 = vadd.f32 %v1122, 1.0
        %v1124 = vrcp.pop %v1123
        %v1125 = vmul.f32 %v1123, %v1124
        %v1126 = vsub.f32 1.0, %v1125
        %v1127 = vmul.f32 %v1124, %v1126
        %v1128 = vadd.f32 %v1124, %v1127
        %vm1129 = vweird.f32 %v1123
        %vm1130 = vweird.f32 %v1124
        %vm1131 = vmor %vm1129, %vm1130
        %v1132 = vsel %vm1131, %v1124, %v1128
        %v1133 = vand.u32 2147483647, %v1123
        %vm1134 = vcmp.eq.f32.partialorder %v1133, 8.507059e+37
        %v1135 = vand.u32 %v1123, 2147483648
        %v1136 = vor.u32 1.1754944e-38, %v1135
        %v1137 = vsel %vm1134, %v1136, %v1132
        %v1138 = vmul.f32 1.0, %v1137
        %v1139 = vmul.f32 %v1118, %v825
        %v1140 = vmul.f32 %v1099, %v1119
        %v1141 = vadd.f32 %v1139, %v1140
        %v1142 = vtanh.pop %v1141
        %v1143 = vmul.f32 %v1138, %v1142
        %v1144 = vpack.c.bf16 %v1143, %v1143
        %1145 = vst [vmem:[#allocation3] sm:$0xf] %v1144
        %v1146 = vld [vmem:[#allocation3 + $0x4] sm:$0xf]
        %v1147 = vunpack.c.l.bf16 %v1146
        %v1148 = vld [vmem:[#allocation3] sm:$0xff]
        %v1150 = vunpack.c.l.b16 %v1148
        %v1151 = vunpack.c.h.b16 %v1148
        %v1152 = vpack.c.b16 %v1150, %v1150
        %v1153 = vpack.c.b16 %v1151, %v1151
        %v1284 = vunpack.c.l.b16 %v687
        %v1285 = vunpack.c.h.b16 %v687
        %v1286 = vunpack.c.l.b16 %v688
        %v1287 = vunpack.c.h.b16 %v688
        %v1288 = vunpack.c.l.b16 %v689
        %v1289 = vunpack.c.h.b16 %v689
        %v1290 = vunpack.c.l.b16 %v690
        %v1291 = vunpack.c.h.b16 %v690
        %v1292 = vunpack.c.l.b16 %v691
        %v1293 = vunpack.c.h.b16 %v691
        %v1294 = vunpack.c.l.b16 %v692
        %v1295 = vunpack.c.h.b16 %v692
        %v1296 = vunpack.c.l.b16 %v693
        %v1297 = vunpack.c.h.b16 %v693
        %v1298 = vunpack.c.l.b16 %v694
        %v1299 = vunpack.c.h.b16 %v694
        %v1300 = vunpack.c.l.b16 %v695
        %v1301 = vunpack.c.h.b16 %v695
        %v1302 = vunpack.c.l.b16 %v696
        %v1303 = vunpack.c.h.b16 %v696
        %v1304 = vunpack.c.l.b16 %v697
        %v1305 = vunpack.c.h.b16 %v697
        %v1306 = vunpack.c.l.b16 %v698
        %v1307 = vunpack.c.h.b16 %v698
        %v1308 = vunpack.c.l.b16 %v699
        %v1309 = vunpack.c.h.b16 %v699
        %v1310 = vunpack.c.l.b16 %v700
        %v1311 = vunpack.c.h.b16 %v700
        %v1312 = vunpack.c.l.b16 %v701
        %v1313 = vunpack.c.h.b16 %v701
        %v1314 = vunpack.c.l.b16 %v702
        %v1315 = vunpack.c.h.b16 %v702
        %v1316 = vunpack.c.l.b16 %v703
        %v1317 = vunpack.c.h.b16 %v703
        %v1318 = vunpack.c.l.b16 %v704
        %v1319 = vunpack.c.h.b16 %v704
        %v1320 = vunpack.c.l.b16 %v705
        %v1321 = vunpack.c.h.b16 %v705
        %v1322 = vunpack.c.l.b16 %v706
        %v1323 = vunpack.c.h.b16 %v706
        %v1324 = vunpack.c.l.b16 %v707
        %v1325 = vunpack.c.h.b16 %v707
        %v1326 = vunpack.c.l.b16 %v708
        %v1327 = vunpack.c.h.b16 %v708
        %v1328 = vunpack.c.l.b16 %v709
        %v1329 = vunpack.c.h.b16 %v709
        %v1330 = vunpack.c.l.b16 %v710
        %v1331 = vunpack.c.h.b16 %v710
        %v1332 = vunpack.c.l.b16 %v711
        %v1333 = vunpack.c.h.b16 %v711
        %v1334 = vunpack.c.l.b16 %v712
        %v1335 = vunpack.c.h.b16 %v712
        %v1336 = vunpack.c.l.b16 %v713
        %v1337 = vunpack.c.h.b16 %v713
        %v1338 = vunpack.c.l.b16 %v714
        %v1339 = vunpack.c.h.b16 %v714
        %v1340 = vunpack.c.l.b16 %v715
        %v1341 = vunpack.c.h.b16 %v715
        %v1342 = vunpack.c.l.b16 %v716
        %v1343 = vunpack.c.h.b16 %v716
        %v1344 = vunpack.c.l.b16 %v717
        %v1345 = vunpack.c.h.b16 %v717
        %v1346 = vunpack.c.l.b16 %v718
        %v1347 = vunpack.c.h.b16 %v718
        %v1348 = vunpack.c.l.b16 %v719
        %v1349 = vunpack.c.h.b16 %v719
        %v1350 = vunpack.c.l.b16 %v720
        %v1351 = vunpack.c.h.b16 %v720
        %v1352 = vunpack.c.l.b16 %v721
        %v1353 = vunpack.c.h.b16 %v721
        %v1354 = vunpack.c.l.b16 %v722
        %v1355 = vunpack.c.h.b16 %v722
        %v1356 = vunpack.c.l.b16 %v723
        %v1357 = vunpack.c.h.b16 %v723
        %v1358 = vunpack.c.l.b16 %v724
        %v1359 = vunpack.c.h.b16 %v724
        %v1360 = vunpack.c.l.b16 %v725
        %v1361 = vunpack.c.h.b16 %v725
        %v1362 = vunpack.c.l.b16 %v726
        %v1363 = vunpack.c.h.b16 %v726
        %v1364 = vunpack.c.l.b16 %v727
        %v1365 = vunpack.c.h.b16 %v727
        %v1366 = vunpack.c.l.b16 %v728
        %v1367 = vunpack.c.h.b16 %v728
        %v1368 = vunpack.c.l.b16 %v729
        %v1369 = vunpack.c.h.b16 %v729
        %v1370 = vunpack.c.l.b16 %v730
        %v1371 = vunpack.c.h.b16 %v730
        %v1372 = vunpack.c.l.b16 %v731
        %v1373 = vunpack.c.h.b16 %v731
        %v1374 = vunpack.c.l.b16 %v732
        %v1375 = vunpack.c.h.b16 %v732
        %v1376 = vunpack.c.l.b16 %v733
        %v1377 = vunpack.c.h.b16 %v733
        %v1378 = vunpack.c.l.b16 %v734
        %v1379 = vunpack.c.h.b16 %v734
        %v1380 = vunpack.c.l.b16 %v735
        %v1381 = vunpack.c.h.b16 %v735
        %v1382 = vunpack.c.l.b16 %v736
        %v1383 = vunpack.c.h.b16 %v736
        %v1384 = vunpack.c.l.b16 %v737
        %v1385 = vunpack.c.h.b16 %v737
        %v1386 = vunpack.c.l.b16 %v738
        %v1387 = vunpack.c.h.b16 %v738
        %v1388 = vunpack.c.l.b16 %v739
        %v1389 = vunpack.c.h.b16 %v739
        %v1390 = vunpack.c.l.b16 %v740
        %v1391 = vunpack.c.h.b16 %v740
        %v1392 = vunpack.c.l.b16 %v741
        %v1393 = vunpack.c.h.b16 %v741
        %v1394 = vunpack.c.l.b16 %v742
        %v1395 = vunpack.c.h.b16 %v742
        %v1396 = vunpack.c.l.b16 %v743
        %v1397 = vunpack.c.h.b16 %v743
        %v1398 = vunpack.c.l.b16 %v744
        %v1399 = vunpack.c.h.b16 %v744
        %v1400 = vunpack.c.l.b16 %v745
        %v1401 = vunpack.c.h.b16 %v745
        %v1402 = vunpack.c.l.b16 %v746
        %v1403 = vunpack.c.h.b16 %v746
        %v1404 = vunpack.c.l.b16 %v747
        %v1405 = vunpack.c.h.b16 %v747
        %v1406 = vunpack.c.l.b16 %v748
        %v1407 = vunpack.c.h.b16 %v748
        %v1408 = vunpack.c.l.b16 %v749
        %v1409 = vunpack.c.h.b16 %v749
        %v1410 = vunpack.c.l.b16 %v750
        %v1411 = vunpack.c.h.b16 %v750
        %v1412 = vunpack.c.l.b16 %v751
        %v1413 = vunpack.c.h.b16 %v751
        %v1414 = vunpack.c.l.b16 %v752
        %v1415 = vunpack.c.h.b16 %v752
        %v1416 = vunpack.c.l.b16 %v753
        %v1417 = vunpack.c.h.b16 %v753
        %v1418 = vunpack.c.l.b16 %v754
        %v1419 = vunpack.c.h.b16 %v754
        %v1420 = vunpack.c.l.b16 %v755
        %v1421 = vunpack.c.h.b16 %v755
        %v1422 = vunpack.c.l.b16 %v756
        %v1423 = vunpack.c.h.b16 %v756
        %v1424 = vunpack.c.l.b16 %v757
        %v1425 = vunpack.c.h.b16 %v757
        %v1426 = vunpack.c.l.b16 %v758
        %v1427 = vunpack.c.h.b16 %v758
        %v1428 = vunpack.c.l.b16 %v759
        %v1429 = vunpack.c.h.b16 %v759
        %v1430 = vunpack.c.l.b16 %v760
        %v1431 = vunpack.c.h.b16 %v760
        %v1432 = vunpack.c.l.b16 %v761
        %v1433 = vunpack.c.h.b16 %v761
        %v1434 = vunpack.c.l.b16 %v762
        %v1435 = vunpack.c.h.b16 %v762
        %v1436 = vunpack.c.l.b16 %v763
        %v1437 = vunpack.c.h.b16 %v763
        %v1438 = vunpack.c.l.b16 %v764
        %v1439 = vunpack.c.h.b16 %v764
        %v1440 = vunpack.c.l.b16 %v765
        %v1441 = vunpack.c.h.b16 %v765
        %v1442 = vunpack.c.l.b16 %v766
        %v1443 = vunpack.c.h.b16 %v766
        %v1444 = vunpack.c.l.b16 %v767
        %v1445 = vunpack.c.h.b16 %v767
        %v1446 = vunpack.c.l.b16 %v768
        %v1447 = vunpack.c.h.b16 %v768
        %v1448 = vunpack.c.l.b16 %v769
        %v1449 = vunpack.c.h.b16 %v769
        %v1450 = vunpack.c.l.b16 %v770
        %v1451 = vunpack.c.h.b16 %v770
        %v1452 = vunpack.c.l.b16 %v771
        %v1453 = vunpack.c.h.b16 %v771
        %v1454 = vunpack.c.l.b16 %v772
        %v1455 = vunpack.c.h.b16 %v772
        %v1456 = vunpack.c.l.b16 %v773
        %v1457 = vunpack.c.h.b16 %v773
        %v1458 = vunpack.c.l.b16 %v774
        %v1459 = vunpack.c.h.b16 %v774
        %v1460 = vunpack.c.l.b16 %v775
        %v1461 = vunpack.c.h.b16 %v775
        %v1462 = vunpack.c.l.b16 %v776
        %v1463 = vunpack.c.h.b16 %v776
        %v1464 = vunpack.c.l.b16 %v777
        %v1465 = vunpack.c.h.b16 %v777
        %v1466 = vunpack.c.l.b16 %v778
        %v1467 = vunpack.c.h.b16 %v778
        %v1468 = vunpack.c.l.b16 %v779
        %v1469 = vunpack.c.h.b16 %v779
        %v1470 = vunpack.c.l.b16 %v780
        %v1471 = vunpack.c.h.b16 %v780
        %v1472 = vunpack.c.l.b16 %v781
        %v1473 = vunpack.c.h.b16 %v781
        %v1474 = vunpack.c.l.b16 %v782
        %v1475 = vunpack.c.h.b16 %v782
        %v1476 = vunpack.c.l.b16 %v783
        %v1477 = vunpack.c.h.b16 %v783
        %v1478 = vunpack.c.l.b16 %v784
        %v1479 = vunpack.c.h.b16 %v784
        %v1480 = vunpack.c.l.b16 %v785
        %v1481 = vunpack.c.h.b16 %v785
        %v1482 = vunpack.c.l.b16 %v786
        %v1483 = vunpack.c.h.b16 %v786
        %v1484 = vunpack.c.l.b16 %v787
        %v1485 = vunpack.c.h.b16 %v787
        %v1486 = vunpack.c.l.b16 %v788
        %v1487 = vunpack.c.h.b16 %v788
        %v1488 = vunpack.c.l.b16 %v789
        %v1489 = vunpack.c.h.b16 %v789
        %v1490 = vunpack.c.l.b16 %v790
        %v1491 = vunpack.c.h.b16 %v790
        %v1492 = vunpack.c.l.b16 %v791
        %v1493 = vunpack.c.h.b16 %v791
        %v1494 = vunpack.c.l.b16 %v792
        %v1495 = vunpack.c.h.b16 %v792
        %v1496 = vunpack.c.l.b16 %v793
        %v1497 = vunpack.c.h.b16 %v793
        %v1498 = vunpack.c.l.b16 %v794
        %v1499 = vunpack.c.h.b16 %v794
        %v1500 = vunpack.c.l.b16 %v795
        %v1501 = vunpack.c.h.b16 %v795
        %v1502 = vunpack.c.l.b16 %v796
        %v1503 = vunpack.c.h.b16 %v796
        %v1504 = vunpack.c.l.b16 %v797
        %v1505 = vunpack.c.h.b16 %v797
        %v1506 = vunpack.c.l.b16 %v798
        %v1507 = vunpack.c.h.b16 %v798
        %v1508 = vunpack.c.l.b16 %v799
        %v1509 = vunpack.c.h.b16 %v799
        %v1510 = vunpack.c.l.b16 %v800
        %v1511 = vunpack.c.h.b16 %v800
        %v1512 = vunpack.c.l.b16 %v801
        %v1513 = vunpack.c.h.b16 %v801
        %v1514 = vunpack.c.l.b16 %v802
        %v1515 = vunpack.c.h.b16 %v802
        %v1516 = vunpack.c.l.b16 %v803
        %v1517 = vunpack.c.h.b16 %v803
        %v1518 = vunpack.c.l.b16 %v804
        %v1519 = vunpack.c.h.b16 %v804
        %v1520 = vunpack.c.l.b16 %v805
        %v1521 = vunpack.c.h.b16 %v805
        %v1522 = vunpack.c.l.b16 %v806
        %v1523 = vunpack.c.h.b16 %v806
        %v1524 = vunpack.c.l.b16 %v807
        %v1525 = vunpack.c.h.b16 %v807
        %v1526 = vunpack.c.l.b16 %v808
        %v1527 = vunpack.c.h.b16 %v808
        %v1528 = vunpack.c.l.b16 %v809
        %v1529 = vunpack.c.h.b16 %v809
        %v1530 = vunpack.c.l.b16 %v810
        %v1531 = vunpack.c.h.b16 %v810
        %v1532 = vunpack.c.l.b16 %v811
        %v1533 = vunpack.c.h.b16 %v811
        %v1534 = vunpack.c.l.b16 %v812
        %v1535 = vunpack.c.h.b16 %v812
        %v1536 = vunpack.c.l.b16 %v813
        %v1537 = vunpack.c.h.b16 %v813
        %v1538 = vunpack.c.l.b16 %v814
        %v1539 = vunpack.c.h.b16 %v814
        %v1540 = vpack.c.b16 %v1292, %v1284
        %v1541 = vpack.c.b16 %v1293, %v1285
        %v1542 = vpack.c.b16 %v1294, %v1286
        %v1543 = vpack.c.b16 %v1295, %v1287
        %v1544 = vpack.c.b16 %v1296, %v1288
        %v1545 = vpack.c.b16 %v1297, %v1289
        %v1546 = vpack.c.b16 %v1298, %v1290
        %v1547 = vpack.c.b16 %v1299, %v1291
        %v1548 = vpack.c.b16 %v1308, %v1300
        %v1549 = vpack.c.b16 %v1309, %v1301
        %v1550 = vpack.c.b16 %v1310, %v1302
        %v1551 = vpack.c.b16 %v1311, %v1303
        %v1552 = vpack.c.b16 %v1312, %v1304
        %v1553 = vpack.c.b16 %v1313, %v1305
        %v1554 = vpack.c.b16 %v1314, %v1306
        %v1555 = vpack.c.b16 %v1315, %v1307
        %v1556 = vpack.c.b16 %v1324, %v1316
        %v1557 = vpack.c.b16 %v1325, %v1317
        %v1558 = vpack.c.b16 %v1326, %v1318
        %v1559 = vpack.c.b16 %v1327, %v1319
        %v1560 = vpack.c.b16 %v1328, %v1320
        %v1561 = vpack.c.b16 %v1329, %v1321
        %v1562 = vpack.c.b16 %v1330, %v1322
        %v1563 = vpack.c.b16 %v1331, %v1323
        %v1564 = vpack.c.b16 %v1340, %v1332
        %v1565 = vpack.c.b16 %v1341, %v1333
        %v1566 = vpack.c.b16 %v1342, %v1334
        %v1567 = vpack.c.b16 %v1343, %v1335
        %v1568 = vpack.c.b16 %v1344, %v1336
        %v1569 = vpack.c.b16 %v1345, %v1337
        %v1570 = vpack.c.b16 %v1346, %v1338
        %v1571 = vpack.c.b16 %v1347, %v1339
        %v1572 = vpack.c.b16 %v1356, %v1348
        %v1573 = vpack.c.b16 %v1357, %v1349
        %v1574 = vpack.c.b16 %v1358, %v1350
        %v1575 = vpack.c.b16 %v1359, %v1351
        %v1576 = vpack.c.b16 %v1360, %v1352
        %v1577 = vpack.c.b16 %v1361, %v1353
        %v1578 = vpack.c.b16 %v1362, %v1354
        %v1579 = vpack.c.b16 %v1363, %v1355
        %v1580 = vpack.c.b16 %v1372, %v1364
        %v1581 = vpack.c.b16 %v1373, %v1365
        %v1582 = vpack.c.b16 %v1374, %v1366
        %v1583 = vpack.c.b16 %v1375, %v1367
        %v1584 = vpack.c.b16 %v1376, %v1368
        %v1585 = vpack.c.b16 %v1377, %v1369
        %v1586 = vpack.c.b16 %v1378, %v1370
        %v1587 = vpack.c.b16 %v1379, %v1371
        %v1588 = vpack.c.b16 %v1388, %v1380
        %v1589 = vpack.c.b16 %v1389, %v1381
        %v1590 = vpack.c.b16 %v1390, %v1382
        %v1591 = vpack.c.b16 %v1391, %v1383
        %v1592 = vpack.c.b16 %v1392, %v1384
        %v1593 = vpack.c.b16 %v1393, %v1385
        %v1594 = vpack.c.b16 %v1394, %v1386
        %v1595 = vpack.c.b16 %v1395, %v1387
        %v1596 = vpack.c.b16 %v1404, %v1396
        %v1597 = vpack.c.b16 %v1405, %v1397
        %v1598 = vpack.c.b16 %v1406, %v1398
        %v1599 = vpack.c.b16 %v1407, %v1399
        %v1600 = vpack.c.b16 %v1408, %v1400
        %v1601 = vpack.c.b16 %v1409, %v1401
        %v1602 = vpack.c.b16 %v1410, %v1402
        %v1603 = vpack.c.b16 %v1411, %v1403
        %v1604 = vpack.c.b16 %v1420, %v1412
        %v1605 = vpack.c.b16 %v1421, %v1413
        %v1606 = vpack.c.b16 %v1422, %v1414
        %v1607 = vpack.c.b16 %v1423, %v1415
        %v1608 = vpack.c.b16 %v1424, %v1416
        %v1609 = vpack.c.b16 %v1425, %v1417
        %v1610 = vpack.c.b16 %v1426, %v1418
        %v1611 = vpack.c.b16 %v1427, %v1419
        %v1612 = vpack.c.b16 %v1436, %v1428
        %v1613 = vpack.c.b16 %v1437, %v1429
        %v1614 = vpack.c.b16 %v1438, %v1430
        %v1615 = vpack.c.b16 %v1439, %v1431
        %v1616 = vpack.c.b16 %v1440, %v1432
        %v1617 = vpack.c.b16 %v1441, %v1433
        %v1618 = vpack.c.b16 %v1442, %v1434
        %v1619 = vpack.c.b16 %v1443, %v1435
        %v1620 = vpack.c.b16 %v1452, %v1444
        %v1621 = vpack.c.b16 %v1453, %v1445
        %v1622 = vpack.c.b16 %v1454, %v1446
        %v1623 = vpack.c.b16 %v1455, %v1447
        %v1624 = vpack.c.b16 %v1456, %v1448
        %v1625 = vpack.c.b16 %v1457, %v1449
        %v1626 = vpack.c.b16 %v1458, %v1450
        %v1627 = vpack.c.b16 %v1459, %v1451
        %v1628 = vpack.c.b16 %v1468, %v1460
        %v1629 = vpack.c.b16 %v1469, %v1461
        %v1630 = vpack.c.b16 %v1470, %v1462
        %v1631 = vpack.c.b16 %v1471, %v1463
        %v1632 = vpack.c.b16 %v1472, %v1464
        %v1633 = vpack.c.b16 %v1473, %v1465
        %v1634 = vpack.c.b16 %v1474, %v1466
        %v1635 = vpack.c.b16 %v1475, %v1467
        %v1636 = vpack.c.b16 %v1484, %v1476
        %v1637 = vpack.c.b16 %v1485, %v1477
        %v1638 = vpack.c.b16 %v1486, %v1478
        %v1639 = vpack.c.b16 %v1487, %v1479
        %v1640 = vpack.c.b16 %v1488, %v1480
        %v1641 = vpack.c.b16 %v1489, %v1481
        %v1642 = vpack.c.b16 %v1490, %v1482
        %v1643 = vpack.c.b16 %v1491, %v1483
        %v1644 = vpack.c.b16 %v1500, %v1492
        %v1645 = vpack.c.b16 %v1501, %v1493
        %v1646 = vpack.c.b16 %v1502, %v1494
        %v1647 = vpack.c.b16 %v1503, %v1495
        %v1648 = vpack.c.b16 %v1504, %v1496
        %v1649 = vpack.c.b16 %v1505, %v1497
        %v1650 = vpack.c.b16 %v1506, %v1498
        %v1651 = vpack.c.b16 %v1507, %v1499
        %v1652 = vpack.c.b16 %v1516, %v1508
        %v1653 = vpack.c.b16 %v1517, %v1509
        %v1654 = vpack.c.b16 %v1518, %v1510
        %v1655 = vpack.c.b16 %v1519, %v1511
        %v1656 = vpack.c.b16 %v1520, %v1512
        %v1657 = vpack.c.b16 %v1521, %v1513
        %v1658 = vpack.c.b16 %v1522, %v1514
        %v1659 = vpack.c.b16 %v1523, %v1515
        %v1660 = vpack.c.b16 %v1532, %v1524
        %v1661 = vpack.c.b16 %v1533, %v1525
        %v1662 = vpack.c.b16 %v1534, %v1526
        %v1663 = vpack.c.b16 %v1535, %v1527
        %v1664 = vpack.c.b16 %v1536, %v1528
        %v1665 = vpack.c.b16 %v1537, %v1529
        %v1666 = vpack.c.b16 %v1538, %v1530
        %v1667 = vpack.c.b16 %v1539, %v1531
        %1796 = vmatpush.bf16.msra.mxu0 %v1596
        %1797 = vmatpush.bf16.msra.mxu0 %v1588
        %1798 = vmatpush.bf16.msra.mxu0 %v1580
        %1799 = vmatpush.bf16.msra.mxu0 %v1572
        %1800 = vmatpush.bf16.msra.mxu0 %v1564
        %1801 = vmatpush.bf16.msra.mxu0 %v1556
        %1802 = vmatpush.bf16.msra.mxu0 %v1548
        %1803 = vmatpush.bf16.msra.mxu0 %v1540
        %1804 = vmatmul.bf16.gmra.mxu0 %v1152
        %v1805 = vpop.f32.mrf.mxu0
        %v1806 = vadd.f32 0.0, %v1805
        %v1807 = vpop.f32.mrf.mxu0
        %1808 = vdwg.mxu0
        %1809 = vmatpush.bf16.msra.mxu0 %v1660
        %1810 = vmatpush.bf16.msra.mxu0 %v1652
        %1811 = vmatpush.bf16.msra.mxu0 %v1644
        %1812 = vmatpush.bf16.msra.mxu0 %v1636
        %1813 = vmatpush.bf16.msra.mxu0 %v1628
        %1814 = vmatpush.bf16.msra.mxu0 %v1620
        %1815 = vmatpush.bf16.msra.mxu0 %v1612
        %1816 = vmatpush.bf16.msra.mxu0 %v1604
        %1817 = vmatmul.bf16.gmra.mxu0 %v1153
        %v1818 = vpop.f32.mrf.mxu0
        %v1819 = vadd.f32 %v1806, %v1818
        %v1820 = vpop.f32.mrf.mxu0
        %1821 = vdwg.mxu0
        %1822 = vmatpush.bf16.msra.mxu0 %v1597
        %1823 = vmatpush.bf16.msra.mxu0 %v1589
        %1824 = vmatpush.bf16.msra.mxu0 %v1581
        %1825 = vmatpush.bf16.msra.mxu0 %v1573
        %1826 = vmatpush.bf16.msra.mxu0 %v1565
        %1827 = vmatpush.bf16.msra.mxu0 %v1557
        %1828 = vmatpush.bf16.msra.mxu0 %v1549
        %1829 = vmatpush.bf16.msra.mxu0 %v1541
        %1830 = vmatmul.bf16.gmra.mxu0 %v1152
        %v1831 = vpop.f32.mrf.mxu0
        %v1832 = vadd.f32 0.0, %v1831
        %v1833 = vpop.f32.mrf.mxu0
        %1834 = vdwg.mxu0
        %1835 = vmatpush.bf16.msra.mxu0 %v1661
        %1836 = vmatpush.bf16.msra.mxu0 %v1653
        %1837 = vmatpush.bf16.msra.mxu0 %v1645
        %1838 = vmatpush.bf16.msra.mxu0 %v1637
        %1839 = vmatpush.bf16.msra.mxu0 %v1629
        %1840 = vmatpush.bf16.msra.mxu0 %v1621
        %1841 = vmatpush.bf16.msra.mxu0 %v1613
        %1842 = vmatpush.bf16.msra.mxu0 %v1605
        %1843 = vmatmul.bf16.gmra.mxu0 %v1153
        %v1844 = vpop.f32.mrf.mxu0
        %v1845 = vadd.f32 %v1832, %v1844
        %v1846 = vpop.f32.mrf.mxu0
        %1847 = vdwg.mxu0
        %1848 = vmatpush.bf16.msra.mxu0 %v1598
        %1849 = vmatpush.bf16.msra.mxu0 %v1590
        %1850 = vmatpush.bf16.msra.mxu0 %v1582
        %1851 = vmatpush.bf16.msra.mxu0 %v1574
        %1852 = vmatpush.bf16.msra.mxu0 %v1566
        %1853 = vmatpush.bf16.msra.mxu0 %v1558
        %1854 = vmatpush.bf16.msra.mxu0 %v1550
        %1855 = vmatpush.bf16.msra.mxu0 %v1542
        %1856 = vmatmul.bf16.gmra.mxu0 %v1152
        %v1857 = vpop.f32.mrf.mxu0
        %v1858 = vadd.f32 0.0, %v1857
        %v1859 = vpop.f32.mrf.mxu0
        %1860 = vdwg.mxu0
        %1861 = vmatpush.bf16.msra.mxu0 %v1662
        %1862 = vmatpush.bf16.msra.mxu0 %v1654
        %1863 = vmatpush.bf16.msra.mxu0 %v1646
        %1864 = vmatpush.bf16.msra.mxu0 %v1638
        %1865 = vmatpush.bf16.msra.mxu0 %v1630
        %1866 = vmatpush.bf16.msra.mxu0 %v1622
        %1867 = vmatpush.bf16.msra.mxu0 %v1614
        %1868 = vmatpush.bf16.msra.mxu0 %v1606
        %1869 = vmatmul.bf16.gmra.mxu0 %v1153
        %v1870 = vpop.f32.mrf.mxu0
        %v1871 = vadd.f32 %v1858, %v1870
        %v1872 = vpop.f32.mrf.mxu0
        %1873 = vdwg.mxu0
        %1874 = vmatpush.bf16.msra.mxu0 %v1599
        %1875 = vmatpush.bf16.msra.mxu0 %v1591
        %1876 = vmatpush.bf16.msra.mxu0 %v1583
        %1877 = vmatpush.bf16.msra.mxu0 %v1575
        %1878 = vmatpush.bf16.msra.mxu0 %v1567
        %1879 = vmatpush.bf16.msra.mxu0 %v1559
        %1880 = vmatpush.bf16.msra.mxu0 %v1551
        %1881 = vmatpush.bf16.msra.mxu0 %v1543
        %1882 = vmatmul.bf16.gmra.mxu0 %v1152
        %v1883 = vpop.f32.mrf.mxu0
        %v1884 = vadd.f32 0.0, %v1883
        %v1885 = vpop.f32.mrf.mxu0
        %1886 = vdwg.mxu0
        %1887 = vmatpush.bf16.msra.mxu0 %v1663
        %1888 = vmatpush.bf16.msra.mxu0 %v1655
        %1889 = vmatpush.bf16.msra.mxu0 %v1647
        %1890 = vmatpush.bf16.msra.mxu0 %v1639
        %1891 = vmatpush.bf16.msra.mxu0 %v1631
        %1892 = vmatpush.bf16.msra.mxu0 %v1623
        %1893 = vmatpush.bf16.msra.mxu0 %v1615
        %1894 = vmatpush.bf16.msra.mxu0 %v1607
        %1895 = vmatmul.bf16.gmra.mxu0 %v1153
        %v1896 = vpop.f32.mrf.mxu0
        %v1897 = vadd.f32 %v1884, %v1896
        %v1898 = vpop.f32.mrf.mxu0
        %1899 = vdwg.mxu0
        %1900 = vmatpush.bf16.msra.mxu0 %v1600
        %1901 = vmatpush.bf16.msra.mxu0 %v1592
        %1902 = vmatpush.bf16.msra.mxu0 %v1584
        %1903 = vmatpush.bf16.msra.mxu0 %v1576
        %1904 = vmatpush.bf16.msra.mxu0 %v1568
        %1905 = vmatpush.bf16.msra.mxu0 %v1560
        %1906 = vmatpush.bf16.msra.mxu0 %v1552
        %1907 = vmatpush.bf16.msra.mxu0 %v1544
        %1908 = vmatmul.bf16.gmra.mxu0 %v1152
        %v1909 = vpop.f32.mrf.mxu0
        %v1910 = vadd.f32 0.0, %v1909
        %v1911 = vpop.f32.mrf.mxu0
        %1912 = vdwg.mxu0
        %1913 = vmatpush.bf16.msra.mxu0 %v1664
        %1914 = vmatpush.bf16.msra.mxu0 %v1656
        %1915 = vmatpush.bf16.msra.mxu0 %v1648
        %1916 = vmatpush.bf16.msra.mxu0 %v1640
        %1917 = vmatpush.bf16.msra.mxu0 %v1632
        %1918 = vmatpush.bf16.msra.mxu0 %v1624
        %1919 = vmatpush.bf16.msra.mxu0 %v1616
        %1920 = vmatpush.bf16.msra.mxu0 %v1608
        %1921 = vmatmul.bf16.gmra.mxu0 %v1153
        %v1922 = vpop.f32.mrf.mxu0
        %v1923 = vadd.f32 %v1910, %v1922
        %v1924 = vpop.f32.mrf.mxu0
        %1925 = vdwg.mxu0
        %1926 = vmatpush.bf16.msra.mxu0 %v1601
        %1927 = vmatpush.bf16.msra.mxu0 %v1593
        %1928 = vmatpush.bf16.msra.mxu0 %v1585
        %1929 = vmatpush.bf16.msra.mxu0 %v1577
        %1930 = vmatpush.bf16.msra.mxu0 %v1569
        %1931 = vmatpush.bf16.msra.mxu0 %v1561
        %1932 = vmatpush.bf16.msra.mxu0 %v1553
        %1933 = vmatpush.bf16.msra.mxu0 %v1545
        %1934 = vmatmul.bf16.gmra.mxu0 %v1152
        %v1935 = vpop.f32.mrf.mxu0
        %v1936 = vadd.f32 0.0, %v1935
        %v1937 = vpop.f32.mrf.mxu0
        %1938 = vdwg.mxu0
        %1939 = vmatpush.bf16.msra.mxu0 %v1665
        %1940 = vmatpush.bf16.msra.mxu0 %v1657
        %1941 = vmatpush.bf16.msra.mxu0 %v1649
        %1942 = vmatpush.bf16.msra.mxu0 %v1641
        %1943 = vmatpush.bf16.msra.mxu0 %v1633
        %1944 = vmatpush.bf16.msra.mxu0 %v1625
        %1945 = vmatpush.bf16.msra.mxu0 %v1617
        %1946 = vmatpush.bf16.msra.mxu0 %v1609
        %1947 = vmatmul.bf16.gmra.mxu0 %v1153
        %v1948 = vpop.f32.mrf.mxu0
        %v1949 = vadd.f32 %v1936, %v1948
        %v1950 = vpop.f32.mrf.mxu0
        %1951 = vdwg.mxu0
        %1952 = vmatpush.bf16.msra.mxu0 %v1602
        %1953 = vmatpush.bf16.msra.mxu0 %v1594
        %1954 = vmatpush.bf16.msra.mxu0 %v1586
        %1955 = vmatpush.bf16.msra.mxu0 %v1578
        %1956 = vmatpush.bf16.msra.mxu0 %v1570
        %1957 = vmatpush.bf16.msra.mxu0 %v1562
        %1958 = vmatpush.bf16.msra.mxu0 %v1554
        %1959 = vmatpush.bf16.msra.mxu0 %v1546
        %1960 = vmatmul.bf16.gmra.mxu0 %v1152
        %v1961 = vpop.f32.mrf.mxu0
        %v1962 = vadd.f32 0.0, %v1961
        %v1963 = vpop.f32.mrf.mxu0
        %1964 = vdwg.mxu0
        %1965 = vmatpush.bf16.msra.mxu0 %v1666
        %1966 = vmatpush.bf16.msra.mxu0 %v1658
        %1967 = vmatpush.bf16.msra.mxu0 %v1650
        %1968 = vmatpush.bf16.msra.mxu0 %v1642
        %1969 = vmatpush.bf16.msra.mxu0 %v1634
        %1970 = vmatpush.bf16.msra.mxu0 %v1626
        %1971 = vmatpush.bf16.msra.mxu0 %v1618
        %1972 = vmatpush.bf16.msra.mxu0 %v1610
        %1973 = vmatmul.bf16.gmra.mxu0 %v1153
        %v1974 = vpop.f32.mrf.mxu0
        %v1975 = vadd.f32 %v1962, %v1974
        %v1976 = vpop.f32.mrf.mxu0
        %1977 = vdwg.mxu0
        %1978 = vmatpush.bf16.msra.mxu0 %v1603
        %1979 = vmatpush.bf16.msra.mxu0 %v1595
        %1980 = vmatpush.bf16.msra.mxu0 %v1587
        %1981 = vmatpush.bf16.msra.mxu0 %v1579
        %1982 = vmatpush.bf16.msra.mxu0 %v1571
        %1983 = vmatpush.bf16.msra.mxu0 %v1563
        %1984 = vmatpush.bf16.msra.mxu0 %v1555
        %1985 = vmatpush.bf16.msra.mxu0 %v1547
        %1986 = vmatmul.bf16.gmra.mxu0 %v1152
        %v1987 = vpop.f32.mrf.mxu0
        %v1988 = vadd.f32 0.0, %v1987
        %v1989 = vpop.f32.mrf.mxu0
        %1990 = vdwg.mxu0
        %1991 = vmatpush.bf16.msra.mxu0 %v1667
        %1992 = vmatpush.bf16.msra.mxu0 %v1659
        %1993 = vmatpush.bf16.msra.mxu0 %v1651
        %1994 = vmatpush.bf16.msra.mxu0 %v1643
        %1995 = vmatpush.bf16.msra.mxu0 %v1635
        %1996 = vmatpush.bf16.msra.mxu0 %v1627
        %1997 = vmatpush.bf16.msra.mxu0 %v1619
        %1998 = vmatpush.bf16.msra.mxu0 %v1611
        %1999 = vmatmul.bf16.gmra.mxu0 %v1153
        %v2000 = vpop.f32.mrf.mxu0
        %v2001 = vadd.f32 %v1988, %v2000
        %v2002 = vpop.f32.mrf.mxu0
        %2003 = vdwg.mxu0
        %p2004 = scmp.lt.s32.totalorder %s297, 13
        %s2005 = sadd.s32 %s297, 1
        %p2006 = scmp.lt.s32.totalorder %s2005, 13
        %v2007 = vadd.f32 %v1923, %v817
        %v2008 = vadd.f32 %v1949, %v818
        %v2009 = vadd.f32 %v1975, %v819
        %v2010 = vadd.f32 %v2001, %v820
        %v2011 = vxor.u32 %v2007, 2147483648
        %v2012 = vmul.f32 %v2011, 1.442695
        %v2013 = vpow.pop %v2012
        %v2014 = vadd.f32 %v2013, 1.0
        %v2015 = vrcp.pop %v2014
        %v2016 = vmul.f32 %v2014, %v2015
        %v2017 = vsub.f32 1.0, %v2016
        %v2018 = vmul.f32 %v2015, %v2017
        %v2019 = vadd.f32 %v2015, %v2018
        %vm2020 = vweird.f32 %v2014
        %vm2021 = vweird.f32 %v2015
        %vm2022 = vmor %vm2020, %vm2021
        %v2023 = vsel %vm2022, %v2015, %v2019
        %v2024 = vand.u32 2147483647, %v2014
        %vm2025 = vcmp.eq.f32.partialorder %v2024, 8.507059e+37
        %v2026 = vand.u32 %v2014, 2147483648
        %v2027 = vor.u32 1.1754944e-38, %v2026
        %v2028 = vsel %vm2025, %v2027, %v2023
        %v2029 = vmul.f32 1.0, %v2028
        %v2030 = vxor.u32 %v2008, 2147483648
        %v2031 = vmul.f32 %v2030, 1.442695
        %v2032 = vpow.pop %v2031
        %v2033 = vadd.f32 %v2032, 1.0
        %v2034 = vrcp.pop %v2033
        %v2035 = vmul.f32 %v2033, %v2034
        %v2036 = vsub.f32 1.0, %v2035
        %v2037 = vmul.f32 %v2034, %v2036
        %v2038 = vadd.f32 %v2034, %v2037
        %vm2039 = vweird.f32 %v2033
        %vm2040 = vweird.f32 %v2034
        %vm2041 = vmor %vm2039, %vm2040
        %v2042 = vsel %vm2041, %v2034, %v2038
        %v2043 = vand.u32 2147483647, %v2033
        %vm2044 = vcmp.eq.f32.partialorder %v2043, 8.507059e+37
        %v2045 = vand.u32 %v2033, 2147483648
        %v2046 = vor.u32 1.1754944e-38, %v2045
        %v2047 = vsel %vm2044, %v2046, %v2042
        %v2048 = vmul.f32 1.0, %v2047
        %v2049 = vtanh.pop %v2009
        %v2050 = vxor.u32 %v2010, 2147483648
        %v2051 = vmul.f32 %v2050, 1.442695
        %v2052 = vpow.pop %v2051
        %v2053 = vadd.f32 %v2052, 1.0
        %v2054 = vrcp.pop %v2053
        %v2055 = vmul.f32 %v2053, %v2054
        %v2056 = vsub.f32 1.0, %v2055
        %v2057 = vmul.f32 %v2054, %v2056
        %v2058 = vadd.f32 %v2054, %v2057
        %vm2059 = vweird.f32 %v2053
        %vm2060 = vweird.f32 %v2054
        %vm2061 = vmor %vm2059, %vm2060
        %v2062 = vsel %vm2061, %v2054, %v2058
        %v2063 = vand.u32 2147483647, %v2053
        %vm2064 = vcmp.eq.f32.partialorder %v2063, 8.507059e+37
        %v2065 = vand.u32 %v2053, 2147483648
        %v2066 = vor.u32 1.1754944e-38, %v2065
        %v2067 = vsel %vm2064, %v2066, %v2062
        %v2068 = vmul.f32 1.0, %v2067
        %v2069 = vmul.f32 %v2048, %v827
        %v2070 = vmul.f32 %v2029, %v2049
        %v2071 = vadd.f32 %v2069, %v2070
        %v2072 = vtanh.pop %v2071
        %v2073 = vmul.f32 %v2068, %v2072
        %s2074 = smul.u32 1, 4
        %s2075 = smul.addr %s2074, 8
        %s2076 = scalar_lea.vmem [#allocation2], %s2075
        %v2077 = vld [vmem:[%s2076] sm:$0xff]
        %v2078 = vld [vmem:[%s2076 + $0x8] sm:$0xff]
        %v2079 = vld [vmem:[%s2076 + $0x10] sm:$0xff]
        %v2080 = vld [vmem:[%s2076 + $0x18] sm:$0xff]
        %v2081 = vadd.f32 %v2077, %v1819
        %v2082 = vadd.f32 %v2078, %v1845
        %v2083 = vadd.f32 %v2079, %v1871
        %v2084 = vadd.f32 %v2080, %v1897
        %v2085 = vxor.u32 %v2081, 2147483648
        %v2086 = vmul.f32 %v2085, 1.442695
        %v2087 = vpow.pop %v2086
        %v2088 = vadd.f32 %v2087, 1.0
        %v2089 = vrcp.pop %v2088
        %v2090 = vmul.f32 %v2088, %v2089
        %v2091 = vsub.f32 1.0, %v2090
        %v2092 = vmul.f32 %v2089, %v2091
        %v2093 = vadd.f32 %v2089, %v2092
        %vm2094 = vweird.f32 %v2088
        %vm2095 = vweird.f32 %v2089
        %vm2096 = vmor %vm2094, %vm2095
        %v2097 = vsel %vm2096, %v2089, %v2093
        %v2098 = vand.u32 2147483647, %v2088
        %vm2099 = vcmp.eq.f32.partialorder %v2098, 8.507059e+37
        %v2100 = vand.u32 %v2088, 2147483648
        %v2101 = vor.u32 1.1754944e-38, %v2100
        %v2102 = vsel %vm2099, %v2101, %v2097
        %v2103 = vmul.f32 1.0, %v2102
        %v2104 = vxor.u32 %v2082, 2147483648
        %v2105 = vmul.f32 %v2104, 1.442695
        %v2106 = vpow.pop %v2105
        %v2107 = vadd.f32 %v2106, 1.0
        %v2108 = vrcp.pop %v2107
        %v2109 = vmul.f32 %v2107, %v2108
        %v2110 = vsub.f32 1.0, %v2109
        %v2111 = vmul.f32 %v2108, %v2110
        %v2112 = vadd.f32 %v2108, %v2111
        %vm2113 = vweird.f32 %v2107
        %vm2114 = vweird.f32 %v2108
        %vm2115 = vmor %vm2113, %vm2114
        %v2116 = vsel %vm2115, %v2108, %v2112
        %v2117 = vand.u32 2147483647, %v2107
        %vm2118 = vcmp.eq.f32.partialorder %v2117, 8.507059e+37
        %v2119 = vand.u32 %v2107, 2147483648
        %v2120 = vor.u32 1.1754944e-38, %v2119
        %v2121 = vsel %vm2118, %v2120, %v2116
        %v2122 = vmul.f32 1.0, %v2121
        %v2123 = vtanh.pop %v2083
        %v2124 = vxor.u32 %v2084, 2147483648
        %v2125 = vmul.f32 %v2124, 1.442695
        %v2126 = vpow.pop %v2125
        %v2127 = vadd.f32 %v2126, 1.0
        %v2128 = vrcp.pop %v2127
        %v2129 = vmul.f32 %v2127, %v2128
        %v2130 = vsub.f32 1.0, %v2129
        %v2131 = vmul.f32 %v2128, %v2130
        %v2132 = vadd.f32 %v2128, %v2131
        %vm2133 = vweird.f32 %v2127
        %vm2134 = vweird.f32 %v2128
        %vm2135 = vmor %vm2133, %vm2134
        %v2136 = vsel %vm2135, %v2128, %v2132
        %v2137 = vand.u32 2147483647, %v2127
        %vm2138 = vcmp.eq.f32.partialorder %v2137, 8.507059e+37
        %v2139 = vand.u32 %v2127, 2147483648
        %v2140 = vor.u32 1.1754944e-38, %v2139
        %v2141 = vsel %vm2138, %v2140, %v2136
        %v2142 = vmul.f32 1.0, %v2141
        %v2143 = vmul.f32 %v2122, %v1141
        %v2144 = vmul.f32 %v2103, %v2123
        %v2145 = vadd.f32 %v2143, %v2144
        %v2146 = vtanh.pop %v2145
        %v2147 = vmul.f32 %v2142, %v2146
        %s2148 = scalar_select %p2004, 1, 0
        %v2149 = vstv %s2148
        %vm2150 = vcmp.eq.s32.totalorder %v2149, 1
        %v2151 = vsel %vm2150, %v2071, %v827
        %s2152 = scalar_select %p2006, 1, 0
        %v2153 = vstv %s2152
        %vm2154 = vcmp.eq.s32.totalorder %v2153, 1
        %v2155 = vsel %vm2154, %v2145, %v1141
        %v2156 = vsel %vm2150, %v2073, %v1147
        %v2157 = vpack.c.bf16 %v2147, %v2147
        %v2158 = vsel %vm2154, %v2157, %v1148
        %2159 = vst [vmem:[#allocation3] sm:$0xf] %v2158
        %v2160 = vpack.c.bf16 %v2073, %v2073
        %v2161 = vrot.slane %v1148, 4
        %v2163 = vsel %vm2150, %v2160, %v2161
        %2164 = vst [vmem:[#allocation3 + $0x4] sm:$0xf] %v2163
        %v2165 = vld [vmem:[#allocation3] sm:$0xff]
        %v2167 = vunpack.c.l.b16 %v2165
        %v2168 = vunpack.c.h.b16 %v2165
        %v2169 = vpack.c.b16 %v2167, %v2167
        %v2170 = vpack.c.b16 %v2168, %v2168
        %2173 = vmatpush.bf16.msra.mxu0 %v1596
        %2174 = vmatpush.bf16.msra.mxu0 %v1588
        %2175 = vmatpush.bf16.msra.mxu0 %v1580
        %2176 = vmatpush.bf16.msra.mxu0 %v1572
        %2177 = vmatpush.bf16.msra.mxu0 %v1564
        %2178 = vmatpush.bf16.msra.mxu0 %v1556
        %2179 = vmatpush.bf16.msra.mxu0 %v1548
        %2180 = vmatpush.bf16.msra.mxu0 %v1540
        %2181 = vmatmul.bf16.gmra.mxu0 %v2169
        %v2182 = vpop.f32.mrf.mxu0
        %v2183 = vadd.f32 0.0, %v2182
        %v2184 = vpop.f32.mrf.mxu0
        %2185 = vdwg.mxu0
        %2186 = vmatpush.bf16.msra.mxu0 %v1660
        %2187 = vmatpush.bf16.msra.mxu0 %v1652
        %2188 = vmatpush.bf16.msra.mxu0 %v1644
        %2189 = vmatpush.bf16.msra.mxu0 %v1636
        %2190 = vmatpush.bf16.msra.mxu0 %v1628
        %2191 = vmatpush.bf16.msra.mxu0 %v1620
        %2192 = vmatpush.bf16.msra.mxu0 %v1612
        %2193 = vmatpush.bf16.msra.mxu0 %v1604
        %2194 = vmatmul.bf16.gmra.mxu0 %v2170
        %v2195 = vpop.f32.mrf.mxu0
        %v2196 = vadd.f32 %v2183, %v2195
        %v2197 = vpop.f32.mrf.mxu0
        %2198 = vdwg.mxu0
        %2199 = vmatpush.bf16.msra.mxu0 %v1597
        %2200 = vmatpush.bf16.msra.mxu0 %v1589
        %2201 = vmatpush.bf16.msra.mxu0 %v1581
        %2202 = vmatpush.bf16.msra.mxu0 %v1573
        %2203 = vmatpush.bf16.msra.mxu0 %v1565
        %2204 = vmatpush.bf16.msra.mxu0 %v1557
        %2205 = vmatpush.bf16.msra.mxu0 %v1549
        %2206 = vmatpush.bf16.msra.mxu0 %v1541
        %2207 = vmatmul.bf16.gmra.mxu0 %v2169
        %v2208 = vpop.f32.mrf.mxu0
        %v2209 = vadd.f32 0.0, %v2208
        %v2210 = vpop.f32.mrf.mxu0
        %2211 = vdwg.mxu0
        %2212 = vmatpush.bf16.msra.mxu0 %v1661
        %2213 = vmatpush.bf16.msra.mxu0 %v1653
        %2214 = vmatpush.bf16.msra.mxu0 %v1645
        %2215 = vmatpush.bf16.msra.mxu0 %v1637
        %2216 = vmatpush.bf16.msra.mxu0 %v1629
        %2217 = vmatpush.bf16.msra.mxu0 %v1621
        %2218 = vmatpush.bf16.msra.mxu0 %v1613
        %2219 = vmatpush.bf16.msra.mxu0 %v1605
        %2220 = vmatmul.bf16.gmra.mxu0 %v2170
        %v2221 = vpop.f32.mrf.mxu0
        %v2222 = vadd.f32 %v2209, %v2221
        %v2223 = vpop.f32.mrf.mxu0
        %2224 = vdwg.mxu0
        %2225 = vmatpush.bf16.msra.mxu0 %v1598
        %2226 = vmatpush.bf16.msra.mxu0 %v1590
        %2227 = vmatpush.bf16.msra.mxu0 %v1582
        %2228 = vmatpush.bf16.msra.mxu0 %v1574
        %2229 = vmatpush.bf16.msra.mxu0 %v1566
        %2230 = vmatpush.bf16.msra.mxu0 %v1558
        %2231 = vmatpush.bf16.msra.mxu0 %v1550
        %2232 = vmatpush.bf16.msra.mxu0 %v1542
        %2233 = vmatmul.bf16.gmra.mxu0 %v2169
        %v2234 = vpop.f32.mrf.mxu0
        %v2235 = vadd.f32 0.0, %v2234
        %v2236 = vpop.f32.mrf.mxu0
        %2237 = vdwg.mxu0
        %2238 = vmatpush.bf16.msra.mxu0 %v1662
        %2239 = vmatpush.bf16.msra.mxu0 %v1654
        %2240 = vmatpush.bf16.msra.mxu0 %v1646
        %2241 = vmatpush.bf16.msra.mxu0 %v1638
        %2242 = vmatpush.bf16.msra.mxu0 %v1630
        %2243 = vmatpush.bf16.msra.mxu0 %v1622
        %2244 = vmatpush.bf16.msra.mxu0 %v1614
        %2245 = vmatpush.bf16.msra.mxu0 %v1606
        %2246 = vmatmul.bf16.gmra.mxu0 %v2170
        %v2247 = vpop.f32.mrf.mxu0
        %v2248 = vadd.f32 %v2235, %v2247
        %v2249 = vpop.f32.mrf.mxu0
        %2250 = vdwg.mxu0
        %2251 = vmatpush.bf16.msra.mxu0 %v1599
        %2252 = vmatpush.bf16.msra.mxu0 %v1591
        %2253 = vmatpush.bf16.msra.mxu0 %v1583
        %2254 = vmatpush.bf16.msra.mxu0 %v1575
        %2255 = vmatpush.bf16.msra.mxu0 %v1567
        %2256 = vmatpush.bf16.msra.mxu0 %v1559
        %2257 = vmatpush.bf16.msra.mxu0 %v1551
        %2258 = vmatpush.bf16.msra.mxu0 %v1543
        %2259 = vmatmul.bf16.gmra.mxu0 %v2169
        %v2260 = vpop.f32.mrf.mxu0
        %v2261 = vadd.f32 0.0, %v2260
        %v2262 = vpop.f32.mrf.mxu0
        %2263 = vdwg.mxu0
        %2264 = vmatpush.bf16.msra.mxu0 %v1663
        %2265 = vmatpush.bf16.msra.mxu0 %v1655
        %2266 = vmatpush.bf16.msra.mxu0 %v1647
        %2267 = vmatpush.bf16.msra.mxu0 %v1639
        %2268 = vmatpush.bf16.msra.mxu0 %v1631
        %2269 = vmatpush.bf16.msra.mxu0 %v1623
        %2270 = vmatpush.bf16.msra.mxu0 %v1615
        %2271 = vmatpush.bf16.msra.mxu0 %v1607
        %2272 = vmatmul.bf16.gmra.mxu0 %v2170
        %v2273 = vpop.f32.mrf.mxu0
        %v2274 = vadd.f32 %v2261, %v2273
        %v2275 = vpop.f32.mrf.mxu0
        %2276 = vdwg.mxu0
        %2277 = vmatpush.bf16.msra.mxu0 %v1600
        %2278 = vmatpush.bf16.msra.mxu0 %v1592
        %2279 = vmatpush.bf16.msra.mxu0 %v1584
        %2280 = vmatpush.bf16.msra.mxu0 %v1576
        %2281 = vmatpush.bf16.msra.mxu0 %v1568
        %2282 = vmatpush.bf16.msra.mxu0 %v1560
        %2283 = vmatpush.bf16.msra.mxu0 %v1552
        %2284 = vmatpush.bf16.msra.mxu0 %v1544
        %2285 = vmatmul.bf16.gmra.mxu0 %v2169
        %v2286 = vpop.f32.mrf.mxu0
        %v2287 = vadd.f32 0.0, %v2286
        %v2288 = vpop.f32.mrf.mxu0
        %2289 = vdwg.mxu0
        %2290 = vmatpush.bf16.msra.mxu0 %v1664
        %2291 = vmatpush.bf16.msra.mxu0 %v1656
        %2292 = vmatpush.bf16.msra.mxu0 %v1648
        %2293 = vmatpush.bf16.msra.mxu0 %v1640
        %2294 = vmatpush.bf16.msra.mxu0 %v1632
        %2295 = vmatpush.bf16.msra.mxu0 %v1624
        %2296 = vmatpush.bf16.msra.mxu0 %v1616
        %2297 = vmatpush.bf16.msra.mxu0 %v1608
        %2298 = vmatmul.bf16.gmra.mxu0 %v2170
        %v2299 = vpop.f32.mrf.mxu0
        %v2300 = vadd.f32 %v2287, %v2299
        %v2301 = vpop.f32.mrf.mxu0
        %2302 = vdwg.mxu0
        %2303 = vmatpush.bf16.msra.mxu0 %v1601
        %2304 = vmatpush.bf16.msra.mxu0 %v1593
        %2305 = vmatpush.bf16.msra.mxu0 %v1585
        %2306 = vmatpush.bf16.msra.mxu0 %v1577
        %2307 = vmatpush.bf16.msra.mxu0 %v1569
        %2308 = vmatpush.bf16.msra.mxu0 %v1561
        %2309 = vmatpush.bf16.msra.mxu0 %v1553
        %2310 = vmatpush.bf16.msra.mxu0 %v1545
        %2311 = vmatmul.bf16.gmra.mxu0 %v2169
        %v2312 = vpop.f32.mrf.mxu0
        %v2313 = vadd.f32 0.0, %v2312
        %v2314 = vpop.f32.mrf.mxu0
        %2315 = vdwg.mxu0
        %2316 = vmatpush.bf16.msra.mxu0 %v1665
        %2317 = vmatpush.bf16.msra.mxu0 %v1657
        %2318 = vmatpush.bf16.msra.mxu0 %v1649
        %2319 = vmatpush.bf16.msra.mxu0 %v1641
        %2320 = vmatpush.bf16.msra.mxu0 %v1633
        %2321 = vmatpush.bf16.msra.mxu0 %v1625
        %2322 = vmatpush.bf16.msra.mxu0 %v1617
        %2323 = vmatpush.bf16.msra.mxu0 %v1609
        %2324 = vmatmul.bf16.gmra.mxu0 %v2170
        %v2325 = vpop.f32.mrf.mxu0
        %v2326 = vadd.f32 %v2313, %v2325
        %v2327 = vpop.f32.mrf.mxu0
        %2328 = vdwg.mxu0
        %2329 = vmatpush.bf16.msra.mxu0 %v1602
        %2330 = vmatpush.bf16.msra.mxu0 %v1594
        %2331 = vmatpush.bf16.msra.mxu0 %v1586
        %2332 = vmatpush.bf16.msra.mxu0 %v1578
        %2333 = vmatpush.bf16.msra.mxu0 %v1570
        %2334 = vmatpush.bf16.msra.mxu0 %v1562
        %2335 = vmatpush.bf16.msra.mxu0 %v1554
        %2336 = vmatpush.bf16.msra.mxu0 %v1546
        %2337 = vmatmul.bf16.gmra.mxu0 %v2169
        %v2338 = vpop.f32.mrf.mxu0
        %v2339 = vadd.f32 0.0, %v2338
        %v2340 = vpop.f32.mrf.mxu0
        %2341 = vdwg.mxu0
        %2342 = vmatpush.bf16.msra.mxu0 %v1666
        %2343 = vmatpush.bf16.msra.mxu0 %v1658
        %2344 = vmatpush.bf16.msra.mxu0 %v1650
        %2345 = vmatpush.bf16.msra.mxu0 %v1642
        %2346 = vmatpush.bf16.msra.mxu0 %v1634
        %2347 = vmatpush.bf16.msra.mxu0 %v1626
        %2348 = vmatpush.bf16.msra.mxu0 %v1618
        %2349 = vmatpush.bf16.msra.mxu0 %v1610
        %2350 = vmatmul.bf16.gmra.mxu0 %v2170
        %v2351 = vpop.f32.mrf.mxu0
        %v2352 = vadd.f32 %v2339, %v2351
        %v2353 = vpop.f32.mrf.mxu0
        %2354 = vdwg.mxu0
        %2355 = vmatpush.bf16.msra.mxu0 %v1603
        %2356 = vmatpush.bf16.msra.mxu0 %v1595
        %2357 = vmatpush.bf16.msra.mxu0 %v1587
        %2358 = vmatpush.bf16.msra.mxu0 %v1579
        %2359 = vmatpush.bf16.msra.mxu0 %v1571
        %2360 = vmatpush.bf16.msra.mxu0 %v1563
        %2361 = vmatpush.bf16.msra.mxu0 %v1555
        %2362 = vmatpush.bf16.msra.mxu0 %v1547
        %2363 = vmatmul.bf16.gmra.mxu0 %v2169
        %v2364 = vpop.f32.mrf.mxu0
        %v2365 = vadd.f32 0.0, %v2364
        %v2366 = vpop.f32.mrf.mxu0
        %2367 = vdwg.mxu0
        %2368 = vmatpush.bf16.msra.mxu0 %v1667
        %2369 = vmatpush.bf16.msra.mxu0 %v1659
        %2370 = vmatpush.bf16.msra.mxu0 %v1651
        %2371 = vmatpush.bf16.msra.mxu0 %v1643
        %2372 = vmatpush.bf16.msra.mxu0 %v1635
        %2373 = vmatpush.bf16.msra.mxu0 %v1627
        %2374 = vmatpush.bf16.msra.mxu0 %v1619
        %2375 = vmatpush.bf16.msra.mxu0 %v1611
        %2376 = vmatmul.bf16.gmra.mxu0 %v2170
        %v2377 = vpop.f32.mrf.mxu0
        %v2378 = vadd.f32 %v2365, %v2377
        %v2379 = vpop.f32.mrf.mxu0
        %2380 = vdwg.mxu0
        %s2381 = sadd.s32 %s297, 2
        %p2382 = scmp.lt.s32.totalorder %s2381, 13
        %v2383 = vadd.f32 %v2300, %v817
        %v2384 = vadd.f32 %v2326, %v818
        %v2385 = vadd.f32 %v2352, %v819
        %v2386 = vadd.f32 %v2378, %v820
        %v2387 = vxor.u32 %v2383, 2147483648
        %v2388 = vmul.f32 %v2387, 1.442695
        %v2389 = vpow.pop %v2388
        %v2390 = vadd.f32 %v2389, 1.0
        %v2391 = vrcp.pop %v2390
        %v2392 = vmul.f32 %v2390, %v2391
        %v2393 = vsub.f32 1.0, %v2392
        %v2394 = vmul.f32 %v2391, %v2393
        %v2395 = vadd.f32 %v2391, %v2394
        %vm2396 = vweird.f32 %v2390
        %vm2397 = vweird.f32 %v2391
        %vm2398 = vmor %vm2396, %vm2397
        %v2399 = vsel %vm2398, %v2391, %v2395
        %v2400 = vand.u32 2147483647, %v2390
        %vm2401 = vcmp.eq.f32.partialorder %v2400, 8.507059e+37
        %v2402 = vand.u32 %v2390, 2147483648
        %v2403 = vor.u32 1.1754944e-38, %v2402
        %v2404 = vsel %vm2401, %v2403, %v2399
        %v2405 = vmul.f32 1.0, %v2404
        %v2406 = vxor.u32 %v2384, 2147483648
        %v2407 = vmul.f32 %v2406, 1.442695
        %v2408 = vpow.pop %v2407
        %v2409 = vadd.f32 %v2408, 1.0
        %v2410 = vrcp.pop %v2409
        %v2411 = vmul.f32 %v2409, %v2410
        %v2412 = vsub.f32 1.0, %v2411
        %v2413 = vmul.f32 %v2410, %v2412
        %v2414 = vadd.f32 %v2410, %v2413
        %vm2415 = vweird.f32 %v2409
        %vm2416 = vweird.f32 %v2410
        %vm2417 = vmor %vm2415, %vm2416
        %v2418 = vsel %vm2417, %v2410, %v2414
        %v2419 = vand.u32 2147483647, %v2409
        %vm2420 = vcmp.eq.f32.partialorder %v2419, 8.507059e+37
        %v2421 = vand.u32 %v2409, 2147483648
        %v2422 = vor.u32 1.1754944e-38, %v2421
        %v2423 = vsel %vm2420, %v2422, %v2418
        %v2424 = vmul.f32 1.0, %v2423
        %v2425 = vtanh.pop %v2385
        %v2426 = vxor.u32 %v2386, 2147483648
        %v2427 = vmul.f32 %v2426, 1.442695
        %v2428 = vpow.pop %v2427
        %v2429 = vadd.f32 %v2428, 1.0
        %v2430 = vrcp.pop %v2429
        %v2431 = vmul.f32 %v2429, %v2430
        %v2432 = vsub.f32 1.0, %v2431
        %v2433 = vmul.f32 %v2430, %v2432
        %v2434 = vadd.f32 %v2430, %v2433
        %vm2435 = vweird.f32 %v2429
        %vm2436 = vweird.f32 %v2430
        %vm2437 = vmor %vm2435, %vm2436
        %v2438 = vsel %vm2437, %v2430, %v2434
        %v2439 = vand.u32 2147483647, %v2429
        %vm2440 = vcmp.eq.f32.partialorder %v2439, 8.507059e+37
        %v2441 = vand.u32 %v2429, 2147483648
        %v2442 = vor.u32 1.1754944e-38, %v2441
        %v2443 = vsel %vm2440, %v2442, %v2438
        %v2444 = vmul.f32 1.0, %v2443
        %v2445 = vmul.f32 %v2424, %v2151
        %v2446 = vmul.f32 %v2405, %v2425
        %v2447 = vadd.f32 %v2445, %v2446
        %v2448 = vtanh.pop %v2447
        %v2449 = vmul.f32 %v2444, %v2448
        %s2450 = smul.u32 2, 4
        %s2451 = smul.addr %s2450, 8
        %s2452 = scalar_lea.vmem [#allocation2], %s2451
        %v2453 = vld [vmem:[%s2452] sm:$0xff]
        %v2454 = vld [vmem:[%s2452 + $0x8] sm:$0xff]
        %v2455 = vld [vmem:[%s2452 + $0x10] sm:$0xff]
        %v2456 = vld [vmem:[%s2452 + $0x18] sm:$0xff]
        %v2457 = vadd.f32 %v2453, %v2196
        %v2458 = vadd.f32 %v2454, %v2222
        %v2459 = vadd.f32 %v2455, %v2248
        %v2460 = vadd.f32 %v2456, %v2274
        %v2461 = vxor.u32 %v2457, 2147483648
        %v2462 = vmul.f32 %v2461, 1.442695
        %v2463 = vpow.pop %v2462
        %v2464 = vadd.f32 %v2463, 1.0
        %v2465 = vrcp.pop %v2464
        %v2466 = vmul.f32 %v2464, %v2465
        %v2467 = vsub.f32 1.0, %v2466
        %v2468 = vmul.f32 %v2465, %v2467
        %v2469 = vadd.f32 %v2465, %v2468
        %vm2470 = vweird.f32 %v2464
        %vm2471 = vweird.f32 %v2465
        %vm2472 = vmor %vm2470, %vm2471
        %v2473 = vsel %vm2472, %v2465, %v2469
        %v2474 = vand.u32 2147483647, %v2464
        %vm2475 = vcmp.eq.f32.partialorder %v2474, 8.507059e+37
        %v2476 = vand.u32 %v2464, 2147483648
        %v2477 = vor.u32 1.1754944e-38, %v2476
        %v2478 = vsel %vm2475, %v2477, %v2473
        %v2479 = vmul.f32 1.0, %v2478
        %v2480 = vxor.u32 %v2458, 2147483648
        %v2481 = vmul.f32 %v2480, 1.442695
        %v2482 = vpow.pop %v2481
        %v2483 = vadd.f32 %v2482, 1.0
        %v2484 = vrcp.pop %v2483
        %v2485 = vmul.f32 %v2483, %v2484
        %v2486 = vsub.f32 1.0, %v2485
        %v2487 = vmul.f32 %v2484, %v2486
        %v2488 = vadd.f32 %v2484, %v2487
        %vm2489 = vweird.f32 %v2483
        %vm2490 = vweird.f32 %v2484
        %vm2491 = vmor %vm2489, %vm2490
        %v2492 = vsel %vm2491, %v2484, %v2488
        %v2493 = vand.u32 2147483647, %v2483
        %vm2494 = vcmp.eq.f32.partialorder %v2493, 8.507059e+37
        %v2495 = vand.u32 %v2483, 2147483648
        %v2496 = vor.u32 1.1754944e-38, %v2495
        %v2497 = vsel %vm2494, %v2496, %v2492
        %v2498 = vmul.f32 1.0, %v2497
        %v2499 = vtanh.pop %v2459
        %v2500 = vxor.u32 %v2460, 2147483648
        %v2501 = vmul.f32 %v2500, 1.442695
        %v2502 = vpow.pop %v2501
        %v2503 = vadd.f32 %v2502, 1.0
        %v2504 = vrcp.pop %v2503
        %v2505 = vmul.f32 %v2503, %v2504
        %v2506 = vsub.f32 1.0, %v2505
        %v2507 = vmul.f32 %v2504, %v2506
        %v2508 = vadd.f32 %v2504, %v2507
        %vm2509 = vweird.f32 %v2503
        %vm2510 = vweird.f32 %v2504
        %vm2511 = vmor %vm2509, %vm2510
        %v2512 = vsel %vm2511, %v2504, %v2508
        %v2513 = vand.u32 2147483647, %v2503
        %vm2514 = vcmp.eq.f32.partialorder %v2513, 8.507059e+37
        %v2515 = vand.u32 %v2503, 2147483648
        %v2516 = vor.u32 1.1754944e-38, %v2515
        %v2517 = vsel %vm2514, %v2516, %v2512
        %v2518 = vmul.f32 1.0, %v2517
        %v2519 = vmul.f32 %v2498, %v2155
        %v2520 = vmul.f32 %v2479, %v2499
        %v2521 = vadd.f32 %v2519, %v2520
        %v2522 = vtanh.pop %v2521
        %v2523 = vmul.f32 %v2518, %v2522
        %v2524 = vsel %vm2154, %v2447, %v2151
        %s2525 = scalar_select %p2382, 1, 0
        %v2526 = vstv %s2525
        %vm2527 = vcmp.eq.s32.totalorder %v2526, 1
        %v2528 = vsel %vm2527, %v2521, %v2155
        %v2529 = vsel %vm2154, %v2449, %v2156
        %v2530 = vpack.c.bf16 %v2523, %v2523
        %v2531 = vsel %vm2527, %v2530, %v2165
        %2532 = vst [vmem:[#allocation3] sm:$0xf] %v2531
        %v2533 = vpack.c.bf16 %v2449, %v2449
        %v2534 = vrot.slane %v2165, 4
        %v2536 = vsel %vm2154, %v2533, %v2534
        %2537 = vst [vmem:[#allocation3 + $0x4] sm:$0xf] %v2536
        %v2538 = vld [vmem:[#allocation3] sm:$0xff]
        %v2540 = vunpack.c.l.b16 %v2538
        %v2541 = vunpack.c.h.b16 %v2538
        %v2542 = vpack.c.b16 %v2540, %v2540
        %v2543 = vpack.c.b16 %v2541, %v2541
        %2546 = vmatpush.bf16.msra.mxu0 %v1596
        %2547 = vmatpush.bf16.msra.mxu0 %v1588
        %2548 = vmatpush.bf16.msra.mxu0 %v1580
        %2549 = vmatpush.bf16.msra.mxu0 %v1572
        %2550 = vmatpush.bf16.msra.mxu0 %v1564
        %2551 = vmatpush.bf16.msra.mxu0 %v1556
        %2552 = vmatpush.bf16.msra.mxu0 %v1548
        %2553 = vmatpush.bf16.msra.mxu0 %v1540
        %2554 = vmatmul.bf16.gmra.mxu0 %v2542
        %v2555 = vpop.f32.mrf.mxu0
        %v2556 = vadd.f32 0.0, %v2555
        %v2557 = vpop.f32.mrf.mxu0
        %2558 = vdwg.mxu0
        %2559 = vmatpush.bf16.msra.mxu0 %v1660
        %2560 = vmatpush.bf16.msra.mxu0 %v1652
        %2561 = vmatpush.bf16.msra.mxu0 %v1644
        %2562 = vmatpush.bf16.msra.mxu0 %v1636
        %2563 = vmatpush.bf16.msra.mxu0 %v1628
        %2564 = vmatpush.bf16.msra.mxu0 %v1620
        %2565 = vmatpush.bf16.msra.mxu0 %v1612
        %2566 = vmatpush.bf16.msra.mxu0 %v1604
        %2567 = vmatmul.bf16.gmra.mxu0 %v2543
        %v2568 = vpop.f32.mrf.mxu0
        %v2569 = vadd.f32 %v2556, %v2568
        %v2570 = vpop.f32.mrf.mxu0
        %2571 = vdwg.mxu0
        %2572 = vmatpush.bf16.msra.mxu0 %v1597
        %2573 = vmatpush.bf16.msra.mxu0 %v1589
        %2574 = vmatpush.bf16.msra.mxu0 %v1581
        %2575 = vmatpush.bf16.msra.mxu0 %v1573
        %2576 = vmatpush.bf16.msra.mxu0 %v1565
        %2577 = vmatpush.bf16.msra.mxu0 %v1557
        %2578 = vmatpush.bf16.msra.mxu0 %v1549
        %2579 = vmatpush.bf16.msra.mxu0 %v1541
        %2580 = vmatmul.bf16.gmra.mxu0 %v2542
        %v2581 = vpop.f32.mrf.mxu0
        %v2582 = vadd.f32 0.0, %v2581
        %v2583 = vpop.f32.mrf.mxu0
        %2584 = vdwg.mxu0
        %2585 = vmatpush.bf16.msra.mxu0 %v1661
        %2586 = vmatpush.bf16.msra.mxu0 %v1653
        %2587 = vmatpush.bf16.msra.mxu0 %v1645
        %2588 = vmatpush.bf16.msra.mxu0 %v1637
        %2589 = vmatpush.bf16.msra.mxu0 %v1629
        %2590 = vmatpush.bf16.msra.mxu0 %v1621
        %2591 = vmatpush.bf16.msra.mxu0 %v1613
        %2592 = vmatpush.bf16.msra.mxu0 %v1605
        %2593 = vmatmul.bf16.gmra.mxu0 %v2543
        %v2594 = vpop.f32.mrf.mxu0
        %v2595 = vadd.f32 %v2582, %v2594
        %v2596 = vpop.f32.mrf.mxu0
        %2597 = vdwg.mxu0
        %2598 = vmatpush.bf16.msra.mxu0 %v1598
        %2599 = vmatpush.bf16.msra.mxu0 %v1590
        %2600 = vmatpush.bf16.msra.mxu0 %v1582
        %2601 = vmatpush.bf16.msra.mxu0 %v1574
        %2602 = vmatpush.bf16.msra.mxu0 %v1566
        %2603 = vmatpush.bf16.msra.mxu0 %v1558
        %2604 = vmatpush.bf16.msra.mxu0 %v1550
        %2605 = vmatpush.bf16.msra.mxu0 %v1542
        %2606 = vmatmul.bf16.gmra.mxu0 %v2542
        %v2607 = vpop.f32.mrf.mxu0
        %v2608 = vadd.f32 0.0, %v2607
        %v2609 = vpop.f32.mrf.mxu0
        %2610 = vdwg.mxu0
        %2611 = vmatpush.bf16.msra.mxu0 %v1662
        %2612 = vmatpush.bf16.msra.mxu0 %v1654
        %2613 = vmatpush.bf16.msra.mxu0 %v1646
        %2614 = vmatpush.bf16.msra.mxu0 %v1638
        %2615 = vmatpush.bf16.msra.mxu0 %v1630
        %2616 = vmatpush.bf16.msra.mxu0 %v1622
        %2617 = vmatpush.bf16.msra.mxu0 %v1614
        %2618 = vmatpush.bf16.msra.mxu0 %v1606
        %2619 = vmatmul.bf16.gmra.mxu0 %v2543
        %v2620 = vpop.f32.mrf.mxu0
        %v2621 = vadd.f32 %v2608, %v2620
        %v2622 = vpop.f32.mrf.mxu0
        %2623 = vdwg.mxu0
        %2624 = vmatpush.bf16.msra.mxu0 %v1599
        %2625 = vmatpush.bf16.msra.mxu0 %v1591
        %2626 = vmatpush.bf16.msra.mxu0 %v1583
        %2627 = vmatpush.bf16.msra.mxu0 %v1575
        %2628 = vmatpush.bf16.msra.mxu0 %v1567
        %2629 = vmatpush.bf16.msra.mxu0 %v1559
        %2630 = vmatpush.bf16.msra.mxu0 %v1551
        %2631 = vmatpush.bf16.msra.mxu0 %v1543
        %2632 = vmatmul.bf16.gmra.mxu0 %v2542
        %v2633 = vpop.f32.mrf.mxu0
        %v2634 = vadd.f32 0.0, %v2633
        %v2635 = vpop.f32.mrf.mxu0
        %2636 = vdwg.mxu0
        %2637 = vmatpush.bf16.msra.mxu0 %v1663
        %2638 = vmatpush.bf16.msra.mxu0 %v1655
        %2639 = vmatpush.bf16.msra.mxu0 %v1647
        %2640 = vmatpush.bf16.msra.mxu0 %v1639
        %2641 = vmatpush.bf16.msra.mxu0 %v1631
        %2642 = vmatpush.bf16.msra.mxu0 %v1623
        %2643 = vmatpush.bf16.msra.mxu0 %v1615
        %2644 = vmatpush.bf16.msra.mxu0 %v1607
        %2645 = vmatmul.bf16.gmra.mxu0 %v2543
        %v2646 = vpop.f32.mrf.mxu0
        %v2647 = vadd.f32 %v2634, %v2646
        %v2648 = vpop.f32.mrf.mxu0
        %2649 = vdwg.mxu0
        %2650 = vmatpush.bf16.msra.mxu0 %v1600
        %2651 = vmatpush.bf16.msra.mxu0 %v1592
        %2652 = vmatpush.bf16.msra.mxu0 %v1584
        %2653 = vmatpush.bf16.msra.mxu0 %v1576
        %2654 = vmatpush.bf16.msra.mxu0 %v1568
        %2655 = vmatpush.bf16.msra.mxu0 %v1560
        %2656 = vmatpush.bf16.msra.mxu0 %v1552
        %2657 = vmatpush.bf16.msra.mxu0 %v1544
        %2658 = vmatmul.bf16.gmra.mxu0 %v2542
        %v2659 = vpop.f32.mrf.mxu0
        %v2660 = vadd.f32 0.0, %v2659
        %v2661 = vpop.f32.mrf.mxu0
        %2662 = vdwg.mxu0
        %2663 = vmatpush.bf16.msra.mxu0 %v1664
        %2664 = vmatpush.bf16.msra.mxu0 %v1656
        %2665 = vmatpush.bf16.msra.mxu0 %v1648
        %2666 = vmatpush.bf16.msra.mxu0 %v1640
        %2667 = vmatpush.bf16.msra.mxu0 %v1632
        %2668 = vmatpush.bf16.msra.mxu0 %v1624
        %2669 = vmatpush.bf16.msra.mxu0 %v1616
        %2670 = vmatpush.bf16.msra.mxu0 %v1608
        %2671 = vmatmul.bf16.gmra.mxu0 %v2543
        %v2672 = vpop.f32.mrf.mxu0
        %v2673 = vadd.f32 %v2660, %v2672
        %v2674 = vpop.f32.mrf.mxu0
        %2675 = vdwg.mxu0
        %2676 = vmatpush.bf16.msra.mxu0 %v1601
        %2677 = vmatpush.bf16.msra.mxu0 %v1593
        %2678 = vmatpush.bf16.msra.mxu0 %v1585
        %2679 = vmatpush.bf16.msra.mxu0 %v1577
        %2680 = vmatpush.bf16.msra.mxu0 %v1569
        %2681 = vmatpush.bf16.msra.mxu0 %v1561
        %2682 = vmatpush.bf16.msra.mxu0 %v1553
        %2683 = vmatpush.bf16.msra.mxu0 %v1545
        %2684 = vmatmul.bf16.gmra.mxu0 %v2542
        %v2685 = vpop.f32.mrf.mxu0
        %v2686 = vadd.f32 0.0, %v2685
        %v2687 = vpop.f32.mrf.mxu0
        %2688 = vdwg.mxu0
        %2689 = vmatpush.bf16.msra.mxu0 %v1665
        %2690 = vmatpush.bf16.msra.mxu0 %v1657
        %2691 = vmatpush.bf16.msra.mxu0 %v1649
        %2692 = vmatpush.bf16.msra.mxu0 %v1641
        %2693 = vmatpush.bf16.msra.mxu0 %v1633
        %2694 = vmatpush.bf16.msra.mxu0 %v1625
        %2695 = vmatpush.bf16.msra.mxu0 %v1617
        %2696 = vmatpush.bf16.msra.mxu0 %v1609
        %2697 = vmatmul.bf16.gmra.mxu0 %v2543
        %v2698 = vpop.f32.mrf.mxu0
        %v2699 = vadd.f32 %v2686, %v2698
        %v2700 = vpop.f32.mrf.mxu0
        %2701 = vdwg.mxu0
        %2702 = vmatpush.bf16.msra.mxu0 %v1602
        %2703 = vmatpush.bf16.msra.mxu0 %v1594
        %2704 = vmatpush.bf16.msra.mxu0 %v1586
        %2705 = vmatpush.bf16.msra.mxu0 %v1578
        %2706 = vmatpush.bf16.msra.mxu0 %v1570
        %2707 = vmatpush.bf16.msra.mxu0 %v1562
        %2708 = vmatpush.bf16.msra.mxu0 %v1554
        %2709 = vmatpush.bf16.msra.mxu0 %v1546
        %2710 = vmatmul.bf16.gmra.mxu0 %v2542
        %v2711 = vpop.f32.mrf.mxu0
        %v2712 = vadd.f32 0.0, %v2711
        %v2713 = vpop.f32.mrf.mxu0
        %2714 = vdwg.mxu0
        %2715 = vmatpush.bf16.msra.mxu0 %v1666
        %2716 = vmatpush.bf16.msra.mxu0 %v1658
        %2717 = vmatpush.bf16.msra.mxu0 %v1650
        %2718 = vmatpush.bf16.msra.mxu0 %v1642
        %2719 = vmatpush.bf16.msra.mxu0 %v1634
        %2720 = vmatpush.bf16.msra.mxu0 %v1626
        %2721 = vmatpush.bf16.msra.mxu0 %v1618
        %2722 = vmatpush.bf16.msra.mxu0 %v1610
        %2723 = vmatmul.bf16.gmra.mxu0 %v2543
        %v2724 = vpop.f32.mrf.mxu0
        %v2725 = vadd.f32 %v2712, %v2724
        %v2726 = vpop.f32.mrf.mxu0
        %2727 = vdwg.mxu0
        %2728 = vmatpush.bf16.msra.mxu0 %v1603
        %2729 = vmatpush.bf16.msra.mxu0 %v1595
        %2730 = vmatpush.bf16.msra.mxu0 %v1587
        %2731 = vmatpush.bf16.msra.mxu0 %v1579
        %2732 = vmatpush.bf16.msra.mxu0 %v1571
        %2733 = vmatpush.bf16.msra.mxu0 %v1563
        %2734 = vmatpush.bf16.msra.mxu0 %v1555
        %2735 = vmatpush.bf16.msra.mxu0 %v1547
        %2736 = vmatmul.bf16.gmra.mxu0 %v2542
        %v2737 = vpop.f32.mrf.mxu0
        %v2738 = vadd.f32 0.0, %v2737
        %v2739 = vpop.f32.mrf.mxu0
        %2740 = vdwg.mxu0
        %2741 = vmatpush.bf16.msra.mxu0 %v1667
        %2742 = vmatpush.bf16.msra.mxu0 %v1659
        %2743 = vmatpush.bf16.msra.mxu0 %v1651
        %2744 = vmatpush.bf16.msra.mxu0 %v1643
        %2745 = vmatpush.bf16.msra.mxu0 %v1635
        %2746 = vmatpush.bf16.msra.mxu0 %v1627
        %2747 = vmatpush.bf16.msra.mxu0 %v1619
        %2748 = vmatpush.bf16.msra.mxu0 %v1611
        %2749 = vmatmul.bf16.gmra.mxu0 %v2543
        %v2750 = vpop.f32.mrf.mxu0
        %v2751 = vadd.f32 %v2738, %v2750
        %v2752 = vpop.f32.mrf.mxu0
        %2753 = vdwg.mxu0
        %s2754 = sadd.s32 %s297, 3
        %p2755 = scmp.lt.s32.totalorder %s2754, 13
        %v2756 = vadd.f32 %v2673, %v817
        %v2757 = vadd.f32 %v2699, %v818
        %v2758 = vadd.f32 %v2725, %v819
        %v2759 = vadd.f32 %v2751, %v820
        %v2760 = vxor.u32 %v2756, 2147483648
        %v2761 = vmul.f32 %v2760, 1.442695
        %v2762 = vpow.pop %v2761
        %v2763 = vadd.f32 %v2762, 1.0
        %v2764 = vrcp.pop %v2763
        %v2765 = vmul.f32 %v2763, %v2764
        %v2766 = vsub.f32 1.0, %v2765
        %v2767 = vmul.f32 %v2764, %v2766
        %v2768 = vadd.f32 %v2764, %v2767
        %vm2769 = vweird.f32 %v2763
        %vm2770 = vweird.f32 %v2764
        %vm2771 = vmor %vm2769, %vm2770
        %v2772 = vsel %vm2771, %v2764, %v2768
        %v2773 = vand.u32 2147483647, %v2763
        %vm2774 = vcmp.eq.f32.partialorder %v2773, 8.507059e+37
        %v2775 = vand.u32 %v2763, 2147483648
        %v2776 = vor.u32 1.1754944e-38, %v2775
        %v2777 = vsel %vm2774, %v2776, %v2772
        %v2778 = vmul.f32 1.0, %v2777
        %v2779 = vxor.u32 %v2757, 2147483648
        %v2780 = vmul.f32 %v2779, 1.442695
        %v2781 = vpow.pop %v2780
        %v2782 = vadd.f32 %v2781, 1.0
        %v2783 = vrcp.pop %v2782
        %v2784 = vmul.f32 %v2782, %v2783
        %v2785 = vsub.f32 1.0, %v2784
        %v2786 = vmul.f32 %v2783, %v2785
        %v2787 = vadd.f32 %v2783, %v2786
        %vm2788 = vweird.f32 %v2782
        %vm2789 = vweird.f32 %v2783
        %vm2790 = vmor %vm2788, %vm2789
        %v2791 = vsel %vm2790, %v2783, %v2787
        %v2792 = vand.u32 2147483647, %v2782
        %vm2793 = vcmp.eq.f32.partialorder %v2792, 8.507059e+37
        %v2794 = vand.u32 %v2782, 2147483648
        %v2795 = vor.u32 1.1754944e-38, %v2794
        %v2796 = vsel %vm2793, %v2795, %v2791
        %v2797 = vmul.f32 1.0, %v2796
        %v2798 = vtanh.pop %v2758
        %v2799 = vxor.u32 %v2759, 2147483648
        %v2800 = vmul.f32 %v2799, 1.442695
        %v2801 = vpow.pop %v2800
        %v2802 = vadd.f32 %v2801, 1.0
        %v2803 = vrcp.pop %v2802
        %v2804 = vmul.f32 %v2802, %v2803
        %v2805 = vsub.f32 1.0, %v2804
        %v2806 = vmul.f32 %v2803, %v2805
        %v2807 = vadd.f32 %v2803, %v2806
        %vm2808 = vweird.f32 %v2802
        %vm2809 = vweird.f32 %v2803
        %vm2810 = vmor %vm2808, %vm2809
        %v2811 = vsel %vm2810, %v2803, %v2807
        %v2812 = vand.u32 2147483647, %v2802
        %vm2813 = vcmp.eq.f32.partialorder %v2812, 8.507059e+37
        %v2814 = vand.u32 %v2802, 2147483648
        %v2815 = vor.u32 1.1754944e-38, %v2814
        %v2816 = vsel %vm2813, %v2815, %v2811
        %v2817 = vmul.f32 1.0, %v2816
        %v2818 = vmul.f32 %v2797, %v2524
        %v2819 = vmul.f32 %v2778, %v2798
        %v2820 = vadd.f32 %v2818, %v2819
        %v2821 = vtanh.pop %v2820
        %v2822 = vmul.f32 %v2817, %v2821
        %s2823 = smul.u32 3, 4
        %s2824 = smul.addr %s2823, 8
        %s2825 = scalar_lea.vmem [#allocation2], %s2824
        %v2826 = vld [vmem:[%s2825] sm:$0xff]
        %v2827 = vld [vmem:[%s2825 + $0x8] sm:$0xff]
        %v2828 = vld [vmem:[%s2825 + $0x10] sm:$0xff]
        %v2829 = vld [vmem:[%s2825 + $0x18] sm:$0xff]
        %v2830 = vadd.f32 %v2826, %v2569
        %v2831 = vadd.f32 %v2827, %v2595
        %v2832 = vadd.f32 %v2828, %v2621
        %v2833 = vadd.f32 %v2829, %v2647
        %v2834 = vxor.u32 %v2830, 2147483648
        %v2835 = vmul.f32 %v2834, 1.442695
        %v2836 = vpow.pop %v2835
        %v2837 = vadd.f32 %v2836, 1.0
        %v2838 = vrcp.pop %v2837
        %v2839 = vmul.f32 %v2837, %v2838
        %v2840 = vsub.f32 1.0, %v2839
        %v2841 = vmul.f32 %v2838, %v2840
        %v2842 = vadd.f32 %v2838, %v2841
        %vm2843 = vweird.f32 %v2837
        %vm2844 = vweird.f32 %v2838
        %vm2845 = vmor %vm2843, %vm2844
        %v2846 = vsel %vm2845, %v2838, %v2842
        %v2847 = vand.u32 2147483647, %v2837
        %vm2848 = vcmp.eq.f32.partialorder %v2847, 8.507059e+37
        %v2849 = vand.u32 %v2837, 2147483648
        %v2850 = vor.u32 1.1754944e-38, %v2849
        %v2851 = vsel %vm2848, %v2850, %v2846
        %v2852 = vmul.f32 1.0, %v2851
        %v2853 = vxor.u32 %v2831, 2147483648
        %v2854 = vmul.f32 %v2853, 1.442695
        %v2855 = vpow.pop %v2854
        %v2856 = vadd.f32 %v2855, 1.0
        %v2857 = vrcp.pop %v2856
        %v2858 = vmul.f32 %v2856, %v2857
        %v2859 = vsub.f32 1.0, %v2858
        %v2860 = vmul.f32 %v2857, %v2859
        %v2861 = vadd.f32 %v2857, %v2860
        %vm2862 = vweird.f32 %v2856
        %vm2863 = vweird.f32 %v2857
        %vm2864 = vmor %vm2862, %vm2863
        %v2865 = vsel %vm2864, %v2857, %v2861
        %v2866 = vand.u32 2147483647, %v2856
        %vm2867 = vcmp.eq.f32.partialorder %v2866, 8.507059e+37
        %v2868 = vand.u32 %v2856, 2147483648
        %v2869 = vor.u32 1.1754944e-38, %v2868
        %v2870 = vsel %vm2867, %v2869, %v2865
        %v2871 = vmul.f32 1.0, %v2870
        %v2872 = vtanh.pop %v2832
        %v2873 = vxor.u32 %v2833, 2147483648
        %v2874 = vmul.f32 %v2873, 1.442695
        %v2875 = vpow.pop %v2874
        %v2876 = vadd.f32 %v2875, 1.0
        %v2877 = vrcp.pop %v2876
        %v2878 = vmul.f32 %v2876, %v2877
        %v2879 = vsub.f32 1.0, %v2878
        %v2880 = vmul.f32 %v2877, %v2879
        %v2881 = vadd.f32 %v2877, %v2880
        %vm2882 = vweird.f32 %v2876
        %vm2883 = vweird.f32 %v2877
        %vm2884 = vmor %vm2882, %vm2883
        %v2885 = vsel %vm2884, %v2877, %v2881
        %v2886 = vand.u32 2147483647, %v2876
        %vm2887 = vcmp.eq.f32.partialorder %v2886, 8.507059e+37
        %v2888 = vand.u32 %v2876, 2147483648
        %v2889 = vor.u32 1.1754944e-38, %v2888
        %v2890 = vsel %vm2887, %v2889, %v2885
        %v2891 = vmul.f32 1.0, %v2890
        %v2892 = vmul.f32 %v2871, %v2528
        %v2893 = vmul.f32 %v2852, %v2872
        %v2894 = vadd.f32 %v2892, %v2893
        %v2895 = vtanh.pop %v2894
        %v2896 = vmul.f32 %v2891, %v2895
        %v2897 = vsel %vm2527, %v2820, %v2524
        %s2898 = scalar_select %p2755, 1, 0
        %v2899 = vstv %s2898
        %vm2900 = vcmp.eq.s32.totalorder %v2899, 1
        %v2901 = vsel %vm2900, %v2894, %v2528
        %v2902 = vsel %vm2527, %v2822, %v2529
        %v2903 = vpack.c.bf16 %v2896, %v2896
        %v2904 = vsel %vm2900, %v2903, %v2538
        %2905 = vst [vmem:[#allocation3] sm:$0xf] %v2904
        %v2906 = vpack.c.bf16 %v2822, %v2822
        %v2907 = vrot.slane %v2538, 4
        %v2909 = vsel %vm2527, %v2906, %v2907
        %2910 = vst [vmem:[#allocation3 + $0x4] sm:$0xf] %v2909
        %v2911 = vld [vmem:[#allocation3] sm:$0xff]
        %v2913 = vunpack.c.l.b16 %v2911
        %v2914 = vunpack.c.h.b16 %v2911
        %v2915 = vpack.c.b16 %v2913, %v2913
        %v2916 = vpack.c.b16 %v2914, %v2914
        %2919 = vmatpush.bf16.msra.mxu0 %v1596
        %2920 = vmatpush.bf16.msra.mxu0 %v1588
        %2921 = vmatpush.bf16.msra.mxu0 %v1580
        %2922 = vmatpush.bf16.msra.mxu0 %v1572
        %2923 = vmatpush.bf16.msra.mxu0 %v1564
        %2924 = vmatpush.bf16.msra.mxu0 %v1556
        %2925 = vmatpush.bf16.msra.mxu0 %v1548
        %2926 = vmatpush.bf16.msra.mxu0 %v1540
        %2927 = vmatmul.bf16.gmra.mxu0 %v2915
        %v2928 = vpop.f32.mrf.mxu0
        %v2929 = vadd.f32 0.0, %v2928
        %v2930 = vpop.f32.mrf.mxu0
        %2931 = vdwg.mxu0
        %2932 = vmatpush.bf16.msra.mxu0 %v1660
        %2933 = vmatpush.bf16.msra.mxu0 %v1652
        %2934 = vmatpush.bf16.msra.mxu0 %v1644
        %2935 = vmatpush.bf16.msra.mxu0 %v1636
        %2936 = vmatpush.bf16.msra.mxu0 %v1628
        %2937 = vmatpush.bf16.msra.mxu0 %v1620
        %2938 = vmatpush.bf16.msra.mxu0 %v1612
        %2939 = vmatpush.bf16.msra.mxu0 %v1604
        %2940 = vmatmul.bf16.gmra.mxu0 %v2916
        %v2941 = vpop.f32.mrf.mxu0
        %v2942 = vadd.f32 %v2929, %v2941
        %v2943 = vpop.f32.mrf.mxu0
        %2944 = vdwg.mxu0
        %2945 = vmatpush.bf16.msra.mxu0 %v1597
        %2946 = vmatpush.bf16.msra.mxu0 %v1589
        %2947 = vmatpush.bf16.msra.mxu0 %v1581
        %2948 = vmatpush.bf16.msra.mxu0 %v1573
        %2949 = vmatpush.bf16.msra.mxu0 %v1565
        %2950 = vmatpush.bf16.msra.mxu0 %v1557
        %2951 = vmatpush.bf16.msra.mxu0 %v1549
        %2952 = vmatpush.bf16.msra.mxu0 %v1541
        %2953 = vmatmul.bf16.gmra.mxu0 %v2915
        %v2954 = vpop.f32.mrf.mxu0
        %v2955 = vadd.f32 0.0, %v2954
        %v2956 = vpop.f32.mrf.mxu0
        %2957 = vdwg.mxu0
        %2958 = vmatpush.bf16.msra.mxu0 %v1661
        %2959 = vmatpush.bf16.msra.mxu0 %v1653
        %2960 = vmatpush.bf16.msra.mxu0 %v1645
        %2961 = vmatpush.bf16.msra.mxu0 %v1637
        %2962 = vmatpush.bf16.msra.mxu0 %v1629
        %2963 = vmatpush.bf16.msra.mxu0 %v1621
        %2964 = vmatpush.bf16.msra.mxu0 %v1613
        %2965 = vmatpush.bf16.msra.mxu0 %v1605
        %2966 = vmatmul.bf16.gmra.mxu0 %v2916
        %v2967 = vpop.f32.mrf.mxu0
        %v2968 = vadd.f32 %v2955, %v2967
        %v2969 = vpop.f32.mrf.mxu0
        %2970 = vdwg.mxu0
        %2971 = vmatpush.bf16.msra.mxu0 %v1598
        %2972 = vmatpush.bf16.msra.mxu0 %v1590
        %2973 = vmatpush.bf16.msra.mxu0 %v1582
        %2974 = vmatpush.bf16.msra.mxu0 %v1574
        %2975 = vmatpush.bf16.msra.mxu0 %v1566
        %2976 = vmatpush.bf16.msra.mxu0 %v1558
        %2977 = vmatpush.bf16.msra.mxu0 %v1550
        %2978 = vmatpush.bf16.msra.mxu0 %v1542
        %2979 = vmatmul.bf16.gmra.mxu0 %v2915
        %v2980 = vpop.f32.mrf.mxu0
        %v2981 = vadd.f32 0.0, %v2980
        %v2982 = vpop.f32.mrf.mxu0
        %2983 = vdwg.mxu0
        %2984 = vmatpush.bf16.msra.mxu0 %v1662
        %2985 = vmatpush.bf16.msra.mxu0 %v1654
        %2986 = vmatpush.bf16.msra.mxu0 %v1646
        %2987 = vmatpush.bf16.msra.mxu0 %v1638
        %2988 = vmatpush.bf16.msra.mxu0 %v1630
        %2989 = vmatpush.bf16.msra.mxu0 %v1622
        %2990 = vmatpush.bf16.msra.mxu0 %v1614
        %2991 = vmatpush.bf16.msra.mxu0 %v1606
        %2992 = vmatmul.bf16.gmra.mxu0 %v2916
        %v2993 = vpop.f32.mrf.mxu0
        %v2994 = vadd.f32 %v2981, %v2993
        %v2995 = vpop.f32.mrf.mxu0
        %2996 = vdwg.mxu0
        %2997 = vmatpush.bf16.msra.mxu0 %v1599
        %2998 = vmatpush.bf16.msra.mxu0 %v1591
        %2999 = vmatpush.bf16.msra.mxu0 %v1583
        %3000 = vmatpush.bf16.msra.mxu0 %v1575
        %3001 = vmatpush.bf16.msra.mxu0 %v1567
        %3002 = vmatpush.bf16.msra.mxu0 %v1559
        %3003 = vmatpush.bf16.msra.mxu0 %v1551
        %3004 = vmatpush.bf16.msra.mxu0 %v1543
        %3005 = vmatmul.bf16.gmra.mxu0 %v2915
        %v3006 = vpop.f32.mrf.mxu0
        %v3007 = vadd.f32 0.0, %v3006
        %v3008 = vpop.f32.mrf.mxu0
        %3009 = vdwg.mxu0
        %3010 = vmatpush.bf16.msra.mxu0 %v1663
        %3011 = vmatpush.bf16.msra.mxu0 %v1655
        %3012 = vmatpush.bf16.msra.mxu0 %v1647
        %3013 = vmatpush.bf16.msra.mxu0 %v1639
        %3014 = vmatpush.bf16.msra.mxu0 %v1631
        %3015 = vmatpush.bf16.msra.mxu0 %v1623
        %3016 = vmatpush.bf16.msra.mxu0 %v1615
        %3017 = vmatpush.bf16.msra.mxu0 %v1607
        %3018 = vmatmul.bf16.gmra.mxu0 %v2916
        %v3019 = vpop.f32.mrf.mxu0
        %v3020 = vadd.f32 %v3007, %v3019
        %v3021 = vpop.f32.mrf.mxu0
        %3022 = vdwg.mxu0
        %3023 = vmatpush.bf16.msra.mxu0 %v1600
        %3024 = vmatpush.bf16.msra.mxu0 %v1592
        %3025 = vmatpush.bf16.msra.mxu0 %v1584
        %3026 = vmatpush.bf16.msra.mxu0 %v1576
        %3027 = vmatpush.bf16.msra.mxu0 %v1568
        %3028 = vmatpush.bf16.msra.mxu0 %v1560
        %3029 = vmatpush.bf16.msra.mxu0 %v1552
        %3030 = vmatpush.bf16.msra.mxu0 %v1544
        %3031 = vmatmul.bf16.gmra.mxu0 %v2915
        %v3032 = vpop.f32.mrf.mxu0
        %v3033 = vadd.f32 0.0, %v3032
        %v3034 = vpop.f32.mrf.mxu0
        %3035 = vdwg.mxu0
        %3036 = vmatpush.bf16.msra.mxu0 %v1664
        %3037 = vmatpush.bf16.msra.mxu0 %v1656
        %3038 = vmatpush.bf16.msra.mxu0 %v1648
        %3039 = vmatpush.bf16.msra.mxu0 %v1640
        %3040 = vmatpush.bf16.msra.mxu0 %v1632
        %3041 = vmatpush.bf16.msra.mxu0 %v1624
        %3042 = vmatpush.bf16.msra.mxu0 %v1616
        %3043 = vmatpush.bf16.msra.mxu0 %v1608
        %3044 = vmatmul.bf16.gmra.mxu0 %v2916
        %v3045 = vpop.f32.mrf.mxu0
        %v3046 = vadd.f32 %v3033, %v3045
        %v3047 = vpop.f32.mrf.mxu0
        %3048 = vdwg.mxu0
        %3049 = vmatpush.bf16.msra.mxu0 %v1601
        %3050 = vmatpush.bf16.msra.mxu0 %v1593
        %3051 = vmatpush.bf16.msra.mxu0 %v1585
        %3052 = vmatpush.bf16.msra.mxu0 %v1577
        %3053 = vmatpush.bf16.msra.mxu0 %v1569
        %3054 = vmatpush.bf16.msra.mxu0 %v1561
        %3055 = vmatpush.bf16.msra.mxu0 %v1553
        %3056 = vmatpush.bf16.msra.mxu0 %v1545
        %3057 = vmatmul.bf16.gmra.mxu0 %v2915
        %v3058 = vpop.f32.mrf.mxu0
        %v3059 = vadd.f32 0.0, %v3058
        %v3060 = vpop.f32.mrf.mxu0
        %3061 = vdwg.mxu0
        %3062 = vmatpush.bf16.msra.mxu0 %v1665
        %3063 = vmatpush.bf16.msra.mxu0 %v1657
        %3064 = vmatpush.bf16.msra.mxu0 %v1649
        %3065 = vmatpush.bf16.msra.mxu0 %v1641
        %3066 = vmatpush.bf16.msra.mxu0 %v1633
        %3067 = vmatpush.bf16.msra.mxu0 %v1625
        %3068 = vmatpush.bf16.msra.mxu0 %v1617
        %3069 = vmatpush.bf16.msra.mxu0 %v1609
        %3070 = vmatmul.bf16.gmra.mxu0 %v2916
        %v3071 = vpop.f32.mrf.mxu0
        %v3072 = vadd.f32 %v3059, %v3071
        %v3073 = vpop.f32.mrf.mxu0
        %3074 = vdwg.mxu0
        %3075 = vmatpush.bf16.msra.mxu0 %v1602
        %3076 = vmatpush.bf16.msra.mxu0 %v1594
        %3077 = vmatpush.bf16.msra.mxu0 %v1586
        %3078 = vmatpush.bf16.msra.mxu0 %v1578
        %3079 = vmatpush.bf16.msra.mxu0 %v1570
        %3080 = vmatpush.bf16.msra.mxu0 %v1562
        %3081 = vmatpush.bf16.msra.mxu0 %v1554
        %3082 = vmatpush.bf16.msra.mxu0 %v1546
        %3083 = vmatmul.bf16.gmra.mxu0 %v2915
        %v3084 = vpop.f32.mrf.mxu0
        %v3085 = vadd.f32 0.0, %v3084
        %v3086 = vpop.f32.mrf.mxu0
        %3087 = vdwg.mxu0
        %3088 = vmatpush.bf16.msra.mxu0 %v1666
        %3089 = vmatpush.bf16.msra.mxu0 %v1658
        %3090 = vmatpush.bf16.msra.mxu0 %v1650
        %3091 = vmatpush.bf16.msra.mxu0 %v1642
        %3092 = vmatpush.bf16.msra.mxu0 %v1634
        %3093 = vmatpush.bf16.msra.mxu0 %v1626
        %3094 = vmatpush.bf16.msra.mxu0 %v1618
        %3095 = vmatpush.bf16.msra.mxu0 %v1610
        %3096 = vmatmul.bf16.gmra.mxu0 %v2916
        %v3097 = vpop.f32.mrf.mxu0
        %v3098 = vadd.f32 %v3085, %v3097
        %v3099 = vpop.f32.mrf.mxu0
        %3100 = vdwg.mxu0
        %3101 = vmatpush.bf16.msra.mxu0 %v1603
        %3102 = vmatpush.bf16.msra.mxu0 %v1595
        %3103 = vmatpush.bf16.msra.mxu0 %v1587
        %3104 = vmatpush.bf16.msra.mxu0 %v1579
        %3105 = vmatpush.bf16.msra.mxu0 %v1571
        %3106 = vmatpush.bf16.msra.mxu0 %v1563
        %3107 = vmatpush.bf16.msra.mxu0 %v1555
        %3108 = vmatpush.bf16.msra.mxu0 %v1547
        %3109 = vmatmul.bf16.gmra.mxu0 %v2915
        %v3110 = vpop.f32.mrf.mxu0
        %v3111 = vadd.f32 0.0, %v3110
        %v3112 = vpop.f32.mrf.mxu0
        %3113 = vdwg.mxu0
        %3114 = vmatpush.bf16.msra.mxu0 %v1667
        %3115 = vmatpush.bf16.msra.mxu0 %v1659
        %3116 = vmatpush.bf16.msra.mxu0 %v1651
        %3117 = vmatpush.bf16.msra.mxu0 %v1643
        %3118 = vmatpush.bf16.msra.mxu0 %v1635
        %3119 = vmatpush.bf16.msra.mxu0 %v1627
        %3120 = vmatpush.bf16.msra.mxu0 %v1619
        %3121 = vmatpush.bf16.msra.mxu0 %v1611
        %3122 = vmatmul.bf16.gmra.mxu0 %v2916
        %v3123 = vpop.f32.mrf.mxu0
        %v3124 = vadd.f32 %v3111, %v3123
        %v3125 = vpop.f32.mrf.mxu0
        %3126 = vdwg.mxu0
        %s3127 = sadd.s32 %s297, 4
        %p3128 = scmp.lt.s32.totalorder %s3127, 13
        %v3129 = vadd.f32 %v3046, %v817
        %v3130 = vadd.f32 %v3072, %v818
        %v3131 = vadd.f32 %v3098, %v819
        %v3132 = vadd.f32 %v3124, %v820
        %v3133 = vxor.u32 %v3129, 2147483648
        %v3134 = vmul.f32 %v3133, 1.442695
        %v3135 = vpow.pop %v3134
        %v3136 = vadd.f32 %v3135, 1.0
        %v3137 = vrcp.pop %v3136
        %v3138 = vmul.f32 %v3136, %v3137
        %v3139 = vsub.f32 1.0, %v3138
        %v3140 = vmul.f32 %v3137, %v3139
        %v3141 = vadd.f32 %v3137, %v3140
        %vm3142 = vweird.f32 %v3136
        %vm3143 = vweird.f32 %v3137
        %vm3144 = vmor %vm3142, %vm3143
        %v3145 = vsel %vm3144, %v3137, %v3141
        %v3146 = vand.u32 2147483647, %v3136
        %vm3147 = vcmp.eq.f32.partialorder %v3146, 8.507059e+37
        %v3148 = vand.u32 %v3136, 2147483648
        %v3149 = vor.u32 1.1754944e-38, %v3148
        %v3150 = vsel %vm3147, %v3149, %v3145
        %v3151 = vmul.f32 1.0, %v3150
        %v3152 = vxor.u32 %v3130, 2147483648
        %v3153 = vmul.f32 %v3152, 1.442695
        %v3154 = vpow.pop %v3153
        %v3155 = vadd.f32 %v3154, 1.0
        %v3156 = vrcp.pop %v3155
        %v3157 = vmul.f32 %v3155, %v3156
        %v3158 = vsub.f32 1.0, %v3157
        %v3159 = vmul.f32 %v3156, %v3158
        %v3160 = vadd.f32 %v3156, %v3159
        %vm3161 = vweird.f32 %v3155
        %vm3162 = vweird.f32 %v3156
        %vm3163 = vmor %vm3161, %vm3162
        %v3164 = vsel %vm3163, %v3156, %v3160
        %v3165 = vand.u32 2147483647, %v3155
        %vm3166 = vcmp.eq.f32.partialorder %v3165, 8.507059e+37
        %v3167 = vand.u32 %v3155, 2147483648
        %v3168 = vor.u32 1.1754944e-38, %v3167
        %v3169 = vsel %vm3166, %v3168, %v3164
        %v3170 = vmul.f32 1.0, %v3169
        %v3171 = vtanh.pop %v3131
        %v3172 = vxor.u32 %v3132, 2147483648
        %v3173 = vmul.f32 %v3172, 1.442695
        %v3174 = vpow.pop %v3173
        %v3175 = vadd.f32 %v3174, 1.0
        %v3176 = vrcp.pop %v3175
        %v3177 = vmul.f32 %v3175, %v3176
        %v3178 = vsub.f32 1.0, %v3177
        %v3179 = vmul.f32 %v3176, %v3178
        %v3180 = vadd.f32 %v3176, %v3179
        %vm3181 = vweird.f32 %v3175
        %vm3182 = vweird.f32 %v3176
        %vm3183 = vmor %vm3181, %vm3182
        %v3184 = vsel %vm3183, %v3176, %v3180
        %v3185 = vand.u32 2147483647, %v3175
        %vm3186 = vcmp.eq.f32.partialorder %v3185, 8.507059e+37
        %v3187 = vand.u32 %v3175, 2147483648
        %v3188 = vor.u32 1.1754944e-38, %v3187
        %v3189 = vsel %vm3186, %v3188, %v3184
        %v3190 = vmul.f32 1.0, %v3189
        %v3191 = vmul.f32 %v3170, %v2897
        %v3192 = vmul.f32 %v3151, %v3171
        %v3193 = vadd.f32 %v3191, %v3192
        %v3194 = vtanh.pop %v3193
        %v3195 = vmul.f32 %v3190, %v3194
        %s3196 = smul.u32 4, 4
        %s3197 = smul.addr %s3196, 8
        %s3198 = scalar_lea.vmem [#allocation2], %s3197
        %v3199 = vld [vmem:[%s3198] sm:$0xff]
        %v3200 = vld [vmem:[%s3198 + $0x8] sm:$0xff]
        %v3201 = vld [vmem:[%s3198 + $0x10] sm:$0xff]
        %v3202 = vld [vmem:[%s3198 + $0x18] sm:$0xff]
        %v3203 = vadd.f32 %v3199, %v2942
        %v3204 = vadd.f32 %v3200, %v2968
        %v3205 = vadd.f32 %v3201, %v2994
        %v3206 = vadd.f32 %v3202, %v3020
        %v3207 = vxor.u32 %v3203, 2147483648
        %v3208 = vmul.f32 %v3207, 1.442695
        %v3209 = vpow.pop %v3208
        %v3210 = vadd.f32 %v3209, 1.0
        %v3211 = vrcp.pop %v3210
        %v3212 = vmul.f32 %v3210, %v3211
        %v3213 = vsub.f32 1.0, %v3212
        %v3214 = vmul.f32 %v3211, %v3213
        %v3215 = vadd.f32 %v3211, %v3214
        %vm3216 = vweird.f32 %v3210
        %vm3217 = vweird.f32 %v3211
        %vm3218 = vmor %vm3216, %vm3217
        %v3219 = vsel %vm3218, %v3211, %v3215
        %v3220 = vand.u32 2147483647, %v3210
        %vm3221 = vcmp.eq.f32.partialorder %v3220, 8.507059e+37
        %v3222 = vand.u32 %v3210, 2147483648
        %v3223 = vor.u32 1.1754944e-38, %v3222
        %v3224 = vsel %vm3221, %v3223, %v3219
        %v3225 = vmul.f32 1.0, %v3224
        %v3226 = vxor.u32 %v3204, 2147483648
        %v3227 = vmul.f32 %v3226, 1.442695
        %v3228 = vpow.pop %v3227
        %v3229 = vadd.f32 %v3228, 1.0
        %v3230 = vrcp.pop %v3229
        %v3231 = vmul.f32 %v3229, %v3230
        %v3232 = vsub.f32 1.0, %v3231
        %v3233 = vmul.f32 %v3230, %v3232
        %v3234 = vadd.f32 %v3230, %v3233
        %vm3235 = vweird.f32 %v3229
        %vm3236 = vweird.f32 %v3230
        %vm3237 = vmor %vm3235, %vm3236
        %v3238 = vsel %vm3237, %v3230, %v3234
        %v3239 = vand.u32 2147483647, %v3229
        %vm3240 = vcmp.eq.f32.partialorder %v3239, 8.507059e+37
        %v3241 = vand.u32 %v3229, 2147483648
        %v3242 = vor.u32 1.1754944e-38, %v3241
        %v3243 = vsel %vm3240, %v3242, %v3238
        %v3244 = vmul.f32 1.0, %v3243
        %v3245 = vtanh.pop %v3205
        %v3246 = vxor.u32 %v3206, 2147483648
        %v3247 = vmul.f32 %v3246, 1.442695
        %v3248 = vpow.pop %v3247
        %v3249 = vadd.f32 %v3248, 1.0
        %v3250 = vrcp.pop %v3249
        %v3251 = vmul.f32 %v3249, %v3250
        %v3252 = vsub.f32 1.0, %v3251
        %v3253 = vmul.f32 %v3250, %v3252
        %v3254 = vadd.f32 %v3250, %v3253
        %vm3255 = vweird.f32 %v3249
        %vm3256 = vweird.f32 %v3250
        %vm3257 = vmor %vm3255, %vm3256
        %v3258 = vsel %vm3257, %v3250, %v3254
        %v3259 = vand.u32 2147483647, %v3249
        %vm3260 = vcmp.eq.f32.partialorder %v3259, 8.507059e+37
        %v3261 = vand.u32 %v3249, 2147483648
        %v3262 = vor.u32 1.1754944e-38, %v3261
        %v3263 = vsel %vm3260, %v3262, %v3258
        %v3264 = vmul.f32 1.0, %v3263
        %v3265 = vmul.f32 %v3244, %v2901
        %v3266 = vmul.f32 %v3225, %v3245
        %v3267 = vadd.f32 %v3265, %v3266
        %v3268 = vtanh.pop %v3267
        %v3269 = vmul.f32 %v3264, %v3268
        %v3270 = vsel %vm2900, %v3193, %v2897
        %s3271 = scalar_select %p3128, 1, 0
        %v3272 = vstv %s3271
        %vm3273 = vcmp.eq.s32.totalorder %v3272, 1
        %v3274 = vsel %vm3273, %v3267, %v2901
        %v3275 = vsel %vm2900, %v3195, %v2902
        %v3276 = vpack.c.bf16 %v3269, %v3269
        %v3277 = vsel %vm3273, %v3276, %v2911
        %3278 = vst [vmem:[#allocation3] sm:$0xf] %v3277
        %v3279 = vpack.c.bf16 %v3195, %v3195
        %v3280 = vrot.slane %v2911, 4
        %v3282 = vsel %vm2900, %v3279, %v3280
        %3283 = vst [vmem:[#allocation3 + $0x4] sm:$0xf] %v3282
        %v3284 = vld [vmem:[#allocation3] sm:$0xff]
        %v3286 = vunpack.c.l.b16 %v3284
        %v3287 = vunpack.c.h.b16 %v3284
        %v3288 = vpack.c.b16 %v3286, %v3286
        %v3289 = vpack.c.b16 %v3287, %v3287
        %3292 = vmatpush.bf16.msra.mxu0 %v1596
        %3293 = vmatpush.bf16.msra.mxu0 %v1588
        %3294 = vmatpush.bf16.msra.mxu0 %v1580
        %3295 = vmatpush.bf16.msra.mxu0 %v1572
        %3296 = vmatpush.bf16.msra.mxu0 %v1564
        %3297 = vmatpush.bf16.msra.mxu0 %v1556
        %3298 = vmatpush.bf16.msra.mxu0 %v1548
        %3299 = vmatpush.bf16.msra.mxu0 %v1540
        %3300 = vmatmul.bf16.gmra.mxu0 %v3288
        %v3301 = vpop.f32.mrf.mxu0
        %v3302 = vadd.f32 0.0, %v3301
        %v3303 = vpop.f32.mrf.mxu0
        %3304 = vdwg.mxu0
        %3305 = vmatpush.bf16.msra.mxu0 %v1660
        %3306 = vmatpush.bf16.msra.mxu0 %v1652
        %3307 = vmatpush.bf16.msra.mxu0 %v1644
        %3308 = vmatpush.bf16.msra.mxu0 %v1636
        %3309 = vmatpush.bf16.msra.mxu0 %v1628
        %3310 = vmatpush.bf16.msra.mxu0 %v1620
        %3311 = vmatpush.bf16.msra.mxu0 %v1612
        %3312 = vmatpush.bf16.msra.mxu0 %v1604
        %3313 = vmatmul.bf16.gmra.mxu0 %v3289
        %v3314 = vpop.f32.mrf.mxu0
        %v3315 = vadd.f32 %v3302, %v3314
        %v3316 = vpop.f32.mrf.mxu0
        %3317 = vdwg.mxu0
        %3318 = vmatpush.bf16.msra.mxu0 %v1597
        %3319 = vmatpush.bf16.msra.mxu0 %v1589
        %3320 = vmatpush.bf16.msra.mxu0 %v1581
        %3321 = vmatpush.bf16.msra.mxu0 %v1573
        %3322 = vmatpush.bf16.msra.mxu0 %v1565
        %3323 = vmatpush.bf16.msra.mxu0 %v1557
        %3324 = vmatpush.bf16.msra.mxu0 %v1549
        %3325 = vmatpush.bf16.msra.mxu0 %v1541
        %3326 = vmatmul.bf16.gmra.mxu0 %v3288
        %v3327 = vpop.f32.mrf.mxu0
        %v3328 = vadd.f32 0.0, %v3327
        %v3329 = vpop.f32.mrf.mxu0
        %3330 = vdwg.mxu0
        %3331 = vmatpush.bf16.msra.mxu0 %v1661
        %3332 = vmatpush.bf16.msra.mxu0 %v1653
        %3333 = vmatpush.bf16.msra.mxu0 %v1645
        %3334 = vmatpush.bf16.msra.mxu0 %v1637
        %3335 = vmatpush.bf16.msra.mxu0 %v1629
        %3336 = vmatpush.bf16.msra.mxu0 %v1621
        %3337 = vmatpush.bf16.msra.mxu0 %v1613
        %3338 = vmatpush.bf16.msra.mxu0 %v1605
        %3339 = vmatmul.bf16.gmra.mxu0 %v3289
        %v3340 = vpop.f32.mrf.mxu0
        %v3341 = vadd.f32 %v3328, %v3340
        %v3342 = vpop.f32.mrf.mxu0
        %3343 = vdwg.mxu0
        %3344 = vmatpush.bf16.msra.mxu0 %v1598
        %3345 = vmatpush.bf16.msra.mxu0 %v1590
        %3346 = vmatpush.bf16.msra.mxu0 %v1582
        %3347 = vmatpush.bf16.msra.mxu0 %v1574
        %3348 = vmatpush.bf16.msra.mxu0 %v1566
        %3349 = vmatpush.bf16.msra.mxu0 %v1558
        %3350 = vmatpush.bf16.msra.mxu0 %v1550
        %3351 = vmatpush.bf16.msra.mxu0 %v1542
        %3352 = vmatmul.bf16.gmra.mxu0 %v3288
        %v3353 = vpop.f32.mrf.mxu0
        %v3354 = vadd.f32 0.0, %v3353
        %v3355 = vpop.f32.mrf.mxu0
        %3356 = vdwg.mxu0
        %3357 = vmatpush.bf16.msra.mxu0 %v1662
        %3358 = vmatpush.bf16.msra.mxu0 %v1654
        %3359 = vmatpush.bf16.msra.mxu0 %v1646
        %3360 = vmatpush.bf16.msra.mxu0 %v1638
        %3361 = vmatpush.bf16.msra.mxu0 %v1630
        %3362 = vmatpush.bf16.msra.mxu0 %v1622
        %3363 = vmatpush.bf16.msra.mxu0 %v1614
        %3364 = vmatpush.bf16.msra.mxu0 %v1606
        %3365 = vmatmul.bf16.gmra.mxu0 %v3289
        %v3366 = vpop.f32.mrf.mxu0
        %v3367 = vadd.f32 %v3354, %v3366
        %v3368 = vpop.f32.mrf.mxu0
        %3369 = vdwg.mxu0
        %3370 = vmatpush.bf16.msra.mxu0 %v1599
        %3371 = vmatpush.bf16.msra.mxu0 %v1591
        %3372 = vmatpush.bf16.msra.mxu0 %v1583
        %3373 = vmatpush.bf16.msra.mxu0 %v1575
        %3374 = vmatpush.bf16.msra.mxu0 %v1567
        %3375 = vmatpush.bf16.msra.mxu0 %v1559
        %3376 = vmatpush.bf16.msra.mxu0 %v1551
        %3377 = vmatpush.bf16.msra.mxu0 %v1543
        %3378 = vmatmul.bf16.gmra.mxu0 %v3288
        %v3379 = vpop.f32.mrf.mxu0
        %v3380 = vadd.f32 0.0, %v3379
        %v3381 = vpop.f32.mrf.mxu0
        %3382 = vdwg.mxu0
        %3383 = vmatpush.bf16.msra.mxu0 %v1663
        %3384 = vmatpush.bf16.msra.mxu0 %v1655
        %3385 = vmatpush.bf16.msra.mxu0 %v1647
        %3386 = vmatpush.bf16.msra.mxu0 %v1639
        %3387 = vmatpush.bf16.msra.mxu0 %v1631
        %3388 = vmatpush.bf16.msra.mxu0 %v1623
        %3389 = vmatpush.bf16.msra.mxu0 %v1615
        %3390 = vmatpush.bf16.msra.mxu0 %v1607
        %3391 = vmatmul.bf16.gmra.mxu0 %v3289
        %v3392 = vpop.f32.mrf.mxu0
        %v3393 = vadd.f32 %v3380, %v3392
        %v3394 = vpop.f32.mrf.mxu0
        %3395 = vdwg.mxu0
        %3396 = vmatpush.bf16.msra.mxu0 %v1600
        %3397 = vmatpush.bf16.msra.mxu0 %v1592
        %3398 = vmatpush.bf16.msra.mxu0 %v1584
        %3399 = vmatpush.bf16.msra.mxu0 %v1576
        %3400 = vmatpush.bf16.msra.mxu0 %v1568
        %3401 = vmatpush.bf16.msra.mxu0 %v1560
        %3402 = vmatpush.bf16.msra.mxu0 %v1552
        %3403 = vmatpush.bf16.msra.mxu0 %v1544
        %3404 = vmatmul.bf16.gmra.mxu0 %v3288
        %v3405 = vpop.f32.mrf.mxu0
        %v3406 = vadd.f32 0.0, %v3405
        %v3407 = vpop.f32.mrf.mxu0
        %3408 = vdwg.mxu0
        %3409 = vmatpush.bf16.msra.mxu0 %v1664
        %3410 = vmatpush.bf16.msra.mxu0 %v1656
        %3411 = vmatpush.bf16.msra.mxu0 %v1648
        %3412 = vmatpush.bf16.msra.mxu0 %v1640
        %3413 = vmatpush.bf16.msra.mxu0 %v1632
        %3414 = vmatpush.bf16.msra.mxu0 %v1624
        %3415 = vmatpush.bf16.msra.mxu0 %v1616
        %3416 = vmatpush.bf16.msra.mxu0 %v1608
        %3417 = vmatmul.bf16.gmra.mxu0 %v3289
        %v3418 = vpop.f32.mrf.mxu0
        %v3419 = vadd.f32 %v3406, %v3418
        %v3420 = vpop.f32.mrf.mxu0
        %3421 = vdwg.mxu0
        %3422 = vmatpush.bf16.msra.mxu0 %v1601
        %3423 = vmatpush.bf16.msra.mxu0 %v1593
        %3424 = vmatpush.bf16.msra.mxu0 %v1585
        %3425 = vmatpush.bf16.msra.mxu0 %v1577
        %3426 = vmatpush.bf16.msra.mxu0 %v1569
        %3427 = vmatpush.bf16.msra.mxu0 %v1561
        %3428 = vmatpush.bf16.msra.mxu0 %v1553
        %3429 = vmatpush.bf16.msra.mxu0 %v1545
        %3430 = vmatmul.bf16.gmra.mxu0 %v3288
        %v3431 = vpop.f32.mrf.mxu0
        %v3432 = vadd.f32 0.0, %v3431
        %v3433 = vpop.f32.mrf.mxu0
        %3434 = vdwg.mxu0
        %3435 = vmatpush.bf16.msra.mxu0 %v1665
        %3436 = vmatpush.bf16.msra.mxu0 %v1657
        %3437 = vmatpush.bf16.msra.mxu0 %v1649
        %3438 = vmatpush.bf16.msra.mxu0 %v1641
        %3439 = vmatpush.bf16.msra.mxu0 %v1633
        %3440 = vmatpush.bf16.msra.mxu0 %v1625
        %3441 = vmatpush.bf16.msra.mxu0 %v1617
        %3442 = vmatpush.bf16.msra.mxu0 %v1609
        %3443 = vmatmul.bf16.gmra.mxu0 %v3289
        %v3444 = vpop.f32.mrf.mxu0
        %v3445 = vadd.f32 %v3432, %v3444
        %v3446 = vpop.f32.mrf.mxu0
        %3447 = vdwg.mxu0
        %3448 = vmatpush.bf16.msra.mxu0 %v1602
        %3449 = vmatpush.bf16.msra.mxu0 %v1594
        %3450 = vmatpush.bf16.msra.mxu0 %v1586
        %3451 = vmatpush.bf16.msra.mxu0 %v1578
        %3452 = vmatpush.bf16.msra.mxu0 %v1570
        %3453 = vmatpush.bf16.msra.mxu0 %v1562
        %3454 = vmatpush.bf16.msra.mxu0 %v1554
        %3455 = vmatpush.bf16.msra.mxu0 %v1546
        %3456 = vmatmul.bf16.gmra.mxu0 %v3288
        %v3457 = vpop.f32.mrf.mxu0
        %v3458 = vadd.f32 0.0, %v3457
        %v3459 = vpop.f32.mrf.mxu0
        %3460 = vdwg.mxu0
        %3461 = vmatpush.bf16.msra.mxu0 %v1666
        %3462 = vmatpush.bf16.msra.mxu0 %v1658
        %3463 = vmatpush.bf16.msra.mxu0 %v1650
        %3464 = vmatpush.bf16.msra.mxu0 %v1642
        %3465 = vmatpush.bf16.msra.mxu0 %v1634
        %3466 = vmatpush.bf16.msra.mxu0 %v1626
        %3467 = vmatpush.bf16.msra.mxu0 %v1618
        %3468 = vmatpush.bf16.msra.mxu0 %v1610
        %3469 = vmatmul.bf16.gmra.mxu0 %v3289
        %v3470 = vpop.f32.mrf.mxu0
        %v3471 = vadd.f32 %v3458, %v3470
        %v3472 = vpop.f32.mrf.mxu0
        %3473 = vdwg.mxu0
        %3474 = vmatpush.bf16.msra.mxu0 %v1603
        %3475 = vmatpush.bf16.msra.mxu0 %v1595
        %3476 = vmatpush.bf16.msra.mxu0 %v1587
        %3477 = vmatpush.bf16.msra.mxu0 %v1579
        %3478 = vmatpush.bf16.msra.mxu0 %v1571
        %3479 = vmatpush.bf16.msra.mxu0 %v1563
        %3480 = vmatpush.bf16.msra.mxu0 %v1555
        %3481 = vmatpush.bf16.msra.mxu0 %v1547
        %3482 = vmatmul.bf16.gmra.mxu0 %v3288
        %v3483 = vpop.f32.mrf.mxu0
        %v3484 = vadd.f32 0.0, %v3483
        %v3485 = vpop.f32.mrf.mxu0
        %3486 = vdwg.mxu0
        %3487 = vmatpush.bf16.msra.mxu0 %v1667
        %3488 = vmatpush.bf16.msra.mxu0 %v1659
        %3489 = vmatpush.bf16.msra.mxu0 %v1651
        %3490 = vmatpush.bf16.msra.mxu0 %v1643
        %3491 = vmatpush.bf16.msra.mxu0 %v1635
        %3492 = vmatpush.bf16.msra.mxu0 %v1627
        %3493 = vmatpush.bf16.msra.mxu0 %v1619
        %3494 = vmatpush.bf16.msra.mxu0 %v1611
        %3495 = vmatmul.bf16.gmra.mxu0 %v3289
        %v3496 = vpop.f32.mrf.mxu0
        %v3497 = vadd.f32 %v3484, %v3496
        %v3498 = vpop.f32.mrf.mxu0
        %3499 = vdwg.mxu0
        %s3500 = sadd.s32 %s297, 5
        %p3501 = scmp.lt.s32.totalorder %s3500, 13
        %v3502 = vadd.f32 %v3419, %v817
        %v3503 = vadd.f32 %v3445, %v818
        %v3504 = vadd.f32 %v3471, %v819
        %v3505 = vadd.f32 %v3497, %v820
        %v3506 = vxor.u32 %v3502, 2147483648
        %v3507 = vmul.f32 %v3506, 1.442695
        %v3508 = vpow.pop %v3507
        %v3509 = vadd.f32 %v3508, 1.0
        %v3510 = vrcp.pop %v3509
        %v3511 = vmul.f32 %v3509, %v3510
        %v3512 = vsub.f32 1.0, %v3511
        %v3513 = vmul.f32 %v3510, %v3512
        %v3514 = vadd.f32 %v3510, %v3513
        %vm3515 = vweird.f32 %v3509
        %vm3516 = vweird.f32 %v3510
        %vm3517 = vmor %vm3515, %vm3516
        %v3518 = vsel %vm3517, %v3510, %v3514
        %v3519 = vand.u32 2147483647, %v3509
        %vm3520 = vcmp.eq.f32.partialorder %v3519, 8.507059e+37
        %v3521 = vand.u32 %v3509, 2147483648
        %v3522 = vor.u32 1.1754944e-38, %v3521
        %v3523 = vsel %vm3520, %v3522, %v3518
        %v3524 = vmul.f32 1.0, %v3523
        %v3525 = vxor.u32 %v3503, 2147483648
        %v3526 = vmul.f32 %v3525, 1.442695
        %v3527 = vpow.pop %v3526
        %v3528 = vadd.f32 %v3527, 1.0
        %v3529 = vrcp.pop %v3528
        %v3530 = vmul.f32 %v3528, %v3529
        %v3531 = vsub.f32 1.0, %v3530
        %v3532 = vmul.f32 %v3529, %v3531
        %v3533 = vadd.f32 %v3529, %v3532
        %vm3534 = vweird.f32 %v3528
        %vm3535 = vweird.f32 %v3529
        %vm3536 = vmor %vm3534, %vm3535
        %v3537 = vsel %vm3536, %v3529, %v3533
        %v3538 = vand.u32 2147483647, %v3528
        %vm3539 = vcmp.eq.f32.partialorder %v3538, 8.507059e+37
        %v3540 = vand.u32 %v3528, 2147483648
        %v3541 = vor.u32 1.1754944e-38, %v3540
        %v3542 = vsel %vm3539, %v3541, %v3537
        %v3543 = vmul.f32 1.0, %v3542
        %v3544 = vtanh.pop %v3504
        %v3545 = vxor.u32 %v3505, 2147483648
        %v3546 = vmul.f32 %v3545, 1.442695
        %v3547 = vpow.pop %v3546
        %v3548 = vadd.f32 %v3547, 1.0
        %v3549 = vrcp.pop %v3548
        %v3550 = vmul.f32 %v3548, %v3549
        %v3551 = vsub.f32 1.0, %v3550
        %v3552 = vmul.f32 %v3549, %v3551
        %v3553 = vadd.f32 %v3549, %v3552
        %vm3554 = vweird.f32 %v3548
        %vm3555 = vweird.f32 %v3549
        %vm3556 = vmor %vm3554, %vm3555
        %v3557 = vsel %vm3556, %v3549, %v3553
        %v3558 = vand.u32 2147483647, %v3548
        %vm3559 = vcmp.eq.f32.partialorder %v3558, 8.507059e+37
        %v3560 = vand.u32 %v3548, 2147483648
        %v3561 = vor.u32 1.1754944e-38, %v3560
        %v3562 = vsel %vm3559, %v3561, %v3557
        %v3563 = vmul.f32 1.0, %v3562
        %v3564 = vmul.f32 %v3543, %v3270
        %v3565 = vmul.f32 %v3524, %v3544
        %v3566 = vadd.f32 %v3564, %v3565
        %v3567 = vtanh.pop %v3566
        %v3568 = vmul.f32 %v3563, %v3567
        %s3569 = smul.u32 5, 4
        %s3570 = smul.addr %s3569, 8
        %s3571 = scalar_lea.vmem [#allocation2], %s3570
        %v3572 = vld [vmem:[%s3571] sm:$0xff]
        %v3573 = vld [vmem:[%s3571 + $0x8] sm:$0xff]
        %v3574 = vld [vmem:[%s3571 + $0x10] sm:$0xff]
        %v3575 = vld [vmem:[%s3571 + $0x18] sm:$0xff]
        %v3576 = vadd.f32 %v3572, %v3315
        %v3577 = vadd.f32 %v3573, %v3341
        %v3578 = vadd.f32 %v3574, %v3367
        %v3579 = vadd.f32 %v3575, %v3393
        %v3580 = vxor.u32 %v3576, 2147483648
        %v3581 = vmul.f32 %v3580, 1.442695
        %v3582 = vpow.pop %v3581
        %v3583 = vadd.f32 %v3582, 1.0
        %v3584 = vrcp.pop %v3583
        %v3585 = vmul.f32 %v3583, %v3584
        %v3586 = vsub.f32 1.0, %v3585
        %v3587 = vmul.f32 %v3584, %v3586
        %v3588 = vadd.f32 %v3584, %v3587
        %vm3589 = vweird.f32 %v3583
        %vm3590 = vweird.f32 %v3584
        %vm3591 = vmor %vm3589, %vm3590
        %v3592 = vsel %vm3591, %v3584, %v3588
        %v3593 = vand.u32 2147483647, %v3583
        %vm3594 = vcmp.eq.f32.partialorder %v3593, 8.507059e+37
        %v3595 = vand.u32 %v3583, 2147483648
        %v3596 = vor.u32 1.1754944e-38, %v3595
        %v3597 = vsel %vm3594, %v3596, %v3592
        %v3598 = vmul.f32 1.0, %v3597
        %v3599 = vxor.u32 %v3577, 2147483648
        %v3600 = vmul.f32 %v3599, 1.442695
        %v3601 = vpow.pop %v3600
        %v3602 = vadd.f32 %v3601, 1.0
        %v3603 = vrcp.pop %v3602
        %v3604 = vmul.f32 %v3602, %v3603
        %v3605 = vsub.f32 1.0, %v3604
        %v3606 = vmul.f32 %v3603, %v3605
        %v3607 = vadd.f32 %v3603, %v3606
        %vm3608 = vweird.f32 %v3602
        %vm3609 = vweird.f32 %v3603
        %vm3610 = vmor %vm3608, %vm3609
        %v3611 = vsel %vm3610, %v3603, %v3607
        %v3612 = vand.u32 2147483647, %v3602
        %vm3613 = vcmp.eq.f32.partialorder %v3612, 8.507059e+37
        %v3614 = vand.u32 %v3602, 2147483648
        %v3615 = vor.u32 1.1754944e-38, %v3614
        %v3616 = vsel %vm3613, %v3615, %v3611
        %v3617 = vmul.f32 1.0, %v3616
        %v3618 = vtanh.pop %v3578
        %v3619 = vxor.u32 %v3579, 2147483648
        %v3620 = vmul.f32 %v3619, 1.442695
        %v3621 = vpow.pop %v3620
        %v3622 = vadd.f32 %v3621, 1.0
        %v3623 = vrcp.pop %v3622
        %v3624 = vmul.f32 %v3622, %v3623
        %v3625 = vsub.f32 1.0, %v3624
        %v3626 = vmul.f32 %v3623, %v3625
        %v3627 = vadd.f32 %v3623, %v3626
        %vm3628 = vweird.f32 %v3622
        %vm3629 = vweird.f32 %v3623
        %vm3630 = vmor %vm3628, %vm3629
        %v3631 = vsel %vm3630, %v3623, %v3627
        %v3632 = vand.u32 2147483647, %v3622
        %vm3633 = vcmp.eq.f32.partialorder %v3632, 8.507059e+37
        %v3634 = vand.u32 %v3622, 2147483648
        %v3635 = vor.u32 1.1754944e-38, %v3634
        %v3636 = vsel %vm3633, %v3635, %v3631
        %v3637 = vmul.f32 1.0, %v3636
        %v3638 = vmul.f32 %v3617, %v3274
        %v3639 = vmul.f32 %v3598, %v3618
        %v3640 = vadd.f32 %v3638, %v3639
        %v3641 = vtanh.pop %v3640
        %v3642 = vmul.f32 %v3637, %v3641
        %v3643 = vsel %vm3273, %v3566, %v3270
        %s3644 = scalar_select %p3501, 1, 0
        %v3645 = vstv %s3644
        %vm3646 = vcmp.eq.s32.totalorder %v3645, 1
        %v3647 = vsel %vm3646, %v3640, %v3274
        %v3648 = vsel %vm3273, %v3568, %v3275
        %v3649 = vpack.c.bf16 %v3642, %v3642
        %v3650 = vsel %vm3646, %v3649, %v3284
        %3651 = vst [vmem:[#allocation3] sm:$0xf] %v3650
        %v3652 = vpack.c.bf16 %v3568, %v3568
        %v3653 = vrot.slane %v3284, 4
        %v3655 = vsel %vm3273, %v3652, %v3653
        %3656 = vst [vmem:[#allocation3 + $0x4] sm:$0xf] %v3655
        %v3657 = vld [vmem:[#allocation3] sm:$0xff]
        %v3659 = vunpack.c.l.b16 %v3657
        %v3660 = vunpack.c.h.b16 %v3657
        %v3661 = vpack.c.b16 %v3659, %v3659
        %v3662 = vpack.c.b16 %v3660, %v3660
        %3665 = vmatpush.bf16.msra.mxu0 %v1596
        %3666 = vmatpush.bf16.msra.mxu0 %v1588
        %3667 = vmatpush.bf16.msra.mxu0 %v1580
        %3668 = vmatpush.bf16.msra.mxu0 %v1572
        %3669 = vmatpush.bf16.msra.mxu0 %v1564
        %3670 = vmatpush.bf16.msra.mxu0 %v1556
        %3671 = vmatpush.bf16.msra.mxu0 %v1548
        %3672 = vmatpush.bf16.msra.mxu0 %v1540
        %3673 = vmatmul.bf16.gmra.mxu0 %v3661
        %v3674 = vpop.f32.mrf.mxu0
        %v3675 = vadd.f32 0.0, %v3674
        %v3676 = vpop.f32.mrf.mxu0
        %3677 = vdwg.mxu0
        %3678 = vmatpush.bf16.msra.mxu0 %v1660
        %3679 = vmatpush.bf16.msra.mxu0 %v1652
        %3680 = vmatpush.bf16.msra.mxu0 %v1644
        %3681 = vmatpush.bf16.msra.mxu0 %v1636
        %3682 = vmatpush.bf16.msra.mxu0 %v1628
        %3683 = vmatpush.bf16.msra.mxu0 %v1620
        %3684 = vmatpush.bf16.msra.mxu0 %v1612
        %3685 = vmatpush.bf16.msra.mxu0 %v1604
        %3686 = vmatmul.bf16.gmra.mxu0 %v3662
        %v3687 = vpop.f32.mrf.mxu0
        %v3688 = vadd.f32 %v3675, %v3687
        %v3689 = vpop.f32.mrf.mxu0
        %3690 = vdwg.mxu0
        %3691 = vmatpush.bf16.msra.mxu0 %v1597
        %3692 = vmatpush.bf16.msra.mxu0 %v1589
        %3693 = vmatpush.bf16.msra.mxu0 %v1581
        %3694 = vmatpush.bf16.msra.mxu0 %v1573
        %3695 = vmatpush.bf16.msra.mxu0 %v1565
        %3696 = vmatpush.bf16.msra.mxu0 %v1557
        %3697 = vmatpush.bf16.msra.mxu0 %v1549
        %3698 = vmatpush.bf16.msra.mxu0 %v1541
        %3699 = vmatmul.bf16.gmra.mxu0 %v3661
        %v3700 = vpop.f32.mrf.mxu0
        %v3701 = vadd.f32 0.0, %v3700
        %v3702 = vpop.f32.mrf.mxu0
        %3703 = vdwg.mxu0
        %3704 = vmatpush.bf16.msra.mxu0 %v1661
        %3705 = vmatpush.bf16.msra.mxu0 %v1653
        %3706 = vmatpush.bf16.msra.mxu0 %v1645
        %3707 = vmatpush.bf16.msra.mxu0 %v1637
        %3708 = vmatpush.bf16.msra.mxu0 %v1629
        %3709 = vmatpush.bf16.msra.mxu0 %v1621
        %3710 = vmatpush.bf16.msra.mxu0 %v1613
        %3711 = vmatpush.bf16.msra.mxu0 %v1605
        %3712 = vmatmul.bf16.gmra.mxu0 %v3662
        %v3713 = vpop.f32.mrf.mxu0
        %v3714 = vadd.f32 %v3701, %v3713
        %v3715 = vpop.f32.mrf.mxu0
        %3716 = vdwg.mxu0
        %3717 = vmatpush.bf16.msra.mxu0 %v1598
        %3718 = vmatpush.bf16.msra.mxu0 %v1590
        %3719 = vmatpush.bf16.msra.mxu0 %v1582
        %3720 = vmatpush.bf16.msra.mxu0 %v1574
        %3721 = vmatpush.bf16.msra.mxu0 %v1566
        %3722 = vmatpush.bf16.msra.mxu0 %v1558
        %3723 = vmatpush.bf16.msra.mxu0 %v1550
        %3724 = vmatpush.bf16.msra.mxu0 %v1542
        %3725 = vmatmul.bf16.gmra.mxu0 %v3661
        %v3726 = vpop.f32.mrf.mxu0
        %v3727 = vadd.f32 0.0, %v3726
        %v3728 = vpop.f32.mrf.mxu0
        %3729 = vdwg.mxu0
        %3730 = vmatpush.bf16.msra.mxu0 %v1662
        %3731 = vmatpush.bf16.msra.mxu0 %v1654
        %3732 = vmatpush.bf16.msra.mxu0 %v1646
        %3733 = vmatpush.bf16.msra.mxu0 %v1638
        %3734 = vmatpush.bf16.msra.mxu0 %v1630
        %3735 = vmatpush.bf16.msra.mxu0 %v1622
        %3736 = vmatpush.bf16.msra.mxu0 %v1614
        %3737 = vmatpush.bf16.msra.mxu0 %v1606
        %3738 = vmatmul.bf16.gmra.mxu0 %v3662
        %v3739 = vpop.f32.mrf.mxu0
        %v3740 = vadd.f32 %v3727, %v3739
        %v3741 = vpop.f32.mrf.mxu0
        %3742 = vdwg.mxu0
        %3743 = vmatpush.bf16.msra.mxu0 %v1599
        %3744 = vmatpush.bf16.msra.mxu0 %v1591
        %3745 = vmatpush.bf16.msra.mxu0 %v1583
        %3746 = vmatpush.bf16.msra.mxu0 %v1575
        %3747 = vmatpush.bf16.msra.mxu0 %v1567
        %3748 = vmatpush.bf16.msra.mxu0 %v1559
        %3749 = vmatpush.bf16.msra.mxu0 %v1551
        %3750 = vmatpush.bf16.msra.mxu0 %v1543
        %3751 = vmatmul.bf16.gmra.mxu0 %v3661
        %v3752 = vpop.f32.mrf.mxu0
        %v3753 = vadd.f32 0.0, %v3752
        %v3754 = vpop.f32.mrf.mxu0
        %3755 = vdwg.mxu0
        %3756 = vmatpush.bf16.msra.mxu0 %v1663
        %3757 = vmatpush.bf16.msra.mxu0 %v1655
        %3758 = vmatpush.bf16.msra.mxu0 %v1647
        %3759 = vmatpush.bf16.msra.mxu0 %v1639
        %3760 = vmatpush.bf16.msra.mxu0 %v1631
        %3761 = vmatpush.bf16.msra.mxu0 %v1623
        %3762 = vmatpush.bf16.msra.mxu0 %v1615
        %3763 = vmatpush.bf16.msra.mxu0 %v1607
        %3764 = vmatmul.bf16.gmra.mxu0 %v3662
        %v3765 = vpop.f32.mrf.mxu0
        %v3766 = vadd.f32 %v3753, %v3765
        %v3767 = vpop.f32.mrf.mxu0
        %3768 = vdwg.mxu0
        %3769 = vmatpush.bf16.msra.mxu0 %v1600
        %3770 = vmatpush.bf16.msra.mxu0 %v1592
        %3771 = vmatpush.bf16.msra.mxu0 %v1584
        %3772 = vmatpush.bf16.msra.mxu0 %v1576
        %3773 = vmatpush.bf16.msra.mxu0 %v1568
        %3774 = vmatpush.bf16.msra.mxu0 %v1560
        %3775 = vmatpush.bf16.msra.mxu0 %v1552
        %3776 = vmatpush.bf16.msra.mxu0 %v1544
        %3777 = vmatmul.bf16.gmra.mxu0 %v3661
        %v3778 = vpop.f32.mrf.mxu0
        %v3779 = vadd.f32 0.0, %v3778
        %v3780 = vpop.f32.mrf.mxu0
        %3781 = vdwg.mxu0
        %3782 = vmatpush.bf16.msra.mxu0 %v1664
        %3783 = vmatpush.bf16.msra.mxu0 %v1656
        %3784 = vmatpush.bf16.msra.mxu0 %v1648
        %3785 = vmatpush.bf16.msra.mxu0 %v1640
        %3786 = vmatpush.bf16.msra.mxu0 %v1632
        %3787 = vmatpush.bf16.msra.mxu0 %v1624
        %3788 = vmatpush.bf16.msra.mxu0 %v1616
        %3789 = vmatpush.bf16.msra.mxu0 %v1608
        %3790 = vmatmul.bf16.gmra.mxu0 %v3662
        %v3791 = vpop.f32.mrf.mxu0
        %v3792 = vadd.f32 %v3779, %v3791
        %v3793 = vpop.f32.mrf.mxu0
        %3794 = vdwg.mxu0
        %3795 = vmatpush.bf16.msra.mxu0 %v1601
        %3796 = vmatpush.bf16.msra.mxu0 %v1593
        %3797 = vmatpush.bf16.msra.mxu0 %v1585
        %3798 = vmatpush.bf16.msra.mxu0 %v1577
        %3799 = vmatpush.bf16.msra.mxu0 %v1569
        %3800 = vmatpush.bf16.msra.mxu0 %v1561
        %3801 = vmatpush.bf16.msra.mxu0 %v1553
        %3802 = vmatpush.bf16.msra.mxu0 %v1545
        %3803 = vmatmul.bf16.gmra.mxu0 %v3661
        %v3804 = vpop.f32.mrf.mxu0
        %v3805 = vadd.f32 0.0, %v3804
        %v3806 = vpop.f32.mrf.mxu0
        %3807 = vdwg.mxu0
        %3808 = vmatpush.bf16.msra.mxu0 %v1665
        %3809 = vmatpush.bf16.msra.mxu0 %v1657
        %3810 = vmatpush.bf16.msra.mxu0 %v1649
        %3811 = vmatpush.bf16.msra.mxu0 %v1641
        %3812 = vmatpush.bf16.msra.mxu0 %v1633
        %3813 = vmatpush.bf16.msra.mxu0 %v1625
        %3814 = vmatpush.bf16.msra.mxu0 %v1617
        %3815 = vmatpush.bf16.msra.mxu0 %v1609
        %3816 = vmatmul.bf16.gmra.mxu0 %v3662
        %v3817 = vpop.f32.mrf.mxu0
        %v3818 = vadd.f32 %v3805, %v3817
        %v3819 = vpop.f32.mrf.mxu0
        %3820 = vdwg.mxu0
        %3821 = vmatpush.bf16.msra.mxu0 %v1602
        %3822 = vmatpush.bf16.msra.mxu0 %v1594
        %3823 = vmatpush.bf16.msra.mxu0 %v1586
        %3824 = vmatpush.bf16.msra.mxu0 %v1578
        %3825 = vmatpush.bf16.msra.mxu0 %v1570
        %3826 = vmatpush.bf16.msra.mxu0 %v1562
        %3827 = vmatpush.bf16.msra.mxu0 %v1554
        %3828 = vmatpush.bf16.msra.mxu0 %v1546
        %3829 = vmatmul.bf16.gmra.mxu0 %v3661
        %v3830 = vpop.f32.mrf.mxu0
        %v3831 = vadd.f32 0.0, %v3830
        %v3832 = vpop.f32.mrf.mxu0
        %3833 = vdwg.mxu0
        %3834 = vmatpush.bf16.msra.mxu0 %v1666
        %3835 = vmatpush.bf16.msra.mxu0 %v1658
        %3836 = vmatpush.bf16.msra.mxu0 %v1650
        %3837 = vmatpush.bf16.msra.mxu0 %v1642
        %3838 = vmatpush.bf16.msra.mxu0 %v1634
        %3839 = vmatpush.bf16.msra.mxu0 %v1626
        %3840 = vmatpush.bf16.msra.mxu0 %v1618
        %3841 = vmatpush.bf16.msra.mxu0 %v1610
        %3842 = vmatmul.bf16.gmra.mxu0 %v3662
        %v3843 = vpop.f32.mrf.mxu0
        %v3844 = vadd.f32 %v3831, %v3843
        %v3845 = vpop.f32.mrf.mxu0
        %3846 = vdwg.mxu0
        %3847 = vmatpush.bf16.msra.mxu0 %v1603
        %3848 = vmatpush.bf16.msra.mxu0 %v1595
        %3849 = vmatpush.bf16.msra.mxu0 %v1587
        %3850 = vmatpush.bf16.msra.mxu0 %v1579
        %3851 = vmatpush.bf16.msra.mxu0 %v1571
        %3852 = vmatpush.bf16.msra.mxu0 %v1563
        %3853 = vmatpush.bf16.msra.mxu0 %v1555
        %3854 = vmatpush.bf16.msra.mxu0 %v1547
        %3855 = vmatmul.bf16.gmra.mxu0 %v3661
        %v3856 = vpop.f32.mrf.mxu0
        %v3857 = vadd.f32 0.0, %v3856
        %v3858 = vpop.f32.mrf.mxu0
        %3859 = vdwg.mxu0
        %3860 = vmatpush.bf16.msra.mxu0 %v1667
        %3861 = vmatpush.bf16.msra.mxu0 %v1659
        %3862 = vmatpush.bf16.msra.mxu0 %v1651
        %3863 = vmatpush.bf16.msra.mxu0 %v1643
        %3864 = vmatpush.bf16.msra.mxu0 %v1635
        %3865 = vmatpush.bf16.msra.mxu0 %v1627
        %3866 = vmatpush.bf16.msra.mxu0 %v1619
        %3867 = vmatpush.bf16.msra.mxu0 %v1611
        %3868 = vmatmul.bf16.gmra.mxu0 %v3662
        %v3869 = vpop.f32.mrf.mxu0
        %v3870 = vadd.f32 %v3857, %v3869
        %v3871 = vpop.f32.mrf.mxu0
        %3872 = vdwg.mxu0
        %s3873 = sadd.s32 %s297, 6
        %p3874 = scmp.lt.s32.totalorder %s3873, 13
        %v3875 = vadd.f32 %v3792, %v817
        %v3876 = vadd.f32 %v3818, %v818
        %v3877 = vadd.f32 %v3844, %v819
        %v3878 = vadd.f32 %v3870, %v820
        %v3879 = vxor.u32 %v3875, 2147483648
        %v3880 = vmul.f32 %v3879, 1.442695
        %v3881 = vpow.pop %v3880
        %v3882 = vadd.f32 %v3881, 1.0
        %v3883 = vrcp.pop %v3882
        %v3884 = vmul.f32 %v3882, %v3883
        %v3885 = vsub.f32 1.0, %v3884
        %v3886 = vmul.f32 %v3883, %v3885
        %v3887 = vadd.f32 %v3883, %v3886
        %vm3888 = vweird.f32 %v3882
        %vm3889 = vweird.f32 %v3883
        %vm3890 = vmor %vm3888, %vm3889
        %v3891 = vsel %vm3890, %v3883, %v3887
        %v3892 = vand.u32 2147483647, %v3882
        %vm3893 = vcmp.eq.f32.partialorder %v3892, 8.507059e+37
        %v3894 = vand.u32 %v3882, 2147483648
        %v3895 = vor.u32 1.1754944e-38, %v3894
        %v3896 = vsel %vm3893, %v3895, %v3891
        %v3897 = vmul.f32 1.0, %v3896
        %v3898 = vxor.u32 %v3876, 2147483648
        %v3899 = vmul.f32 %v3898, 1.442695
        %v3900 = vpow.pop %v3899
        %v3901 = vadd.f32 %v3900, 1.0
        %v3902 = vrcp.pop %v3901
        %v3903 = vmul.f32 %v3901, %v3902
        %v3904 = vsub.f32 1.0, %v3903
        %v3905 = vmul.f32 %v3902, %v3904
        %v3906 = vadd.f32 %v3902, %v3905
        %vm3907 = vweird.f32 %v3901
        %vm3908 = vweird.f32 %v3902
        %vm3909 = vmor %vm3907, %vm3908
        %v3910 = vsel %vm3909, %v3902, %v3906
        %v3911 = vand.u32 2147483647, %v3901
        %vm3912 = vcmp.eq.f32.partialorder %v3911, 8.507059e+37
        %v3913 = vand.u32 %v3901, 2147483648
        %v3914 = vor.u32 1.1754944e-38, %v3913
        %v3915 = vsel %vm3912, %v3914, %v3910
        %v3916 = vmul.f32 1.0, %v3915
        %v3917 = vtanh.pop %v3877
        %v3918 = vxor.u32 %v3878, 2147483648
        %v3919 = vmul.f32 %v3918, 1.442695
        %v3920 = vpow.pop %v3919
        %v3921 = vadd.f32 %v3920, 1.0
        %v3922 = vrcp.pop %v3921
        %v3923 = vmul.f32 %v3921, %v3922
        %v3924 = vsub.f32 1.0, %v3923
        %v3925 = vmul.f32 %v3922, %v3924
        %v3926 = vadd.f32 %v3922, %v3925
        %vm3927 = vweird.f32 %v3921
        %vm3928 = vweird.f32 %v3922
        %vm3929 = vmor %vm3927, %vm3928
        %v3930 = vsel %vm3929, %v3922, %v3926
        %v3931 = vand.u32 2147483647, %v3921
        %vm3932 = vcmp.eq.f32.partialorder %v3931, 8.507059e+37
        %v3933 = vand.u32 %v3921, 2147483648
        %v3934 = vor.u32 1.1754944e-38, %v3933
        %v3935 = vsel %vm3932, %v3934, %v3930
        %v3936 = vmul.f32 1.0, %v3935
        %v3937 = vmul.f32 %v3916, %v3643
        %v3938 = vmul.f32 %v3897, %v3917
        %v3939 = vadd.f32 %v3937, %v3938
        %v3940 = vtanh.pop %v3939
        %v3941 = vmul.f32 %v3936, %v3940
        %s3942 = smul.u32 6, 4
        %s3943 = smul.addr %s3942, 8
        %s3944 = scalar_lea.vmem [#allocation2], %s3943
        %v3945 = vld [vmem:[%s3944] sm:$0xff]
        %v3946 = vld [vmem:[%s3944 + $0x8] sm:$0xff]
        %v3947 = vld [vmem:[%s3944 + $0x10] sm:$0xff]
        %v3948 = vld [vmem:[%s3944 + $0x18] sm:$0xff]
        %v3949 = vadd.f32 %v3945, %v3688
        %v3950 = vadd.f32 %v3946, %v3714
        %v3951 = vadd.f32 %v3947, %v3740
        %v3952 = vadd.f32 %v3948, %v3766
        %v3953 = vxor.u32 %v3949, 2147483648
        %v3954 = vmul.f32 %v3953, 1.442695
        %v3955 = vpow.pop %v3954
        %v3956 = vadd.f32 %v3955, 1.0
        %v3957 = vrcp.pop %v3956
        %v3958 = vmul.f32 %v3956, %v3957
        %v3959 = vsub.f32 1.0, %v3958
        %v3960 = vmul.f32 %v3957, %v3959
        %v3961 = vadd.f32 %v3957, %v3960
        %vm3962 = vweird.f32 %v3956
        %vm3963 = vweird.f32 %v3957
        %vm3964 = vmor %vm3962, %vm3963
        %v3965 = vsel %vm3964, %v3957, %v3961
        %v3966 = vand.u32 2147483647, %v3956
        %vm3967 = vcmp.eq.f32.partialorder %v3966, 8.507059e+37
        %v3968 = vand.u32 %v3956, 2147483648
        %v3969 = vor.u32 1.1754944e-38, %v3968
        %v3970 = vsel %vm3967, %v3969, %v3965
        %v3971 = vmul.f32 1.0, %v3970
        %v3972 = vxor.u32 %v3950, 2147483648
        %v3973 = vmul.f32 %v3972, 1.442695
        %v3974 = vpow.pop %v3973
        %v3975 = vadd.f32 %v3974, 1.0
        %v3976 = vrcp.pop %v3975
        %v3977 = vmul.f32 %v3975, %v3976
        %v3978 = vsub.f32 1.0, %v3977
        %v3979 = vmul.f32 %v3976, %v3978
        %v3980 = vadd.f32 %v3976, %v3979
        %vm3981 = vweird.f32 %v3975
        %vm3982 = vweird.f32 %v3976
        %vm3983 = vmor %vm3981, %vm3982
        %v3984 = vsel %vm3983, %v3976, %v3980
        %v3985 = vand.u32 2147483647, %v3975
        %vm3986 = vcmp.eq.f32.partialorder %v3985, 8.507059e+37
        %v3987 = vand.u32 %v3975, 2147483648
        %v3988 = vor.u32 1.1754944e-38, %v3987
        %v3989 = vsel %vm3986, %v3988, %v3984
        %v3990 = vmul.f32 1.0, %v3989
        %v3991 = vtanh.pop %v3951
        %v3992 = vxor.u32 %v3952, 2147483648
        %v3993 = vmul.f32 %v3992, 1.442695
        %v3994 = vpow.pop %v3993
        %v3995 = vadd.f32 %v3994, 1.0
        %v3996 = vrcp.pop %v3995
        %v3997 = vmul.f32 %v3995, %v3996
        %v3998 = vsub.f32 1.0, %v3997
        %v3999 = vmul.f32 %v3996, %v3998
        %v4000 = vadd.f32 %v3996, %v3999
        %vm4001 = vweird.f32 %v3995
        %vm4002 = vweird.f32 %v3996
        %vm4003 = vmor %vm4001, %vm4002
        %v4004 = vsel %vm4003, %v3996, %v4000
        %v4005 = vand.u32 2147483647, %v3995
        %vm4006 = vcmp.eq.f32.partialorder %v4005, 8.507059e+37
        %v4007 = vand.u32 %v3995, 2147483648
        %v4008 = vor.u32 1.1754944e-38, %v4007
        %v4009 = vsel %vm4006, %v4008, %v4004
        %v4010 = vmul.f32 1.0, %v4009
        %v4011 = vmul.f32 %v3990, %v3647
        %v4012 = vmul.f32 %v3971, %v3991
        %v4013 = vadd.f32 %v4011, %v4012
        %v4014 = vtanh.pop %v4013
        %v4015 = vmul.f32 %v4010, %v4014
        %v4016 = vsel %vm3646, %v3939, %v3643
        %s4017 = scalar_select %p3874, 1, 0
        %v4018 = vstv %s4017
        %vm4019 = vcmp.eq.s32.totalorder %v4018, 1
        %v4020 = vsel %vm4019, %v4013, %v3647
        %v4021 = vsel %vm3646, %v3941, %v3648
        %v4022 = vpack.c.bf16 %v4015, %v4015
        %v4023 = vsel %vm4019, %v4022, %v3657
        %4024 = vst [vmem:[#allocation3] sm:$0xf] %v4023
        %v4025 = vpack.c.bf16 %v3941, %v3941
        %v4026 = vrot.slane %v3657, 4
        %v4028 = vsel %vm3646, %v4025, %v4026
        %4029 = vst [vmem:[#allocation3 + $0x4] sm:$0xf] %v4028
        %v4030 = vld [vmem:[#allocation3] sm:$0xff]
        %v4032 = vunpack.c.l.b16 %v4030
        %v4033 = vunpack.c.h.b16 %v4030
        %v4034 = vpack.c.b16 %v4032, %v4032
        %v4035 = vpack.c.b16 %v4033, %v4033
        %4038 = vmatpush.bf16.msra.mxu0 %v1596
        %4039 = vmatpush.bf16.msra.mxu0 %v1588
        %4040 = vmatpush.bf16.msra.mxu0 %v1580
        %4041 = vmatpush.bf16.msra.mxu0 %v1572
        %4042 = vmatpush.bf16.msra.mxu0 %v1564
        %4043 = vmatpush.bf16.msra.mxu0 %v1556
        %4044 = vmatpush.bf16.msra.mxu0 %v1548
        %4045 = vmatpush.bf16.msra.mxu0 %v1540
        %4046 = vmatmul.bf16.gmra.mxu0 %v4034
        %v4047 = vpop.f32.mrf.mxu0
        %v4048 = vadd.f32 0.0, %v4047
        %v4049 = vpop.f32.mrf.mxu0
        %4050 = vdwg.mxu0
        %4051 = vmatpush.bf16.msra.mxu0 %v1660
        %4052 = vmatpush.bf16.msra.mxu0 %v1652
        %4053 = vmatpush.bf16.msra.mxu0 %v1644
        %4054 = vmatpush.bf16.msra.mxu0 %v1636
        %4055 = vmatpush.bf16.msra.mxu0 %v1628
        %4056 = vmatpush.bf16.msra.mxu0 %v1620
        %4057 = vmatpush.bf16.msra.mxu0 %v1612
        %4058 = vmatpush.bf16.msra.mxu0 %v1604
        %4059 = vmatmul.bf16.gmra.mxu0 %v4035
        %v4060 = vpop.f32.mrf.mxu0
        %v4061 = vadd.f32 %v4048, %v4060
        %v4062 = vpop.f32.mrf.mxu0
        %4063 = vdwg.mxu0
        %4064 = vmatpush.bf16.msra.mxu0 %v1597
        %4065 = vmatpush.bf16.msra.mxu0 %v1589
        %4066 = vmatpush.bf16.msra.mxu0 %v1581
        %4067 = vmatpush.bf16.msra.mxu0 %v1573
        %4068 = vmatpush.bf16.msra.mxu0 %v1565
        %4069 = vmatpush.bf16.msra.mxu0 %v1557
        %4070 = vmatpush.bf16.msra.mxu0 %v1549
        %4071 = vmatpush.bf16.msra.mxu0 %v1541
        %4072 = vmatmul.bf16.gmra.mxu0 %v4034
        %v4073 = vpop.f32.mrf.mxu0
        %v4074 = vadd.f32 0.0, %v4073
        %v4075 = vpop.f32.mrf.mxu0
        %4076 = vdwg.mxu0
        %4077 = vmatpush.bf16.msra.mxu0 %v1661
        %4078 = vmatpush.bf16.msra.mxu0 %v1653
        %4079 = vmatpush.bf16.msra.mxu0 %v1645
        %4080 = vmatpush.bf16.msra.mxu0 %v1637
        %4081 = vmatpush.bf16.msra.mxu0 %v1629
        %4082 = vmatpush.bf16.msra.mxu0 %v1621
        %4083 = vmatpush.bf16.msra.mxu0 %v1613
        %4084 = vmatpush.bf16.msra.mxu0 %v1605
        %4085 = vmatmul.bf16.gmra.mxu0 %v4035
        %v4086 = vpop.f32.mrf.mxu0
        %v4087 = vadd.f32 %v4074, %v4086
        %v4088 = vpop.f32.mrf.mxu0
        %4089 = vdwg.mxu0
        %4090 = vmatpush.bf16.msra.mxu0 %v1598
        %4091 = vmatpush.bf16.msra.mxu0 %v1590
        %4092 = vmatpush.bf16.msra.mxu0 %v1582
        %4093 = vmatpush.bf16.msra.mxu0 %v1574
        %4094 = vmatpush.bf16.msra.mxu0 %v1566
        %4095 = vmatpush.bf16.msra.mxu0 %v1558
        %4096 = vmatpush.bf16.msra.mxu0 %v1550
        %4097 = vmatpush.bf16.msra.mxu0 %v1542
        %4098 = vmatmul.bf16.gmra.mxu0 %v4034
        %v4099 = vpop.f32.mrf.mxu0
        %v4100 = vadd.f32 0.0, %v4099
        %v4101 = vpop.f32.mrf.mxu0
        %4102 = vdwg.mxu0
        %4103 = vmatpush.bf16.msra.mxu0 %v1662
        %4104 = vmatpush.bf16.msra.mxu0 %v1654
        %4105 = vmatpush.bf16.msra.mxu0 %v1646
        %4106 = vmatpush.bf16.msra.mxu0 %v1638
        %4107 = vmatpush.bf16.msra.mxu0 %v1630
        %4108 = vmatpush.bf16.msra.mxu0 %v1622
        %4109 = vmatpush.bf16.msra.mxu0 %v1614
        %4110 = vmatpush.bf16.msra.mxu0 %v1606
        %4111 = vmatmul.bf16.gmra.mxu0 %v4035
        %v4112 = vpop.f32.mrf.mxu0
        %v4113 = vadd.f32 %v4100, %v4112
        %v4114 = vpop.f32.mrf.mxu0
        %4115 = vdwg.mxu0
        %4116 = vmatpush.bf16.msra.mxu0 %v1599
        %4117 = vmatpush.bf16.msra.mxu0 %v1591
        %4118 = vmatpush.bf16.msra.mxu0 %v1583
        %4119 = vmatpush.bf16.msra.mxu0 %v1575
        %4120 = vmatpush.bf16.msra.mxu0 %v1567
        %4121 = vmatpush.bf16.msra.mxu0 %v1559
        %4122 = vmatpush.bf16.msra.mxu0 %v1551
        %4123 = vmatpush.bf16.msra.mxu0 %v1543
        %4124 = vmatmul.bf16.gmra.mxu0 %v4034
        %v4125 = vpop.f32.mrf.mxu0
        %v4126 = vadd.f32 0.0, %v4125
        %v4127 = vpop.f32.mrf.mxu0
        %4128 = vdwg.mxu0
        %4129 = vmatpush.bf16.msra.mxu0 %v1663
        %4130 = vmatpush.bf16.msra.mxu0 %v1655
        %4131 = vmatpush.bf16.msra.mxu0 %v1647
        %4132 = vmatpush.bf16.msra.mxu0 %v1639
        %4133 = vmatpush.bf16.msra.mxu0 %v1631
        %4134 = vmatpush.bf16.msra.mxu0 %v1623
        %4135 = vmatpush.bf16.msra.mxu0 %v1615
        %4136 = vmatpush.bf16.msra.mxu0 %v1607
        %4137 = vmatmul.bf16.gmra.mxu0 %v4035
        %v4138 = vpop.f32.mrf.mxu0
        %v4139 = vadd.f32 %v4126, %v4138
        %v4140 = vpop.f32.mrf.mxu0
        %4141 = vdwg.mxu0
        %4142 = vmatpush.bf16.msra.mxu0 %v1600
        %4143 = vmatpush.bf16.msra.mxu0 %v1592
        %4144 = vmatpush.bf16.msra.mxu0 %v1584
        %4145 = vmatpush.bf16.msra.mxu0 %v1576
        %4146 = vmatpush.bf16.msra.mxu0 %v1568
        %4147 = vmatpush.bf16.msra.mxu0 %v1560
        %4148 = vmatpush.bf16.msra.mxu0 %v1552
        %4149 = vmatpush.bf16.msra.mxu0 %v1544
        %4150 = vmatmul.bf16.gmra.mxu0 %v4034
        %v4151 = vpop.f32.mrf.mxu0
        %v4152 = vadd.f32 0.0, %v4151
        %v4153 = vpop.f32.mrf.mxu0
        %4154 = vdwg.mxu0
        %4155 = vmatpush.bf16.msra.mxu0 %v1664
        %4156 = vmatpush.bf16.msra.mxu0 %v1656
        %4157 = vmatpush.bf16.msra.mxu0 %v1648
        %4158 = vmatpush.bf16.msra.mxu0 %v1640
        %4159 = vmatpush.bf16.msra.mxu0 %v1632
        %4160 = vmatpush.bf16.msra.mxu0 %v1624
        %4161 = vmatpush.bf16.msra.mxu0 %v1616
        %4162 = vmatpush.bf16.msra.mxu0 %v1608
        %4163 = vmatmul.bf16.gmra.mxu0 %v4035
        %v4164 = vpop.f32.mrf.mxu0
        %v4165 = vadd.f32 %v4152, %v4164
        %v4166 = vpop.f32.mrf.mxu0
        %4167 = vdwg.mxu0
        %4168 = vmatpush.bf16.msra.mxu0 %v1601
        %4169 = vmatpush.bf16.msra.mxu0 %v1593
        %4170 = vmatpush.bf16.msra.mxu0 %v1585
        %4171 = vmatpush.bf16.msra.mxu0 %v1577
        %4172 = vmatpush.bf16.msra.mxu0 %v1569
        %4173 = vmatpush.bf16.msra.mxu0 %v1561
        %4174 = vmatpush.bf16.msra.mxu0 %v1553
        %4175 = vmatpush.bf16.msra.mxu0 %v1545
        %4176 = vmatmul.bf16.gmra.mxu0 %v4034
        %v4177 = vpop.f32.mrf.mxu0
        %v4178 = vadd.f32 0.0, %v4177
        %v4179 = vpop.f32.mrf.mxu0
        %4180 = vdwg.mxu0
        %4181 = vmatpush.bf16.msra.mxu0 %v1665
        %4182 = vmatpush.bf16.msra.mxu0 %v1657
        %4183 = vmatpush.bf16.msra.mxu0 %v1649
        %4184 = vmatpush.bf16.msra.mxu0 %v1641
        %4185 = vmatpush.bf16.msra.mxu0 %v1633
        %4186 = vmatpush.bf16.msra.mxu0 %v1625
        %4187 = vmatpush.bf16.msra.mxu0 %v1617
        %4188 = vmatpush.bf16.msra.mxu0 %v1609
        %4189 = vmatmul.bf16.gmra.mxu0 %v4035
        %v4190 = vpop.f32.mrf.mxu0
        %v4191 = vadd.f32 %v4178, %v4190
        %v4192 = vpop.f32.mrf.mxu0
        %4193 = vdwg.mxu0
        %4194 = vmatpush.bf16.msra.mxu0 %v1602
        %4195 = vmatpush.bf16.msra.mxu0 %v1594
        %4196 = vmatpush.bf16.msra.mxu0 %v1586
        %4197 = vmatpush.bf16.msra.mxu0 %v1578
        %4198 = vmatpush.bf16.msra.mxu0 %v1570
        %4199 = vmatpush.bf16.msra.mxu0 %v1562
        %4200 = vmatpush.bf16.msra.mxu0 %v1554
        %4201 = vmatpush.bf16.msra.mxu0 %v1546
        %4202 = vmatmul.bf16.gmra.mxu0 %v4034
        %v4203 = vpop.f32.mrf.mxu0
        %v4204 = vadd.f32 0.0, %v4203
        %v4205 = vpop.f32.mrf.mxu0
        %4206 = vdwg.mxu0
        %4207 = vmatpush.bf16.msra.mxu0 %v1666
        %4208 = vmatpush.bf16.msra.mxu0 %v1658
        %4209 = vmatpush.bf16.msra.mxu0 %v1650
        %4210 = vmatpush.bf16.msra.mxu0 %v1642
        %4211 = vmatpush.bf16.msra.mxu0 %v1634
        %4212 = vmatpush.bf16.msra.mxu0 %v1626
        %4213 = vmatpush.bf16.msra.mxu0 %v1618
        %4214 = vmatpush.bf16.msra.mxu0 %v1610
        %4215 = vmatmul.bf16.gmra.mxu0 %v4035
        %v4216 = vpop.f32.mrf.mxu0
        %v4217 = vadd.f32 %v4204, %v4216
        %v4218 = vpop.f32.mrf.mxu0
        %4219 = vdwg.mxu0
        %4220 = vmatpush.bf16.msra.mxu0 %v1603
        %4221 = vmatpush.bf16.msra.mxu0 %v1595
        %4222 = vmatpush.bf16.msra.mxu0 %v1587
        %4223 = vmatpush.bf16.msra.mxu0 %v1579
        %4224 = vmatpush.bf16.msra.mxu0 %v1571
        %4225 = vmatpush.bf16.msra.mxu0 %v1563
        %4226 = vmatpush.bf16.msra.mxu0 %v1555
        %4227 = vmatpush.bf16.msra.mxu0 %v1547
        %4228 = vmatmul.bf16.gmra.mxu0 %v4034
        %v4229 = vpop.f32.mrf.mxu0
        %v4230 = vadd.f32 0.0, %v4229
        %v4231 = vpop.f32.mrf.mxu0
        %4232 = vdwg.mxu0
        %4233 = vmatpush.bf16.msra.mxu0 %v1667
        %4234 = vmatpush.bf16.msra.mxu0 %v1659
        %4235 = vmatpush.bf16.msra.mxu0 %v1651
        %4236 = vmatpush.bf16.msra.mxu0 %v1643
        %4237 = vmatpush.bf16.msra.mxu0 %v1635
        %4238 = vmatpush.bf16.msra.mxu0 %v1627
        %4239 = vmatpush.bf16.msra.mxu0 %v1619
        %4240 = vmatpush.bf16.msra.mxu0 %v1611
        %4241 = vmatmul.bf16.gmra.mxu0 %v4035
        %v4242 = vpop.f32.mrf.mxu0
        %v4243 = vadd.f32 %v4230, %v4242
        %v4244 = vpop.f32.mrf.mxu0
        %4245 = vdwg.mxu0
        %s4246 = sadd.s32 %s297, 7
        %p4247 = scmp.lt.s32.totalorder %s4246, 13
        %v4248 = vadd.f32 %v4165, %v817
        %v4249 = vadd.f32 %v4191, %v818
        %v4250 = vadd.f32 %v4217, %v819
        %v4251 = vadd.f32 %v4243, %v820
        %v4252 = vxor.u32 %v4248, 2147483648
        %v4253 = vmul.f32 %v4252, 1.442695
        %v4254 = vpow.pop %v4253
        %v4255 = vadd.f32 %v4254, 1.0
        %v4256 = vrcp.pop %v4255
        %v4257 = vmul.f32 %v4255, %v4256
        %v4258 = vsub.f32 1.0, %v4257
        %v4259 = vmul.f32 %v4256, %v4258
        %v4260 = vadd.f32 %v4256, %v4259
        %vm4261 = vweird.f32 %v4255
        %vm4262 = vweird.f32 %v4256
        %vm4263 = vmor %vm4261, %vm4262
        %v4264 = vsel %vm4263, %v4256, %v4260
        %v4265 = vand.u32 2147483647, %v4255
        %vm4266 = vcmp.eq.f32.partialorder %v4265, 8.507059e+37
        %v4267 = vand.u32 %v4255, 2147483648
        %v4268 = vor.u32 1.1754944e-38, %v4267
        %v4269 = vsel %vm4266, %v4268, %v4264
        %v4270 = vmul.f32 1.0, %v4269
        %v4271 = vxor.u32 %v4249, 2147483648
        %v4272 = vmul.f32 %v4271, 1.442695
        %v4273 = vpow.pop %v4272
        %v4274 = vadd.f32 %v4273, 1.0
        %v4275 = vrcp.pop %v4274
        %v4276 = vmul.f32 %v4274, %v4275
        %v4277 = vsub.f32 1.0, %v4276
        %v4278 = vmul.f32 %v4275, %v4277
        %v4279 = vadd.f32 %v4275, %v4278
        %vm4280 = vweird.f32 %v4274
        %vm4281 = vweird.f32 %v4275
        %vm4282 = vmor %vm4280, %vm4281
        %v4283 = vsel %vm4282, %v4275, %v4279
        %v4284 = vand.u32 2147483647, %v4274
        %vm4285 = vcmp.eq.f32.partialorder %v4284, 8.507059e+37
        %v4286 = vand.u32 %v4274, 2147483648
        %v4287 = vor.u32 1.1754944e-38, %v4286
        %v4288 = vsel %vm4285, %v4287, %v4283
        %v4289 = vmul.f32 1.0, %v4288
        %v4290 = vtanh.pop %v4250
        %v4291 = vxor.u32 %v4251, 2147483648
        %v4292 = vmul.f32 %v4291, 1.442695
        %v4293 = vpow.pop %v4292
        %v4294 = vadd.f32 %v4293, 1.0
        %v4295 = vrcp.pop %v4294
        %v4296 = vmul.f32 %v4294, %v4295
        %v4297 = vsub.f32 1.0, %v4296
        %v4298 = vmul.f32 %v4295, %v4297
        %v4299 = vadd.f32 %v4295, %v4298
        %vm4300 = vweird.f32 %v4294
        %vm4301 = vweird.f32 %v4295
        %vm4302 = vmor %vm4300, %vm4301
        %v4303 = vsel %vm4302, %v4295, %v4299
        %v4304 = vand.u32 2147483647, %v4294
        %vm4305 = vcmp.eq.f32.partialorder %v4304, 8.507059e+37
        %v4306 = vand.u32 %v4294, 2147483648
        %v4307 = vor.u32 1.1754944e-38, %v4306
        %v4308 = vsel %vm4305, %v4307, %v4303
        %v4309 = vmul.f32 1.0, %v4308
        %v4310 = vmul.f32 %v4289, %v4016
        %v4311 = vmul.f32 %v4270, %v4290
        %v4312 = vadd.f32 %v4310, %v4311
        %v4313 = vtanh.pop %v4312
        %v4314 = vmul.f32 %v4309, %v4313
        %s4315 = smul.u32 7, 4
        %s4316 = smul.addr %s4315, 8
        %s4317 = scalar_lea.vmem [#allocation2], %s4316
        %v4318 = vld [vmem:[%s4317] sm:$0xff]
        %v4319 = vld [vmem:[%s4317 + $0x8] sm:$0xff]
        %v4320 = vld [vmem:[%s4317 + $0x10] sm:$0xff]
        %v4321 = vld [vmem:[%s4317 + $0x18] sm:$0xff]
        %v4322 = vadd.f32 %v4318, %v4061
        %v4323 = vadd.f32 %v4319, %v4087
        %v4324 = vadd.f32 %v4320, %v4113
        %v4325 = vadd.f32 %v4321, %v4139
        %v4326 = vxor.u32 %v4322, 2147483648
        %v4327 = vmul.f32 %v4326, 1.442695
        %v4328 = vpow.pop %v4327
        %v4329 = vadd.f32 %v4328, 1.0
        %v4330 = vrcp.pop %v4329
        %v4331 = vmul.f32 %v4329, %v4330
        %v4332 = vsub.f32 1.0, %v4331
        %v4333 = vmul.f32 %v4330, %v4332
        %v4334 = vadd.f32 %v4330, %v4333
        %vm4335 = vweird.f32 %v4329
        %vm4336 = vweird.f32 %v4330
        %vm4337 = vmor %vm4335, %vm4336
        %v4338 = vsel %vm4337, %v4330, %v4334
        %v4339 = vand.u32 2147483647, %v4329
        %vm4340 = vcmp.eq.f32.partialorder %v4339, 8.507059e+37
        %v4341 = vand.u32 %v4329, 2147483648
        %v4342 = vor.u32 1.1754944e-38, %v4341
        %v4343 = vsel %vm4340, %v4342, %v4338
        %v4344 = vmul.f32 1.0, %v4343
        %v4345 = vxor.u32 %v4323, 2147483648
        %v4346 = vmul.f32 %v4345, 1.442695
        %v4347 = vpow.pop %v4346
        %v4348 = vadd.f32 %v4347, 1.0
        %v4349 = vrcp.pop %v4348
        %v4350 = vmul.f32 %v4348, %v4349
        %v4351 = vsub.f32 1.0, %v4350
        %v4352 = vmul.f32 %v4349, %v4351
        %v4353 = vadd.f32 %v4349, %v4352
        %vm4354 = vweird.f32 %v4348
        %vm4355 = vweird.f32 %v4349
        %vm4356 = vmor %vm4354, %vm4355
        %v4357 = vsel %vm4356, %v4349, %v4353
        %v4358 = vand.u32 2147483647, %v4348
        %vm4359 = vcmp.eq.f32.partialorder %v4358, 8.507059e+37
        %v4360 = vand.u32 %v4348, 2147483648
        %v4361 = vor.u32 1.1754944e-38, %v4360
        %v4362 = vsel %vm4359, %v4361, %v4357
        %v4363 = vmul.f32 1.0, %v4362
        %v4364 = vtanh.pop %v4324
        %v4365 = vxor.u32 %v4325, 2147483648
        %v4366 = vmul.f32 %v4365, 1.442695
        %v4367 = vpow.pop %v4366
        %v4368 = vadd.f32 %v4367, 1.0
        %v4369 = vrcp.pop %v4368
        %v4370 = vmul.f32 %v4368, %v4369
        %v4371 = vsub.f32 1.0, %v4370
        %v4372 = vmul.f32 %v4369, %v4371
        %v4373 = vadd.f32 %v4369, %v4372
        %vm4374 = vweird.f32 %v4368
        %vm4375 = vweird.f32 %v4369
        %vm4376 = vmor %vm4374, %vm4375
        %v4377 = vsel %vm4376, %v4369, %v4373
        %v4378 = vand.u32 2147483647, %v4368
        %vm4379 = vcmp.eq.f32.partialorder %v4378, 8.507059e+37
        %v4380 = vand.u32 %v4368, 2147483648
        %v4381 = vor.u32 1.1754944e-38, %v4380
        %v4382 = vsel %vm4379, %v4381, %v4377
        %v4383 = vmul.f32 1.0, %v4382
        %v4384 = vmul.f32 %v4363, %v4020
        %v4385 = vmul.f32 %v4344, %v4364
        %v4386 = vadd.f32 %v4384, %v4385
        %v4387 = vtanh.pop %v4386
        %v4388 = vmul.f32 %v4383, %v4387
        %v4389 = vsel %vm4019, %v4312, %v4016
        %s4390 = scalar_select %p4247, 1, 0
        %v4391 = vstv %s4390
        %vm4392 = vcmp.eq.s32.totalorder %v4391, 1
        %v4393 = vsel %vm4392, %v4386, %v4020
        %v4394 = vsel %vm4019, %v4314, %v4021
        %v4395 = vpack.c.bf16 %v4388, %v4388
        %v4396 = vsel %vm4392, %v4395, %v4030
        %4397 = vst [vmem:[#allocation3] sm:$0xf] %v4396
        %v4398 = vpack.c.bf16 %v4314, %v4314
        %v4399 = vrot.slane %v4030, 4
        %v4401 = vsel %vm4019, %v4398, %v4399
        %4402 = vst [vmem:[#allocation3 + $0x4] sm:$0xf] %v4401
        %v4403 = vld [vmem:[#allocation3] sm:$0xff]
        %v4405 = vunpack.c.l.b16 %v4403
        %v4406 = vunpack.c.h.b16 %v4403
        %v4407 = vpack.c.b16 %v4405, %v4405
        %v4408 = vpack.c.b16 %v4406, %v4406
        %4411 = vmatpush.bf16.msra.mxu0 %v1600
        %4412 = vmatpush.bf16.msra.mxu0 %v1592
        %4413 = vmatpush.bf16.msra.mxu0 %v1584
        %4414 = vmatpush.bf16.msra.mxu0 %v1576
        %4415 = vmatpush.bf16.msra.mxu0 %v1568
        %4416 = vmatpush.bf16.msra.mxu0 %v1560
        %4417 = vmatpush.bf16.msra.mxu0 %v1552
        %4418 = vmatpush.bf16.msra.mxu0 %v1544
        %4419 = vmatmul.bf16.gmra.mxu0 %v4407
        %v4420 = vpop.f32.mrf.mxu0
        %v4421 = vadd.f32 0.0, %v4420
        %v4422 = vpop.f32.mrf.mxu0
        %4423 = vdwg.mxu0
        %4424 = vmatpush.bf16.msra.mxu0 %v1664
        %4425 = vmatpush.bf16.msra.mxu0 %v1656
        %4426 = vmatpush.bf16.msra.mxu0 %v1648
        %4427 = vmatpush.bf16.msra.mxu0 %v1640
        %4428 = vmatpush.bf16.msra.mxu0 %v1632
        %4429 = vmatpush.bf16.msra.mxu0 %v1624
        %4430 = vmatpush.bf16.msra.mxu0 %v1616
        %4431 = vmatpush.bf16.msra.mxu0 %v1608
        %4432 = vmatmul.bf16.gmra.mxu0 %v4408
        %v4433 = vpop.f32.mrf.mxu0
        %v4434 = vadd.f32 %v4421, %v4433
        %v4435 = vpop.f32.mrf.mxu0
        %4436 = vdwg.mxu0
        %4437 = vmatpush.bf16.msra.mxu0 %v1601
        %4438 = vmatpush.bf16.msra.mxu0 %v1593
        %4439 = vmatpush.bf16.msra.mxu0 %v1585
        %4440 = vmatpush.bf16.msra.mxu0 %v1577
        %4441 = vmatpush.bf16.msra.mxu0 %v1569
        %4442 = vmatpush.bf16.msra.mxu0 %v1561
        %4443 = vmatpush.bf16.msra.mxu0 %v1553
        %4444 = vmatpush.bf16.msra.mxu0 %v1545
        %4445 = vmatmul.bf16.gmra.mxu0 %v4407
        %v4446 = vpop.f32.mrf.mxu0
        %v4447 = vadd.f32 0.0, %v4446
        %v4448 = vpop.f32.mrf.mxu0
        %4449 = vdwg.mxu0
        %4450 = vmatpush.bf16.msra.mxu0 %v1665
        %4451 = vmatpush.bf16.msra.mxu0 %v1657
        %4452 = vmatpush.bf16.msra.mxu0 %v1649
        %4453 = vmatpush.bf16.msra.mxu0 %v1641
        %4454 = vmatpush.bf16.msra.mxu0 %v1633
        %4455 = vmatpush.bf16.msra.mxu0 %v1625
        %4456 = vmatpush.bf16.msra.mxu0 %v1617
        %4457 = vmatpush.bf16.msra.mxu0 %v1609
        %4458 = vmatmul.bf16.gmra.mxu0 %v4408
        %v4459 = vpop.f32.mrf.mxu0
        %v4460 = vadd.f32 %v4447, %v4459
        %v4461 = vpop.f32.mrf.mxu0
        %4462 = vdwg.mxu0
        %4463 = vmatpush.bf16.msra.mxu0 %v1602
        %4464 = vmatpush.bf16.msra.mxu0 %v1594
        %4465 = vmatpush.bf16.msra.mxu0 %v1586
        %4466 = vmatpush.bf16.msra.mxu0 %v1578
        %4467 = vmatpush.bf16.msra.mxu0 %v1570
        %4468 = vmatpush.bf16.msra.mxu0 %v1562
        %4469 = vmatpush.bf16.msra.mxu0 %v1554
        %4470 = vmatpush.bf16.msra.mxu0 %v1546
        %4471 = vmatmul.bf16.gmra.mxu0 %v4407
        %v4472 = vpop.f32.mrf.mxu0
        %v4473 = vadd.f32 0.0, %v4472
        %v4474 = vpop.f32.mrf.mxu0
        %4475 = vdwg.mxu0
        %4476 = vmatpush.bf16.msra.mxu0 %v1666
        %4477 = vmatpush.bf16.msra.mxu0 %v1658
        %4478 = vmatpush.bf16.msra.mxu0 %v1650
        %4479 = vmatpush.bf16.msra.mxu0 %v1642
        %4480 = vmatpush.bf16.msra.mxu0 %v1634
        %4481 = vmatpush.bf16.msra.mxu0 %v1626
        %4482 = vmatpush.bf16.msra.mxu0 %v1618
        %4483 = vmatpush.bf16.msra.mxu0 %v1610
        %4484 = vmatmul.bf16.gmra.mxu0 %v4408
        %v4485 = vpop.f32.mrf.mxu0
        %v4486 = vadd.f32 %v4473, %v4485
        %v4487 = vpop.f32.mrf.mxu0
        %4488 = vdwg.mxu0
        %4489 = vmatpush.bf16.msra.mxu0 %v1603
        %4490 = vmatpush.bf16.msra.mxu0 %v1595
        %4491 = vmatpush.bf16.msra.mxu0 %v1587
        %4492 = vmatpush.bf16.msra.mxu0 %v1579
        %4493 = vmatpush.bf16.msra.mxu0 %v1571
        %4494 = vmatpush.bf16.msra.mxu0 %v1563
        %4495 = vmatpush.bf16.msra.mxu0 %v1555
        %4496 = vmatpush.bf16.msra.mxu0 %v1547
        %4497 = vmatmul.bf16.gmra.mxu0 %v4407
        %v4498 = vpop.f32.mrf.mxu0
        %v4499 = vadd.f32 0.0, %v4498
        %v4500 = vpop.f32.mrf.mxu0
        %4501 = vdwg.mxu0
        %4502 = vmatpush.bf16.msra.mxu0 %v1667
        %4503 = vmatpush.bf16.msra.mxu0 %v1659
        %4504 = vmatpush.bf16.msra.mxu0 %v1651
        %4505 = vmatpush.bf16.msra.mxu0 %v1643
        %4506 = vmatpush.bf16.msra.mxu0 %v1635
        %4507 = vmatpush.bf16.msra.mxu0 %v1627
        %4508 = vmatpush.bf16.msra.mxu0 %v1619
        %4509 = vmatpush.bf16.msra.mxu0 %v1611
        %4510 = vmatmul.bf16.gmra.mxu0 %v4408
        %v4511 = vpop.f32.mrf.mxu0
        %v4512 = vadd.f32 %v4499, %v4511
        %v4513 = vpop.f32.mrf.mxu0
        %4514 = vdwg.mxu0
        %v4515 = vadd.f32 %v4434, %v817
        %v4516 = vadd.f32 %v4460, %v818
        %v4517 = vadd.f32 %v4486, %v819
        %v4518 = vadd.f32 %v4512, %v820
        %v4519 = vxor.u32 %v4515, 2147483648
        %v4520 = vmul.f32 %v4519, 1.442695
        %v4521 = vpow.pop %v4520
        %v4522 = vadd.f32 %v4521, 1.0
        %v4523 = vrcp.pop %v4522
        %v4524 = vmul.f32 %v4522, %v4523
        %v4525 = vsub.f32 1.0, %v4524
        %v4526 = vmul.f32 %v4523, %v4525
        %v4527 = vadd.f32 %v4523, %v4526
        %vm4528 = vweird.f32 %v4522
        %vm4529 = vweird.f32 %v4523
        %vm4530 = vmor %vm4528, %vm4529
        %v4531 = vsel %vm4530, %v4523, %v4527
        %v4532 = vand.u32 2147483647, %v4522
        %vm4533 = vcmp.eq.f32.partialorder %v4532, 8.507059e+37
        %v4534 = vand.u32 %v4522, 2147483648
        %v4535 = vor.u32 1.1754944e-38, %v4534
        %v4536 = vsel %vm4533, %v4535, %v4531
        %v4537 = vmul.f32 1.0, %v4536
        %v4538 = vxor.u32 %v4516, 2147483648
        %v4539 = vmul.f32 %v4538, 1.442695
        %v4540 = vpow.pop %v4539
        %v4541 = vadd.f32 %v4540, 1.0
        %v4542 = vrcp.pop %v4541
        %v4543 = vmul.f32 %v4541, %v4542
        %v4544 = vsub.f32 1.0, %v4543
        %v4545 = vmul.f32 %v4542, %v4544
        %v4546 = vadd.f32 %v4542, %v4545
        %vm4547 = vweird.f32 %v4541
        %vm4548 = vweird.f32 %v4542
        %vm4549 = vmor %vm4547, %vm4548
        %v4550 = vsel %vm4549, %v4542, %v4546
        %v4551 = vand.u32 2147483647, %v4541
        %vm4552 = vcmp.eq.f32.partialorder %v4551, 8.507059e+37
        %v4553 = vand.u32 %v4541, 2147483648
        %v4554 = vor.u32 1.1754944e-38, %v4553
        %v4555 = vsel %vm4552, %v4554, %v4550
        %v4556 = vmul.f32 1.0, %v4555
        %v4557 = vtanh.pop %v4517
        %v4558 = vxor.u32 %v4518, 2147483648
        %v4559 = vmul.f32 %v4558, 1.442695
        %v4560 = vpow.pop %v4559
        %v4561 = vadd.f32 %v4560, 1.0
        %v4562 = vrcp.pop %v4561
        %v4563 = vmul.f32 %v4561, %v4562
        %v4564 = vsub.f32 1.0, %v4563
        %v4565 = vmul.f32 %v4562, %v4564
        %v4566 = vadd.f32 %v4562, %v4565
        %vm4567 = vweird.f32 %v4561
        %vm4568 = vweird.f32 %v4562
        %vm4569 = vmor %vm4567, %vm4568
        %v4570 = vsel %vm4569, %v4562, %v4566
        %v4571 = vand.u32 2147483647, %v4561
        %vm4572 = vcmp.eq.f32.partialorder %v4571, 8.507059e+37
        %v4573 = vand.u32 %v4561, 2147483648
        %v4574 = vor.u32 1.1754944e-38, %v4573
        %v4575 = vsel %vm4572, %v4574, %v4570
        %v4576 = vmul.f32 1.0, %v4575
        %v4577 = vmul.f32 %v4556, %v4389
        %v4578 = vmul.f32 %v4537, %v4557
        %v4579 = vadd.f32 %v4577, %v4578
        %v4580 = vtanh.pop %v4579
        %v4581 = vmul.f32 %v4576, %v4580
        %v4582 = vsel %vm4392, %v4579, %v4389
        %v4583 = vsel %vm4392, %v4581, %v4394
        %v4584 = vpack.c.bf16 %v4581, %v4581
        %v4585 = vrot.slane %v4403, 4
        %v4587 = vsel %vm4392, %v4584, %v4585
        %4588 = vst [vmem:[#allocation3 + $0x4] sm:$0xf] %v4587
        %4589 = vst [vmem:[#allocation4] sm:$0xff] %v4393
        %4590 = vst [vmem:[%s826] sm:$0xff] %v4582
        %p4591 = scmp.eq.s32.totalorder %s22, 1
        // Predicated region
        $region65: #{tpu_custom_call.1} parent=39 // pred_check
          %p4592 = pneg %p4591
        $region66: #{tpu_custom_call.1} parent=39 // pred_check_branch
          %4594 = sbr.rel (%p4592) target = $region68
        $region67: #{tpu_custom_call.1} parent=39 // pred_region
          %4595 = vst [vmem:[#allocation14] sm:$0xff] %v4583
        $region68: #{tpu_custom_call.1} parent=39 // pred_fallthru
          _
        // Predicated region
        $region69: #{tpu_custom_call.1} parent=39 // pred_check
          %p4596 = pneg %p145
        $region70: #{tpu_custom_call.1} parent=39 // pred_check_branch
          %4598 = sbr.rel (%p4596) target = $region72
        $region71: #{tpu_custom_call.1} parent=39 // pred_region
          %4600 = vsyncadd [#allocation7], 0
          %s4602 = sshll.u32 [#allocation14], 4
          %s4603 = int_to_ptr.vmem [resolvable:$true] %s4602
          %s4604 = sshll.u32 %s5, 4
          %s4605 = int_to_ptr.hbm [resolvable:$true] %s4604
          %4607 = dma.vmem_to_hbm [thread:$0]  %s4603, 128, %s4605, [#allocation7]
        $region72: #{tpu_custom_call.1} parent=39 // pred_fallthru
          _
        // Predicated region
        $region73: #{tpu_custom_call.1} parent=39 // pred_check
          %p4608 = pneg %p145
        $region74: #{tpu_custom_call.1} parent=39 // pred_check_branch
          %4610 = sbr.rel (%p4608) target = $region76
        $region75: #{tpu_custom_call.1} parent=39 // pred_region
          %4612 = dma.done [#allocation7], 128
        $region76: #{tpu_custom_call.1} parent=39 // pred_fallthru
          _
      $region40: #{tpu_custom_call.1} parent=5 // pred_fallthru
        _
      %p4613 = scmp.le.s32.totalorder 2, %s17
      // Predicated region
      $region77: #{tpu_custom_call.1} parent=5 // pred_check
        %p4614 = pneg %p4613
      $region78: #{tpu_custom_call.1} parent=5 // pred_check_branch
        %4616 = sbr.rel (%p4614) target = $region80
      $region79: #{tpu_custom_call.1} parent=5 // pred_region
        %s4617 = ssub.s32 %s17, 2
      $region80: #{tpu_custom_call.1} parent=5 // pred_fallthru
        _
    $region6: #{tpu_custom_call.1} parent=1 // loop_footer
      %s21 = sadd.s32 1, %s17
    $region7: #{tpu_custom_call.1} parent=1 // loop_footer_branch
      %16 = sbr.rel target = $region3
    $region8: #{tpu_custom_call.1} parent=1 // loop_exit
      _
    %4618 = vsyncpa [#allocation6], 1
    %s4619 = scalar_lea.sflag [#allocation6], 1
    %4620 = vsyncpa %s4619, 1
    %4621 = vsyncpa [#allocation9], 1
    %4622 = vsyncpa [#allocation12], 1
    %4623 = vsyncpa [#allocation7], 1
    %s4624 = scalar_lea.sflag [#allocation7], 1
    %4625 = vsyncpa %s4624, 1

</llo_original>
